<compile_context>
chip_gen: v7x
topology: tpu7x:2x2x1
jax: 0.10.0
libtpu: 0.0.40
codegen_flags: <defaults>
</compile_context>

<pallas_src>
import jax
import jax.numpy as jnp
from jax.experimental import pallas as pl
from jax.experimental.pallas import tpu as pltpu

IN_DIM = 7752
H1 = 100
H2 = 10
OUT = 2

# Lane-padded sizes (zero padding is numerically exact for this network).
H1P = 128
H2P = 128
OUTP = 128


def _round_up(x, m):
    return (x + m - 1) // m * m


def _vmem_capacity_bytes():
    """Per-core VMEM capacity; conservative 64 MiB (v7x) if the query fails."""
    try:
        cap = getattr(pltpu.get_tpu_info(), "vmem_capacity_bytes", None)
        if cap:
            return int(cap)
    except Exception:
        pass
    return 64 << 20


_VMEM_CAP = _vmem_capacity_bytes()
_LARGE_VMEM = _VMEM_CAP >= (100 << 20)             # v5e / v6e: 128 MiB VMEM
_VMEM_LIMIT_CAP = (96 << 20) if _LARGE_VMEM else (48 << 20)


def _mlp_kernel(x_ref, w1_ref, b1_ref, w2_ref, b2_ref, w3_ref, b3_ref, o_ref):
    # Cast the streamed tile to bf16 in VMEM (no separate HBM convert pass).
    x = x_ref[...].astype(jnp.bfloat16)
    # Layer 1: [TB, 7752]bf16 @ [7752, 128]bf16 -> f32 acc, bias + ReLU in f32.
    h1 = jnp.dot(x, w1_ref[...], preferred_element_type=jnp.float32)
    h1 = jnp.maximum(h1 + b1_ref[...], 0.0).astype(jnp.bfloat16)
    # Layer 2: [TB, 128] @ [128, 128]
    h2 = jnp.dot(h1, w2_ref[...], preferred_element_type=jnp.float32)
    h2 = jnp.maximum(h2 + b2_ref[...], 0.0).astype(jnp.bfloat16)
    # Layer 3: [TB, 128] @ [128, 128] (logits live in cols [:2], rest is zero pad)
    o = jnp.dot(h2, w3_ref[...], preferred_element_type=jnp.float32)
    o_ref[...] = (o + b3_ref[...]).astype(o_ref.dtype)   # lane-dense (TB,128) store


def prepare_params(w1, b1, w2, b2, w3, b3):
    """One-time weight prep: pad to lane-dense shapes + cast to bf16.

    Call once and reuse the result across forwards (do NOT call per step)."""
    w1p = jnp.pad(w1, ((0, 0), (0, H1P - H1))).astype(jnp.bfloat16)
    b1p = jnp.pad(jnp.reshape(b1, (1, H1)), ((0, 0), (0, H1P - H1))).astype(jnp.float32)
    w2p = jnp.pad(w2, ((0, H1P - H1), (0, H2P - H2))).astype(jnp.bfloat16)
    b2p = jnp.pad(jnp.reshape(b2, (1, H2)), ((0, 0), (0, H2P - H2))).astype(jnp.float32)
    w3p = jnp.pad(w3, ((0, H2P - H2), (0, OUTP - OUT))).astype(jnp.bfloat16)
    b3p = jnp.pad(jnp.reshape(b3, (1, OUT)), ((0, 0), (0, OUTP - OUT))).astype(jnp.float32)
    return w1p, b1p, w2p, b2p, w3p, b3p


def _pick_batch_tile(B, x_itemsize):
    """Generation-aware batch tile (multiple of 8 sublanes)."""
    if _LARGE_VMEM:
        tb_cap = 1024                                  # 128 MiB VMEM: big tiles
    else:
        tb_cap = 512 if x_itemsize <= 2 else 256       # v7x: 64 MiB VMEM
    tb = min(tb_cap, _round_up(B, 8))
    # Give both v7x TensorCores (parallel grid axis) at least one tile each.
    if B >= 16 and -(-B // tb) < 2:
        tb = _round_up(-(-B // 2), 8)
    return tb


@jax.jit
def logistic_regression_forward(x, params):
    """x: [B, 7752] (f32 or bf16), params: output of prepare_params()."""
    w1p, b1p, w2p, b2p, w3p, b3p = params
    B = x.shape[0]
    x_itemsize = jnp.dtype(x.dtype).itemsize
    TB = _pick_batch_tile(B, x_itemsize)
    grid = (-(-B // TB),)   # ragged last tile handled by Pallas boundary masking

    # VMEM budget from actual need (double-buffered x/out, resident weights).
    need = (
        2 * TB * IN_DIM * x_itemsize                            # x tiles
        + 2 * (IN_DIM * H1P + H1P * H2P + H2P * OUTP) * 2       # bf16 weights (x2 bufs)
        + 2 * (H1P + H2P + OUTP) * 4                            # f32 biases
        + 2 * TB * OUTP * 4                                     # out tiles
    )
    vmem_limit = int(min(max(int(1.5 * need), 16 << 20), _VMEM_LIMIT_CAP))

    flops = 2 * B * (IN_DIM * H1P + H1P * H2P + H2P * OUTP)
    bytes_accessed = (
        B * IN_DIM * x_itemsize
        + (IN_DIM * H1P + H1P * H2P + H2P * OUTP) * 2
        + (H1P + H2P + OUTP) * 4
        + B * OUTP * 4
    )

    out = pl.pallas_call(
        _mlp_kernel,
        out_shape=jax.ShapeDtypeStruct((B, OUTP), jnp.float32),
        grid_spec=pltpu.PrefetchScalarGridSpec(
            num_scalar_prefetch=0,
            grid=grid,
            in_specs=[
                pl.BlockSpec((TB, IN_DIM), lambda i: (i, 0)),   # x tile, streamed
                pl.BlockSpec((IN_DIM, H1P), lambda i: (0, 0)),  # W1 resident
                pl.BlockSpec((1, H1P), lambda i: (0, 0)),       # b1 resident
                pl.BlockSpec((H1P, H2P), lambda i: (0, 0)),     # W2 resident
                pl.BlockSpec((1, H2P), lambda i: (0, 0)),       # b2 resident
                pl.BlockSpec((H2P, OUTP), lambda i: (0, 0)),    # W3 resident
                pl.BlockSpec((1, OUTP), lambda i: (0, 0)),      # b3 resident
            ],
            out_specs=pl.BlockSpec((TB, OUTP), lambda i: (i, 0)),  # lane-dense store
        ),
        compiler_params=pltpu.CompilerParams(
            dimension_semantics=("parallel",),
            vmem_limit_bytes=vmem_limit,
        ),
        cost_estimate=pl.CostEstimate(
            flops=flops, transcendentals=0, bytes_accessed=bytes_accessed
        ),
    )(x, w1p, b1p, w2p, b2p, w3p, b3p)

    return out[:, :OUT]


def init_params(key):
    """PyTorch nn.Linear default init: U(-1/sqrt(fan_in), 1/sqrt(fan_in))."""

    def linear_init(k, fan_in, fan_out):
        kw, kb = jax.random.split(k)
        bound = 1.0 / (fan_in ** 0.5)
        # stored as (in, out) so the kernel does x @ W
        w = jax.random.uniform(kw, (fan_in, fan_out), jnp.float32, -bound, bound)
        b = jax.random.uniform(kb, (1, fan_out), jnp.float32, -bound, bound)
        return w, b

    k1, k2, k3 = jax.random.split(key, 3)
    w1, b1 = linear_init(k1, IN_DIM, H1)
    w2, b2 = linear_init(k2, H1, H2)
    w3, b3 = linear_init(k3, H2, OUT)
    return w1, b1, w2, b2, w3, b3


if __name__ == "__main__":
    key = jax.random.PRNGKey(0)
    k_params, k_x = jax.random.split(key)
    w1, b1, w2, b2, w3, b3 = init_params(k_params)

    # One-time weight prep (pad + bf16 cast), reused across forwards.
    params = jax.block_until_ready(prepare_params(w1, b1, w2, b2, w3, b3))

    B = 8
    x = jax.random.normal(k_x, (B, IN_DIM), jnp.float32)

    out = logistic_regression_forward(x, params)
    out = jax.block_until_ready(out)
    assert out.shape == (B, OUT)

    # Plain-JAX reference with the same bf16-operand / f32-accumulate recipe.
    xb = x.astype(jnp.bfloat16)
    h = jnp.dot(xb, w1.astype(jnp.bfloat16), preferred_element_type=jnp.float32)
    h = jnp.maximum(h + b1, 0.0).astype(jnp.bfloat16)
    h = jnp.dot(h, w2.astype(jnp.bfloat16), preferred_element_type=jnp.float32)
    h = jnp.maximum(h + b2, 0.0).astype(jnp.bfloat16)
    ref = jnp.dot(h, w3.astype(jnp.bfloat16), preferred_element_type=jnp.float32) + b3

    assert jnp.allclose(out, ref, atol=1e-2, rtol=1e-2), (out, ref)

    print("KERNEL_OK")
</pallas_src>

<mosaic_0001>
module attributes {stable_mosaic.version = 11 : i64} {
  func.func @_mlp_kernel(%arg0: i32, %arg1: memref<8x7752xf32, #tpu.memory_space<vmem>>, %arg2: memref<7752x128xbf16, #tpu.memory_space<vmem>>, %arg3: memref<1x128xf32, #tpu.memory_space<vmem>>, %arg4: memref<128x128xbf16, #tpu.memory_space<vmem>>, %arg5: memref<1x128xf32, #tpu.memory_space<vmem>>, %arg6: memref<128x128xbf16, #tpu.memory_space<vmem>>, %arg7: memref<1x128xf32, #tpu.memory_space<vmem>>, %arg8: memref<8x128xf32, #tpu.memory_space<vmem>>) attributes {dimension_semantics = [#tpu.dimension_semantics<parallel>], iteration_bounds = array<i64: 1>, scalar_prefetch = 0 : i64, scratch_operands = 0 : i64, tpu.core_type = #tpu.core_type<tc>, window_params = [{transform_indices = @transform_0, window_bounds = array<i64: 8, 7752>}, {pipeline_mode = #tpu.pipeline_mode<synchronous>, transform_indices = @transform_1, window_bounds = array<i64: 7752, 128>}, {pipeline_mode = #tpu.pipeline_mode<synchronous>, transform_indices = @transform_2, window_bounds = array<i64: 1, 128>}, {pipeline_mode = #tpu.pipeline_mode<synchronous>, transform_indices = @transform_3, window_bounds = array<i64: 128, 128>}, {pipeline_mode = #tpu.pipeline_mode<synchronous>, transform_indices = @transform_4, window_bounds = array<i64: 1, 128>}, {pipeline_mode = #tpu.pipeline_mode<synchronous>, transform_indices = @transform_5, window_bounds = array<i64: 128, 128>}, {pipeline_mode = #tpu.pipeline_mode<synchronous>, transform_indices = @transform_6, window_bounds = array<i64: 1, 128>}, {transform_indices = @transform_7, window_bounds = array<i64: 8, 128>}]} {
    %c0 = arith.constant 0 : index
    %c0_0 = arith.constant 0 : index
    %0 = vector.load %arg1[%c0, %c0_0] : memref<8x7752xf32, #tpu.memory_space<vmem>>, vector<8x7752xf32>
    %1 = arith.truncf %0 : vector<8x7752xf32> to vector<8x7752xbf16>
    %c0_1 = arith.constant 0 : index
    %c0_2 = arith.constant 0 : index
    %2 = vector.load %arg2[%c0_1, %c0_2] : memref<7752x128xbf16, #tpu.memory_space<vmem>>, vector<7752x128xbf16>
    %cst = arith.constant dense<0.000000e+00> : vector<8x128xf32>
    %3 = tpu.matmul %1, %2, %cst {dimension_numbers = #tpu.dot_dimension_numbers<[1], [0], [0], [1], [0, 0, 1, 1], [], []>} : vector<8x7752xbf16>, vector<7752x128xbf16>, vector<8x128xf32> -> vector<8x128xf32>
    %c0_3 = arith.constant 0 : index
    %c0_4 = arith.constant 0 : index
    %4 = vector.load %arg3[%c0_3, %c0_4] : memref<1x128xf32, #tpu.memory_space<vmem>>, vector<1x128xf32>
    %5 = vector.broadcast %4 : vector<1x128xf32> to vector<8x128xf32>
    %6 = arith.addf %3, %5 : vector<8x128xf32>
    %cst_5 = arith.constant 0.000000e+00 : f32
    %7 = vector.broadcast %cst_5 : f32 to vector<8x128xf32>
    %8 = arith.maximumf %6, %7 : vector<8x128xf32>
    %9 = arith.truncf %8 : vector<8x128xf32> to vector<8x128xbf16>
    %c0_6 = arith.constant 0 : index
    %c0_7 = arith.constant 0 : index
    %10 = vector.load %arg4[%c0_6, %c0_7] : memref<128x128xbf16, #tpu.memory_space<vmem>>, vector<128x128xbf16>
    %cst_8 = arith.constant dense<0.000000e+00> : vector<8x128xf32>
    %11 = tpu.matmul %9, %10, %cst_8 {dimension_numbers = #tpu.dot_dimension_numbers<[1], [0], [0], [1], [0, 0, 1, 1], [], []>} : vector<8x128xbf16>, vector<128x128xbf16>, vector<8x128xf32> -> vector<8x128xf32>
    %c0_9 = arith.constant 0 : index
    %c0_10 = arith.constant 0 : index
    %12 = vector.load %arg5[%c0_9, %c0_10] : memref<1x128xf32, #tpu.memory_space<vmem>>, vector<1x128xf32>
    %13 = vector.broadcast %12 : vector<1x128xf32> to vector<8x128xf32>
    %14 = arith.addf %11, %13 : vector<8x128xf32>
    %cst_11 = arith.constant 0.000000e+00 : f32
    %15 = vector.broadcast %cst_11 : f32 to vector<8x128xf32>
    %16 = arith.maximumf %14, %15 : vector<8x128xf32>
    %17 = arith.truncf %16 : vector<8x128xf32> to vector<8x128xbf16>
    %c0_12 = arith.constant 0 : index
    %c0_13 = arith.constant 0 : index
    %18 = vector.load %arg6[%c0_12, %c0_13] : memref<128x128xbf16, #tpu.memory_space<vmem>>, vector<128x128xbf16>
    %cst_14 = arith.constant dense<0.000000e+00> : vector<8x128xf32>
    %19 = tpu.matmul %17, %18, %cst_14 {dimension_numbers = #tpu.dot_dimension_numbers<[1], [0], [0], [1], [0, 0, 1, 1], [], []>} : vector<8x128xbf16>, vector<128x128xbf16>, vector<8x128xf32> -> vector<8x128xf32>
    %c0_15 = arith.constant 0 : index
    %c0_16 = arith.constant 0 : index
    %20 = vector.load %arg7[%c0_15, %c0_16] : memref<1x128xf32, #tpu.memory_space<vmem>>, vector<1x128xf32>
    %21 = vector.broadcast %20 : vector<1x128xf32> to vector<8x128xf32>
    %22 = arith.addf %19, %21 : vector<8x128xf32>
    %c0_17 = arith.constant 0 : index
    %c0_18 = arith.constant 0 : index
    %23 = vector.load %arg8[%c0_17, %c0_18] : memref<8x128xf32, #tpu.memory_space<vmem>>, vector<8x128xf32>
    tpu.vector_store %arg8[%c0_17, %c0_18], %22 {strides = array<i32>} : memref<8x128xf32, #tpu.memory_space<vmem>>, vector<8x128xf32>,
    return
  }
  func.func @transform_0(%arg0: i32) -> (i32, i32) {
    %c0_i32 = arith.constant 0 : i32
    %c0_i32_0 = arith.constant 0 : i32
    return %arg0, %c0_i32 : i32, i32
  }
  func.func @transform_1(%arg0: i32) -> (i32, i32) {
    %c0_i32 = arith.constant 0 : i32
    %c0_i32_0 = arith.constant 0 : i32
    %c0_i32_1 = arith.constant 0 : i32
    return %c0_i32, %c0_i32_0 : i32, i32
  }
  func.func @transform_2(%arg0: i32) -> (i32, i32) {
    %c0_i32 = arith.constant 0 : i32
    %c0_i32_0 = arith.constant 0 : i32
    %c0_i32_1 = arith.constant 0 : i32
    return %c0_i32, %c0_i32_0 : i32, i32
  }
  func.func @transform_3(%arg0: i32) -> (i32, i32) {
    %c0_i32 = arith.constant 0 : i32
    %c0_i32_0 = arith.constant 0 : i32
    %c0_i32_1 = arith.constant 0 : i32
    return %c0_i32, %c0_i32_0 : i32, i32
  }
  func.func @transform_4(%arg0: i32) -> (i32, i32) {
    %c0_i32 = arith.constant 0 : i32
    %c0_i32_0 = arith.constant 0 : i32
    %c0_i32_1 = arith.constant 0 : i32
    return %c0_i32, %c0_i32_0 : i32, i32
  }
  func.func @transform_5(%arg0: i32) -> (i32, i32) {
    %c0_i32 = arith.constant 0 : i32
    %c0_i32_0 = arith.constant 0 : i32
    %c0_i32_1 = arith.constant 0 : i32
    return %c0_i32, %c0_i32_0 : i32, i32
  }
  func.func @transform_6(%arg0: i32) -> (i32, i32) {
    %c0_i32 = arith.constant 0 : i32
    %c0_i32_0 = arith.constant 0 : i32
    %c0_i32_1 = arith.constant 0 : i32
    return %c0_i32, %c0_i32_0 : i32, i32
  }
  func.func @transform_7(%arg0: i32) -> (i32, i32) {
    %c0_i32 = arith.constant 0 : i32
    %c0_i32_0 = arith.constant 0 : i32
    return %arg0, %c0_i32 : i32, i32
  }
}

</mosaic_0001>

<llo_original>
// kernel: logistic_regression_forward.1
$region0: #{logistic_regression_forward.1}
  #allocation0 [shape = 'u32[]', space=smem, size = 0x4, offset = 0x4, fixed_abs, tag = 'smem constant byte address 0x4 - core index']
  #allocation1 [shape = 'u32[144,128]{1,0:T(1,128)}', space=vmem, size = 0x12000, scoped, tag = 'internal scratch']
  %s0 = inlined_call_operand.hbm [shape: f32[8,7752], index: 0, kind: input, shape index: {}]
  %s1 = inlined_call_operand.hbm [shape: bf16[7752,128], index: 1, kind: input, shape index: {}]
  %s2 = inlined_call_operand.hbm [shape: f32[1,128], index: 2, kind: input, shape index: {}]
  %s3 = inlined_call_operand.hbm [shape: bf16[128,128], index: 3, kind: input, shape index: {}]
  %s4 = inlined_call_operand.hbm [shape: f32[1,128], index: 4, kind: input, shape index: {}]
  %s5 = inlined_call_operand.hbm [shape: bf16[128,128], index: 5, kind: input, shape index: {}]
  %s6 = inlined_call_operand.hbm [shape: f32[1,128], index: 6, kind: input, shape index: {}]
  %s7 = inlined_call_operand.vmem [shape: f32[8,128], index: 7, kind: output, shape index: {}]
  %s8 = sld [smem:[#allocation0]]
  $region66: #{logistic_regression_forward.1} parent=0
    _
  %s10 = ssub.s32 1, %s8
  %s11 = scalar_select 0, %s10, %s8
  $region1: #{logistic_regression_forward.1} parent=0
    #allocation2 [shape = 'u8[249856]{0}', space=vmem, size = 0x3d000, scoped, tag = 'input window, operand 0, single buffered']
    #allocation3 [shape = 's32[1]{0}', space=sflag, size = 0x4, scoped, tag = 'scoped memory for logistic_regression_forward.1']
    #allocation4 [shape = 'u8[1984512]{0}', space=vmem, size = 0x1e4800, scoped, tag = 'input window, operand 1, single buffered']
    #allocation5 [shape = 's32[1]{0}', space=sflag, size = 0x4, scoped, tag = 'scoped memory for logistic_regression_forward.1']
    #allocation6 [shape = 'u8[512]{0}', space=vmem, size = 0x400, scoped, tag = 'input window, operand 2, single buffered']
    #allocation7 [shape = 'u8[32768]{0}', space=vmem, size = 0x8000, scoped, tag = 'input window, operand 3, single buffered']
    #allocation8 [shape = 's32[1]{0}', space=sflag, size = 0x4, scoped, tag = 'scoped memory for logistic_regression_forward.1']
    #allocation9 [shape = 'u8[512]{0}', space=vmem, size = 0x400, scoped, tag = 'input window, operand 4, single buffered']
    #allocation10 [shape = 'u8[32768]{0}', space=vmem, size = 0x8000, scoped, tag = 'input window, operand 5, single buffered']
    #allocation11 [shape = 's32[1]{0}', space=sflag, size = 0x4, scoped, tag = 'scoped memory for logistic_regression_forward.1']
    #allocation12 [shape = 'u8[512]{0}', space=vmem, size = 0x400, scoped, tag = 'input window, operand 6, single buffered']
    %12 = vsyncpa [#allocation3], 0
    %13 = vsyncpa [#allocation5], 0
    %14 = vsyncpa [#allocation8], 0
    %15 = vsyncpa [#allocation11], 0
    // Predicated region
    $region2: #{logistic_regression_forward.1} parent=1 // pred_check
      _
    $region3: #{logistic_regression_forward.1} parent=1 // pred_check_branch
      %17 = sbr.rel (0) target = $region5
    $region4: #{logistic_regression_forward.1} parent=1 // pred_region
      %s19 = ssub.s32 7808, 7808
      %20 = vsyncadd [#allocation3], %s19
      %s22 = sshll.u32 [#allocation2], 4
      %s23 = int_to_ptr.vmem [resolvable:$true] %s22
      %25 = dma.hbm_to_vmem [thread:$0]  %s0, 7808, %s23, [#allocation3]
    $region5: #{logistic_regression_forward.1} parent=1 // pred_fallthru
      _
    // Predicated region
    $region6: #{logistic_regression_forward.1} parent=1 // pred_check
      _
    $region7: #{logistic_regression_forward.1} parent=1 // pred_check_branch
      %27 = sbr.rel (0) target = $region9
    $region8: #{logistic_regression_forward.1} parent=1 // pred_region
      %s29 = ssub.s32 62016, 62016
      %30 = vsyncadd [#allocation5], %s29
      %s31 = sshll.u32 [#allocation4], 4
      %s32 = int_to_ptr.vmem [resolvable:$true] %s31
      %37 = dma.hbm_to_vmem [thread:$0]  %s1, 62016, %s32, [#allocation5], 64, 64, 4
    $region9: #{logistic_regression_forward.1} parent=1 // pred_fallthru
      _
    // Predicated region
    $region10: #{logistic_regression_forward.1} parent=1 // pred_check
      _
    $region11: #{logistic_regression_forward.1} parent=1 // pred_check_branch
      %39 = sbr.rel (0) target = $region13
    $region12: #{logistic_regression_forward.1} parent=1 // pred_region
      %s41 = ssub.s32 16, 16
      %42 = vsyncadd [#allocation5], %s41
      %s44 = sshll.u32 [#allocation6], 4
      %s45 = int_to_ptr.vmem [resolvable:$true] %s44
      %47 = dma.hbm_to_vmem [thread:$0]  %s2, 16, %s45, [#allocation5]
    $region13: #{logistic_regression_forward.1} parent=1 // pred_fallthru
      _
    // Predicated region
    $region14: #{logistic_regression_forward.1} parent=1 // pred_check
      _
    $region15: #{logistic_regression_forward.1} parent=1 // pred_check_branch
      %49 = sbr.rel (0) target = $region17
    $region16: #{logistic_regression_forward.1} parent=1 // pred_region
      %s51 = ssub.s32 1024, 1024
      %52 = vsyncadd [#allocation8], %s51
      %s53 = sshll.u32 [#allocation7], 4
      %s54 = int_to_ptr.vmem [resolvable:$true] %s53
      %59 = dma.hbm_to_vmem [thread:$0]  %s3, 1024, %s54, [#allocation8], 64, 64, 4
    $region17: #{logistic_regression_forward.1} parent=1 // pred_fallthru
      _
    // Predicated region
    $region18: #{logistic_regression_forward.1} parent=1 // pred_check
      _
    $region19: #{logistic_regression_forward.1} parent=1 // pred_check_branch
      %61 = sbr.rel (0) target = $region21
    $region20: #{logistic_regression_forward.1} parent=1 // pred_region
      %s63 = ssub.s32 16, 16
      %64 = vsyncadd [#allocation8], %s63
      %s66 = sshll.u32 [#allocation9], 4
      %s67 = int_to_ptr.vmem [resolvable:$true] %s66
      %69 = dma.hbm_to_vmem [thread:$0]  %s4, 16, %s67, [#allocation8]
    $region21: #{logistic_regression_forward.1} parent=1 // pred_fallthru
      _
    // Predicated region
    $region22: #{logistic_regression_forward.1} parent=1 // pred_check
      _
    $region23: #{logistic_regression_forward.1} parent=1 // pred_check_branch
      %71 = sbr.rel (0) target = $region25
    $region24: #{logistic_regression_forward.1} parent=1 // pred_region
      %s73 = ssub.s32 1024, 1024
      %74 = vsyncadd [#allocation11], %s73
      %s75 = sshll.u32 [#allocation10], 4
      %s76 = int_to_ptr.vmem [resolvable:$true] %s75
      %81 = dma.hbm_to_vmem [thread:$0]  %s5, 1024, %s76, [#allocation11], 64, 64, 4
    $region25: #{logistic_regression_forward.1} parent=1 // pred_fallthru
      _
    // Predicated region
    $region26: #{logistic_regression_forward.1} parent=1 // pred_check
      _
    $region27: #{logistic_regression_forward.1} parent=1 // pred_check_branch
      %83 = sbr.rel (0) target = $region29
    $region28: #{logistic_regression_forward.1} parent=1 // pred_region
      %s85 = ssub.s32 16, 16
      %86 = vsyncadd [#allocation11], %s85
      %s88 = sshll.u32 [#allocation12], 4
      %s89 = int_to_ptr.vmem [resolvable:$true] %s88
      %91 = dma.hbm_to_vmem [thread:$0]  %s6, 16, %s89, [#allocation11]
    $region29: #{logistic_regression_forward.1} parent=1 // pred_fallthru
      _
    // Predicated region
    $region30: #{logistic_regression_forward.1} parent=1 // pred_check
      _
    $region31: #{logistic_regression_forward.1} parent=1 // pred_check_branch
      %93 = sbr.rel (0) target = $region33
    $region32: #{logistic_regression_forward.1} parent=1 // pred_region
      %94 = dma.done [#allocation3], 7808
    $region33: #{logistic_regression_forward.1} parent=1 // pred_fallthru
      _
    // Predicated region
    $region34: #{logistic_regression_forward.1} parent=1 // pred_check
      _
    $region35: #{logistic_regression_forward.1} parent=1 // pred_check_branch
      %96 = sbr.rel (0) target = $region37
    $region36: #{logistic_regression_forward.1} parent=1 // pred_region
      %97 = dma.done [#allocation5], 62016
    $region37: #{logistic_regression_forward.1} parent=1 // pred_fallthru
      _
    // Predicated region
    $region38: #{logistic_regression_forward.1} parent=1 // pred_check
      _
    $region39: #{logistic_regression_forward.1} parent=1 // pred_check_branch
      %99 = sbr.rel (0) target = $region41
    $region40: #{logistic_regression_forward.1} parent=1 // pred_region
      %100 = dma.done [#allocation5], 16
    $region41: #{logistic_regression_forward.1} parent=1 // pred_fallthru
      _
    // Predicated region
    $region42: #{logistic_regression_forward.1} parent=1 // pred_check
      _
    $region43: #{logistic_regression_forward.1} parent=1 // pred_check_branch
      %102 = sbr.rel (0) target = $region45
    $region44: #{logistic_regression_forward.1} parent=1 // pred_region
      %103 = dma.done [#allocation8], 1024
    $region45: #{logistic_regression_forward.1} parent=1 // pred_fallthru
      _
    // Predicated region
    $region46: #{logistic_regression_forward.1} parent=1 // pred_check
      _
    $region47: #{logistic_regression_forward.1} parent=1 // pred_check_branch
      %105 = sbr.rel (0) target = $region49
    $region48: #{logistic_regression_forward.1} parent=1 // pred_region
      %106 = dma.done [#allocation8], 16
    $region49: #{logistic_regression_forward.1} parent=1 // pred_fallthru
      _
    // Predicated region
    $region50: #{logistic_regression_forward.1} parent=1 // pred_check
      _
    $region51: #{logistic_regression_forward.1} parent=1 // pred_check_branch
      %108 = sbr.rel (0) target = $region53
    $region52: #{logistic_regression_forward.1} parent=1 // pred_region
      %109 = dma.done [#allocation11], 1024
    $region53: #{logistic_regression_forward.1} parent=1 // pred_fallthru
      _
    // Predicated region
    $region54: #{logistic_regression_forward.1} parent=1 // pred_check
      _
    $region55: #{logistic_regression_forward.1} parent=1 // pred_check_branch
      %111 = sbr.rel (0) target = $region57
    $region56: #{logistic_regression_forward.1} parent=1 // pred_region
      %112 = dma.done [#allocation11], 16
    $region57: #{logistic_regression_forward.1} parent=1 // pred_fallthru
      _
    %v114 = vld [vmem:[#allocation2] sm:$0xff]
    %v115 = vld [vmem:[#allocation2 + $0x8] sm:$0xff]
    %v116 = vld [vmem:[#allocation2 + $0x10] sm:$0xff]
    %v117 = vld [vmem:[#allocation2 + $0x18] sm:$0xff]
    %v118 = vld [vmem:[#allocation2 + $0x20] sm:$0xff]
    %v119 = vld [vmem:[#allocation2 + $0x28] sm:$0xff]
    %v120 = vld [vmem:[#allocation2 + $0x30] sm:$0xff]
    %v121 = vld [vmem:[#allocation2 + $0x38] sm:$0xff]
    %v122 = vld [vmem:[#allocation2 + $0x40] sm:$0xff]
    %v123 = vld [vmem:[#allocation2 + $0x48] sm:$0xff]
    %v124 = vld [vmem:[#allocation2 + $0x50] sm:$0xff]
    %v125 = vld [vmem:[#allocation2 + $0x58] sm:$0xff]
    %v126 = vld [vmem:[#allocation2 + $0x60] sm:$0xff]
    %v127 = vld [vmem:[#allocation2 + $0x68] sm:$0xff]
    %v128 = vld [vmem:[#allocation2 + $0x70] sm:$0xff]
    %v129 = vld [vmem:[#allocation2 + $0x78] sm:$0xff]
    %v130 = vld [vmem:[#allocation2 + $0x80] sm:$0xff]
    %v131 = vld [vmem:[#allocation2 + $0x88] sm:$0xff]
    %v132 = vld [vmem:[#allocation2 + $0x90] sm:$0xff]
    %v133 = vld [vmem:[#allocation2 + $0x98] sm:$0xff]
    %v134 = vld [vmem:[#allocation2 + $0xa0] sm:$0xff]
    %v135 = vld [vmem:[#allocation2 + $0xa8] sm:$0xff]
    %v136 = vld [vmem:[#allocation2 + $0xb0] sm:$0xff]
    %v137 = vld [vmem:[#allocation2 + $0xb8] sm:$0xff]
    %v138 = vld [vmem:[#allocation2 + $0xc0] sm:$0xff]
    %v139 = vld [vmem:[#allocation2 + $0xc8] sm:$0xff]
    %v140 = vld [vmem:[#allocation2 + $0xd0] sm:$0xff]
    %v141 = vld [vmem:[#allocation2 + $0xd8] sm:$0xff]
    %v142 = vld [vmem:[#allocation2 + $0xe0] sm:$0xff]
    %v143 = vld [vmem:[#allocation2 + $0xe8] sm:$0xff]
    %v144 = vld [vmem:[#allocation2 + $0xf0] sm:$0xff]
    %v145 = vld [vmem:[#allocation2 + $0xf8] sm:$0xff]
    %v146 = vld [vmem:[#allocation2 + $0x100] sm:$0xff]
    %v147 = vld [vmem:[#allocation2 + $0x108] sm:$0xff]
    %v148 = vld [vmem:[#allocation2 + $0x110] sm:$0xff]
    %v149 = vld [vmem:[#allocation2 + $0x118] sm:$0xff]
    %v150 = vld [vmem:[#allocation2 + $0x120] sm:$0xff]
    %v151 = vld [vmem:[#allocation2 + $0x128] sm:$0xff]
    %v152 = vld [vmem:[#allocation2 + $0x130] sm:$0xff]
    %v153 = vld [vmem:[#allocation2 + $0x138] sm:$0xff]
    %v154 = vld [vmem:[#allocation2 + $0x140] sm:$0xff]
    %v155 = vld [vmem:[#allocation2 + $0x148] sm:$0xff]
    %v156 = vld [vmem:[#allocation2 + $0x150] sm:$0xff]
    %v157 = vld [vmem:[#allocation2 + $0x158] sm:$0xff]
    %v158 = vld [vmem:[#allocation2 + $0x160] sm:$0xff]
    %v159 = vld [vmem:[#allocation2 + $0x168] sm:$0xff]
    %v160 = vld [vmem:[#allocation2 + $0x170] sm:$0xff]
    %v161 = vld [vmem:[#allocation2 + $0x178] sm:$0xff]
    %v162 = vld [vmem:[#allocation2 + $0x180] sm:$0xff]
    %v163 = vld [vmem:[#allocation2 + $0x188] sm:$0xff]
    %v164 = vld [vmem:[#allocation2 + $0x190] sm:$0xff]
    %v165 = vld [vmem:[#allocation2 + $0x198] sm:$0xff]
    %v166 = vld [vmem:[#allocation2 + $0x1a0] sm:$0xff]
    %v167 = vld [vmem:[#allocation2 + $0x1a8] sm:$0xff]
    %v168 = vld [vmem:[#allocation2 + $0x1b0] sm:$0xff]
    %v169 = vld [vmem:[#allocation2 + $0x1b8] sm:$0xff]
    %v170 = vld [vmem:[#allocation2 + $0x1c0] sm:$0xff]
    %v171 = vld [vmem:[#allocation2 + $0x1c8] sm:$0xff]
    %v172 = vld [vmem:[#allocation2 + $0x1d0] sm:$0xff]
    %v173 = vld [vmem:[#allocation2 + $0x1d8] sm:$0xff]
    %v174 = vld [vmem:[#allocation2 + $0x1e0] sm:$0xff]
    %v175 = vpack.c.bf16 %v114, %v114
    %v176 = vpack.c.bf16 %v115, %v115
    %v177 = vpack.c.bf16 %v116, %v116
    %v178 = vpack.c.bf16 %v117, %v117
    %v179 = vpack.c.bf16 %v118, %v118
    %v180 = vpack.c.bf16 %v119, %v119
    %v181 = vpack.c.bf16 %v120, %v120
    %v182 = vpack.c.bf16 %v121, %v121
    %v183 = vpack.c.bf16 %v122, %v122
    %v184 = vpack.c.bf16 %v123, %v123
    %v185 = vpack.c.bf16 %v124, %v124
    %v186 = vpack.c.bf16 %v125, %v125
    %v187 = vpack.c.bf16 %v126, %v126
    %v188 = vpack.c.bf16 %v127, %v127
    %v189 = vpack.c.bf16 %v128, %v128
    %v190 = vpack.c.bf16 %v129, %v129
    %v191 = vpack.c.bf16 %v130, %v130
    %v192 = vpack.c.bf16 %v131, %v131
    %v193 = vpack.c.bf16 %v132, %v132
    %v194 = vpack.c.bf16 %v133, %v133
    %v195 = vpack.c.bf16 %v134, %v134
    %v196 = vpack.c.bf16 %v135, %v135
    %v197 = vpack.c.bf16 %v136, %v136
    %v198 = vpack.c.bf16 %v137, %v137
    %v199 = vpack.c.bf16 %v138, %v138
    %v200 = vpack.c.bf16 %v139, %v139
    %v201 = vpack.c.bf16 %v140, %v140
    %v202 = vpack.c.bf16 %v141, %v141
    %v203 = vpack.c.bf16 %v142, %v142
    %v204 = vpack.c.bf16 %v143, %v143
    %v205 = vpack.c.bf16 %v144, %v144
    %v206 = vpack.c.bf16 %v145, %v145
    %v207 = vpack.c.bf16 %v146, %v146
    %v208 = vpack.c.bf16 %v147, %v147
    %v209 = vpack.c.bf16 %v148, %v148
    %v210 = vpack.c.bf16 %v149, %v149
    %v211 = vpack.c.bf16 %v150, %v150
    %v212 = vpack.c.bf16 %v151, %v151
    %v213 = vpack.c.bf16 %v152, %v152
    %v214 = vpack.c.bf16 %v153, %v153
    %v215 = vpack.c.bf16 %v154, %v154
    %v216 = vpack.c.bf16 %v155, %v155
    %v217 = vpack.c.bf16 %v156, %v156
    %v218 = vpack.c.bf16 %v157, %v157
    %v219 = vpack.c.bf16 %v158, %v158
    %v220 = vpack.c.bf16 %v159, %v159
    %v221 = vpack.c.bf16 %v160, %v160
    %v222 = vpack.c.bf16 %v161, %v161
    %v223 = vpack.c.bf16 %v162, %v162
    %v224 = vpack.c.bf16 %v163, %v163
    %v225 = vpack.c.bf16 %v164, %v164
    %v226 = vpack.c.bf16 %v165, %v165
    %v227 = vpack.c.bf16 %v166, %v166
    %v228 = vpack.c.bf16 %v167, %v167
    %v229 = vpack.c.bf16 %v168, %v168
    %v230 = vpack.c.bf16 %v169, %v169
    %v231 = vpack.c.bf16 %v170, %v170
    %v232 = vpack.c.bf16 %v171, %v171
    %v233 = vpack.c.bf16 %v172, %v172
    %v234 = vpack.c.bf16 %v173, %v173
    %v235 = vpack.c.bf16 %v174, %v174
    %v236 = vld [vmem:[#allocation4] sm:$0xf]
    %v237 = vld [vmem:[#allocation4 + $0x4] sm:$0xf]
    %v238 = vld [vmem:[#allocation4 + $0x8] sm:$0xf]
    %v239 = vld [vmem:[#allocation4 + $0xc] sm:$0xf]
    %v240 = vld [vmem:[#allocation4 + $0x10] sm:$0xf]
    %v241 = vld [vmem:[#allocation4 + $0x14] sm:$0xf]
    %v242 = vld [vmem:[#allocation4 + $0x18] sm:$0xf]
    %v243 = vld [vmem:[#allocation4 + $0x1c] sm:$0xf]
    %v244 = vld [vmem:[#allocation4 + $0x20] sm:$0xf]
    %v245 = vld [vmem:[#allocation4 + $0x24] sm:$0xf]
    %v246 = vld [vmem:[#allocation4 + $0x28] sm:$0xf]
    %v247 = vld [vmem:[#allocation4 + $0x2c] sm:$0xf]
    %v248 = vld [vmem:[#allocation4 + $0x30] sm:$0xf]
    %v249 = vld [vmem:[#allocation4 + $0x34] sm:$0xf]
    %v250 = vld [vmem:[#allocation4 + $0x38] sm:$0xf]
    %v251 = vld [vmem:[#allocation4 + $0x3c] sm:$0xf]
    %v252 = vld [vmem:[#allocation4 + $0x40] sm:$0xf]
    %v253 = vld [vmem:[#allocation4 + $0x44] sm:$0xf]
    %v254 = vld [vmem:[#allocation4 + $0x48] sm:$0xf]
    %v255 = vld [vmem:[#allocation4 + $0x4c] sm:$0xf]
    %v256 = vld [vmem:[#allocation4 + $0x50] sm:$0xf]
    %v257 = vld [vmem:[#allocation4 + $0x54] sm:$0xf]
    %v258 = vld [vmem:[#allocation4 + $0x58] sm:$0xf]
    %v259 = vld [vmem:[#allocation4 + $0x5c] sm:$0xf]
    %v260 = vld [vmem:[#allocation4 + $0x60] sm:$0xf]
    %v261 = vld [vmem:[#allocation4 + $0x64] sm:$0xf]
    %v262 = vld [vmem:[#allocation4 + $0x68] sm:$0xf]
    %v263 = vld [vmem:[#allocation4 + $0x6c] sm:$0xf]
    %v264 = vld [vmem:[#allocation4 + $0x70] sm:$0xf]
    %v265 = vld [vmem:[#allocation4 + $0x74] sm:$0xf]
    %v266 = vld [vmem:[#allocation4 + $0x78] sm:$0xf]
    %v267 = vld [vmem:[#allocation4 + $0x7c] sm:$0xf]
    %v268 = vld [vmem:[#allocation4 + $0x80] sm:$0xf]
    %v269 = vld [vmem:[#allocation4 + $0x84] sm:$0xf]
    %v270 = vld [vmem:[#allocation4 + $0x88] sm:$0xf]
    %v271 = vld [vmem:[#allocation4 + $0x8c] sm:$0xf]
    %v272 = vld [vmem:[#allocation4 + $0x90] sm:$0xf]
    %v273 = vld [vmem:[#allocation4 + $0x94] sm:$0xf]
    %v274 = vld [vmem:[#allocation4 + $0x98] sm:$0xf]
    %v275 = vld [vmem:[#allocation4 + $0x9c] sm:$0xf]
    %v276 = vld [vmem:[#allocation4 + $0xa0] sm:$0xf]
    %v277 = vld [vmem:[#allocation4 + $0xa4] sm:$0xf]
    %v278 = vld [vmem:[#allocation4 + $0xa8] sm:$0xf]
    %v279 = vld [vmem:[#allocation4 + $0xac] sm:$0xf]
    %v280 = vld [vmem:[#allocation4 + $0xb0] sm:$0xf]
    %v281 = vld [vmem:[#allocation4 + $0xb4] sm:$0xf]
    %v282 = vld [vmem:[#allocation4 + $0xb8] sm:$0xf]
    %v283 = vld [vmem:[#allocation4 + $0xbc] sm:$0xf]
    %v284 = vld [vmem:[#allocation4 + $0xc0] sm:$0xf]
    %v285 = vld [vmem:[#allocation4 + $0xc4] sm:$0xf]
    %v286 = vld [vmem:[#allocation4 + $0xc8] sm:$0xf]
    %v287 = vld [vmem:[#allocation4 + $0xcc] sm:$0xf]
    %v288 = vld [vmem:[#allocation4 + $0xd0] sm:$0xf]
    %v289 = vld [vmem:[#allocation4 + $0xd4] sm:$0xf]
    %v290 = vld [vmem:[#allocation4 + $0xd8] sm:$0xf]
    %v291 = vld [vmem:[#allocation4 + $0xdc] sm:$0xf]
    %v292 = vld [vmem:[#allocation4 + $0xe0] sm:$0xf]
    %v293 = vld [vmem:[#allocation4 + $0xe4] sm:$0xf]
    %v294 = vld [vmem:[#allocation4 + $0xe8] sm:$0xf]
    %v295 = vld [vmem:[#allocation4 + $0xec] sm:$0xf]
    %v296 = vld [vmem:[#allocation4 + $0xf0] sm:$0xf]
    %v297 = vld [vmem:[#allocation4 + $0xf4] sm:$0xf]
    %v298 = vld [vmem:[#allocation4 + $0xf8] sm:$0xf]
    %v299 = vld [vmem:[#allocation4 + $0xfc] sm:$0xf]
    %v300 = vld [vmem:[#allocation4 + $0x100] sm:$0xf]
    %v301 = vld [vmem:[#allocation4 + $0x104] sm:$0xf]
    %v302 = vld [vmem:[#allocation4 + $0x108] sm:$0xf]
    %v303 = vld [vmem:[#allocation4 + $0x10c] sm:$0xf]
    %v304 = vld [vmem:[#allocation4 + $0x110] sm:$0xf]
    %v305 = vld [vmem:[#allocation4 + $0x114] sm:$0xf]
    %v306 = vld [vmem:[#allocation4 + $0x118] sm:$0xf]
    %v307 = vld [vmem:[#allocation4 + $0x11c] sm:$0xf]
    %v308 = vld [vmem:[#allocation4 + $0x120] sm:$0xf]
    %v309 = vld [vmem:[#allocation4 + $0x124] sm:$0xf]
    %v310 = vld [vmem:[#allocation4 + $0x128] sm:$0xf]
    %v311 = vld [vmem:[#allocation4 + $0x12c] sm:$0xf]
    %v312 = vld [vmem:[#allocation4 + $0x130] sm:$0xf]
    %v313 = vld [vmem:[#allocation4 + $0x134] sm:$0xf]
    %v314 = vld [vmem:[#allocation4 + $0x138] sm:$0xf]
    %v315 = vld [vmem:[#allocation4 + $0x13c] sm:$0xf]
    %v316 = vld [vmem:[#allocation4 + $0x140] sm:$0xf]
    %v317 = vld [vmem:[#allocation4 + $0x144] sm:$0xf]
    %v318 = vld [vmem:[#allocation4 + $0x148] sm:$0xf]
    %v319 = vld [vmem:[#allocation4 + $0x14c] sm:$0xf]
    %v320 = vld [vmem:[#allocation4 + $0x150] sm:$0xf]
    %v321 = vld [vmem:[#allocation4 + $0x154] sm:$0xf]
    %v322 = vld [vmem:[#allocation4 + $0x158] sm:$0xf]
    %v323 = vld [vmem:[#allocation4 + $0x15c] sm:$0xf]
    %v324 = vld [vmem:[#allocation4 + $0x160] sm:$0xf]
    %v325 = vld [vmem:[#allocation4 + $0x164] sm:$0xf]
    %v326 = vld [vmem:[#allocation4 + $0x168] sm:$0xf]
    %v327 = vld [vmem:[#allocation4 + $0x16c] sm:$0xf]
    %v328 = vld [vmem:[#allocation4 + $0x170] sm:$0xf]
    %v329 = vld [vmem:[#allocation4 + $0x174] sm:$0xf]
    %v330 = vld [vmem:[#allocation4 + $0x178] sm:$0xf]
    %v331 = vld [vmem:[#allocation4 + $0x17c] sm:$0xf]
    %v332 = vld [vmem:[#allocation4 + $0x180] sm:$0xf]
    %v333 = vld [vmem:[#allocation4 + $0x184] sm:$0xf]
    %v334 = vld [vmem:[#allocation4 + $0x188] sm:$0xf]
    %v335 = vld [vmem:[#allocation4 + $0x18c] sm:$0xf]
    %v336 = vld [vmem:[#allocation4 + $0x190] sm:$0xf]
    %v337 = vld [vmem:[#allocation4 + $0x194] sm:$0xf]
    %v338 = vld [vmem:[#allocation4 + $0x198] sm:$0xf]
    %v339 = vld [vmem:[#allocation4 + $0x19c] sm:$0xf]
    %v340 = vld [vmem:[#allocation4 + $0x1a0] sm:$0xf]
    %v341 = vld [vmem:[#allocation4 + $0x1a4] sm:$0xf]
    %v342 = vld [vmem:[#allocation4 + $0x1a8] sm:$0xf]
    %v343 = vld [vmem:[#allocation4 + $0x1ac] sm:$0xf]
    %v344 = vld [vmem:[#allocation4 + $0x1b0] sm:$0xf]
    %v345 = vld [vmem:[#allocation4 + $0x1b4] sm:$0xf]
    %v346 = vld [vmem:[#allocation4 + $0x1b8] sm:$0xf]
    %v347 = vld [vmem:[#allocation4 + $0x1bc] sm:$0xf]
    %v348 = vld [vmem:[#allocation4 + $0x1c0] sm:$0xf]
    %v349 = vld [vmem:[#allocation4 + $0x1c4] sm:$0xf]
    %v350 = vld [vmem:[#allocation4 + $0x1c8] sm:$0xf]
    %v351 = vld [vmem:[#allocation4 + $0x1cc] sm:$0xf]
    %v352 = vld [vmem:[#allocation4 + $0x1d0] sm:$0xf]
    %v353 = vld [vmem:[#allocation4 + $0x1d4] sm:$0xf]
    %v354 = vld [vmem:[#allocation4 + $0x1d8] sm:$0xf]
    %v355 = vld [vmem:[#allocation4 + $0x1dc] sm:$0xf]
    %v356 = vld [vmem:[#allocation4 + $0x1e0] sm:$0xf]
    %v357 = vld [vmem:[#allocation4 + $0x1e4] sm:$0xf]
    %v358 = vld [vmem:[#allocation4 + $0x1e8] sm:$0xf]
    %v359 = vld [vmem:[#allocation4 + $0x1ec] sm:$0xf]
    %v360 = vld [vmem:[#allocation4 + $0x1f0] sm:$0xf]
    %v361 = vld [vmem:[#allocation4 + $0x1f4] sm:$0xf]
    %v362 = vld [vmem:[#allocation4 + $0x1f8] sm:$0xf]
    %v363 = vld [vmem:[#allocation4 + $0x1fc] sm:$0xf]
    %v364 = vld [vmem:[#allocation4 + $0x200] sm:$0xf]
    %v365 = vld [vmem:[#allocation4 + $0x204] sm:$0xf]
    %v366 = vld [vmem:[#allocation4 + $0x208] sm:$0xf]
    %v367 = vld [vmem:[#allocation4 + $0x20c] sm:$0xf]
    %v368 = vld [vmem:[#allocation4 + $0x210] sm:$0xf]
    %v369 = vld [vmem:[#allocation4 + $0x214] sm:$0xf]
    %v370 = vld [vmem:[#allocation4 + $0x218] sm:$0xf]
    %v371 = vld [vmem:[#allocation4 + $0x21c] sm:$0xf]
    %v372 = vld [vmem:[#allocation4 + $0x220] sm:$0xf]
    %v373 = vld [vmem:[#allocation4 + $0x224] sm:$0xf]
    %v374 = vld [vmem:[#allocation4 + $0x228] sm:$0xf]
    %v375 = vld [vmem:[#allocation4 + $0x22c] sm:$0xf]
    %v376 = vld [vmem:[#allocation4 + $0x230] sm:$0xf]
    %v377 = vld [vmem:[#allocation4 + $0x234] sm:$0xf]
    %v378 = vld [vmem:[#allocation4 + $0x238] sm:$0xf]
    %v379 = vld [vmem:[#allocation4 + $0x23c] sm:$0xf]
    %v380 = vld [vmem:[#allocation4 + $0x240] sm:$0xf]
    %v381 = vld [vmem:[#allocation4 + $0x244] sm:$0xf]
    %v382 = vld [vmem:[#allocation4 + $0x248] sm:$0xf]
    %v383 = vld [vmem:[#allocation4 + $0x24c] sm:$0xf]
    %v384 = vld [vmem:[#allocation4 + $0x250] sm:$0xf]
    %v385 = vld [vmem:[#allocation4 + $0x254] sm:$0xf]
    %v386 = vld [vmem:[#allocation4 + $0x258] sm:$0xf]
    %v387 = vld [vmem:[#allocation4 + $0x25c] sm:$0xf]
    %v388 = vld [vmem:[#allocation4 + $0x260] sm:$0xf]
    %v389 = vld [vmem:[#allocation4 + $0x264] sm:$0xf]
    %v390 = vld [vmem:[#allocation4 + $0x268] sm:$0xf]
    %v391 = vld [vmem:[#allocation4 + $0x26c] sm:$0xf]
    %v392 = vld [vmem:[#allocation4 + $0x270] sm:$0xf]
    %v393 = vld [vmem:[#allocation4 + $0x274] sm:$0xf]
    %v394 = vld [vmem:[#allocation4 + $0x278] sm:$0xf]
    %v395 = vld [vmem:[#allocation4 + $0x27c] sm:$0xf]
    %v396 = vld [vmem:[#allocation4 + $0x280] sm:$0xf]
    %v397 = vld [vmem:[#allocation4 + $0x284] sm:$0xf]
    %v398 = vld [vmem:[#allocation4 + $0x288] sm:$0xf]
    %v399 = vld [vmem:[#allocation4 + $0x28c] sm:$0xf]
    %v400 = vld [vmem:[#allocation4 + $0x290] sm:$0xf]
    %v401 = vld [vmem:[#allocation4 + $0x294] sm:$0xf]
    %v402 = vld [vmem:[#allocation4 + $0x298] sm:$0xf]
    %v403 = vld [vmem:[#allocation4 + $0x29c] sm:$0xf]
    %v404 = vld [vmem:[#allocation4 + $0x2a0] sm:$0xf]
    %v405 = vld [vmem:[#allocation4 + $0x2a4] sm:$0xf]
    %v406 = vld [vmem:[#allocation4 + $0x2a8] sm:$0xf]
    %v407 = vld [vmem:[#allocation4 + $0x2ac] sm:$0xf]
    %v408 = vld [vmem:[#allocation4 + $0x2b0] sm:$0xf]
    %v409 = vld [vmem:[#allocation4 + $0x2b4] sm:$0xf]
    %v410 = vld [vmem:[#allocation4 + $0x2b8] sm:$0xf]
    %v411 = vld [vmem:[#allocation4 + $0x2bc] sm:$0xf]
    %v412 = vld [vmem:[#allocation4 + $0x2c0] sm:$0xf]
    %v413 = vld [vmem:[#allocation4 + $0x2c4] sm:$0xf]
    %v414 = vld [vmem:[#allocation4 + $0x2c8] sm:$0xf]
    %v415 = vld [vmem:[#allocation4 + $0x2cc] sm:$0xf]
    %v416 = vld [vmem:[#allocation4 + $0x2d0] sm:$0xf]
    %v417 = vld [vmem:[#allocation4 + $0x2d4] sm:$0xf]
    %v418 = vld [vmem:[#allocation4 + $0x2d8] sm:$0xf]
    %v419 = vld [vmem:[#allocation4 + $0x2dc] sm:$0xf]
    %v420 = vld [vmem:[#allocation4 + $0x2e0] sm:$0xf]
    %v421 = vld [vmem:[#allocation4 + $0x2e4] sm:$0xf]
    %v422 = vld [vmem:[#allocation4 + $0x2e8] sm:$0xf]
    %v423 = vld [vmem:[#allocation4 + $0x2ec] sm:$0xf]
    %v424 = vld [vmem:[#allocation4 + $0x2f0] sm:$0xf]
    %v425 = vld [vmem:[#allocation4 + $0x2f4] sm:$0xf]
    %v426 = vld [vmem:[#allocation4 + $0x2f8] sm:$0xf]
    %v427 = vld [vmem:[#allocation4 + $0x2fc] sm:$0xf]
    %v428 = vld [vmem:[#allocation4 + $0x300] sm:$0xf]
    %v429 = vld [vmem:[#allocation4 + $0x304] sm:$0xf]
    %v430 = vld [vmem:[#allocation4 + $0x308] sm:$0xf]
    %v431 = vld [vmem:[#allocation4 + $0x30c] sm:$0xf]
    %v432 = vld [vmem:[#allocation4 + $0x310] sm:$0xf]
    %v433 = vld [vmem:[#allocation4 + $0x314] sm:$0xf]
    %v434 = vld [vmem:[#allocation4 + $0x318] sm:$0xf]
    %v435 = vld [vmem:[#allocation4 + $0x31c] sm:$0xf]
    %v436 = vld [vmem:[#allocation4 + $0x320] sm:$0xf]
    %v437 = vld [vmem:[#allocation4 + $0x324] sm:$0xf]
    %v438 = vld [vmem:[#allocation4 + $0x328] sm:$0xf]
    %v439 = vld [vmem:[#allocation4 + $0x32c] sm:$0xf]
    %v440 = vld [vmem:[#allocation4 + $0x330] sm:$0xf]
    %v441 = vld [vmem:[#allocation4 + $0x334] sm:$0xf]
    %v442 = vld [vmem:[#allocation4 + $0x338] sm:$0xf]
    %v443 = vld [vmem:[#allocation4 + $0x33c] sm:$0xf]
    %v444 = vld [vmem:[#allocation4 + $0x340] sm:$0xf]
    %v445 = vld [vmem:[#allocation4 + $0x344] sm:$0xf]
    %v446 = vld [vmem:[#allocation4 + $0x348] sm:$0xf]
    %v447 = vld [vmem:[#allocation4 + $0x34c] sm:$0xf]
    %v448 = vld [vmem:[#allocation4 + $0x350] sm:$0xf]
    %v449 = vld [vmem:[#allocation4 + $0x354] sm:$0xf]
    %v450 = vld [vmem:[#allocation4 + $0x358] sm:$0xf]
    %v451 = vld [vmem:[#allocation4 + $0x35c] sm:$0xf]
    %v452 = vld [vmem:[#allocation4 + $0x360] sm:$0xf]
    %v453 = vld [vmem:[#allocation4 + $0x364] sm:$0xf]
    %v454 = vld [vmem:[#allocation4 + $0x368] sm:$0xf]
    %v455 = vld [vmem:[#allocation4 + $0x36c] sm:$0xf]
    %v456 = vld [vmem:[#allocation4 + $0x370] sm:$0xf]
    %v457 = vld [vmem:[#allocation4 + $0x374] sm:$0xf]
    %v458 = vld [vmem:[#allocation4 + $0x378] sm:$0xf]
    %v459 = vld [vmem:[#allocation4 + $0x37c] sm:$0xf]
    %v460 = vld [vmem:[#allocation4 + $0x380] sm:$0xf]
    %v461 = vld [vmem:[#allocation4 + $0x384] sm:$0xf]
    %v462 = vld [vmem:[#allocation4 + $0x388] sm:$0xf]
    %v463 = vld [vmem:[#allocation4 + $0x38c] sm:$0xf]
    %v464 = vld [vmem:[#allocation4 + $0x390] sm:$0xf]
    %v465 = vld [vmem:[#allocation4 + $0x394] sm:$0xf]
    %v466 = vld [vmem:[#allocation4 + $0x398] sm:$0xf]
    %v467 = vld [vmem:[#allocation4 + $0x39c] sm:$0xf]
    %v468 = vld [vmem:[#allocation4 + $0x3a0] sm:$0xf]
    %v469 = vld [vmem:[#allocation4 + $0x3a4] sm:$0xf]
    %v470 = vld [vmem:[#allocation4 + $0x3a8] sm:$0xf]
    %v471 = vld [vmem:[#allocation4 + $0x3ac] sm:$0xf]
    %v472 = vld [vmem:[#allocation4 + $0x3b0] sm:$0xf]
    %v473 = vld [vmem:[#allocation4 + $0x3b4] sm:$0xf]
    %v474 = vld [vmem:[#allocation4 + $0x3b8] sm:$0xf]
    %v475 = vld [vmem:[#allocation4 + $0x3bc] sm:$0xf]
    %v476 = vld [vmem:[#allocation4 + $0x3c0] sm:$0xf]
    %v477 = vld [vmem:[#allocation4 + $0x3c4] sm:$0xf]
    %v478 = vld [vmem:[#allocation4 + $0x3c8] sm:$0xf]
    %v479 = vld [vmem:[#allocation4 + $0x3cc] sm:$0xf]
    %v480 = vld [vmem:[#allocation4 + $0x3d0] sm:$0xf]
    %v481 = vld [vmem:[#allocation4 + $0x3d4] sm:$0xf]
    %v482 = vld [vmem:[#allocation4 + $0x3d8] sm:$0xf]
    %v483 = vld [vmem:[#allocation4 + $0x3dc] sm:$0xf]
    %v484 = vld [vmem:[#allocation4 + $0x3e0] sm:$0xf]
    %v485 = vld [vmem:[#allocation4 + $0x3e4] sm:$0xf]
    %v486 = vld [vmem:[#allocation4 + $0x3e8] sm:$0xf]
    %v487 = vld [vmem:[#allocation4 + $0x3ec] sm:$0xf]
    %v488 = vld [vmem:[#allocation4 + $0x3f0] sm:$0xf]
    %v489 = vld [vmem:[#allocation4 + $0x3f4] sm:$0xf]
    %v490 = vld [vmem:[#allocation4 + $0x3f8] sm:$0xf]
    %v491 = vld [vmem:[#allocation4 + $0x3fc] sm:$0xf]
    %v492 = vld [vmem:[#allocation4 + $0x400] sm:$0xf]
    %v493 = vld [vmem:[#allocation4 + $0x404] sm:$0xf]
    %v494 = vld [vmem:[#allocation4 + $0x408] sm:$0xf]
    %v495 = vld [vmem:[#allocation4 + $0x40c] sm:$0xf]
    %v496 = vld [vmem:[#allocation4 + $0x410] sm:$0xf]
    %v497 = vld [vmem:[#allocation4 + $0x414] sm:$0xf]
    %v498 = vld [vmem:[#allocation4 + $0x418] sm:$0xf]
    %v499 = vld [vmem:[#allocation4 + $0x41c] sm:$0xf]
    %v500 = vld [vmem:[#allocation4 + $0x420] sm:$0xf]
    %v501 = vld [vmem:[#allocation4 + $0x424] sm:$0xf]
    %v502 = vld [vmem:[#allocation4 + $0x428] sm:$0xf]
    %v503 = vld [vmem:[#allocation4 + $0x42c] sm:$0xf]
    %v504 = vld [vmem:[#allocation4 + $0x430] sm:$0xf]
    %v505 = vld [vmem:[#allocation4 + $0x434] sm:$0xf]
    %v506 = vld [vmem:[#allocation4 + $0x438] sm:$0xf]
    %v507 = vld [vmem:[#allocation4 + $0x43c] sm:$0xf]
    %v508 = vld [vmem:[#allocation4 + $0x440] sm:$0xf]
    %v509 = vld [vmem:[#allocation4 + $0x444] sm:$0xf]
    %v510 = vld [vmem:[#allocation4 + $0x448] sm:$0xf]
    %v511 = vld [vmem:[#allocation4 + $0x44c] sm:$0xf]
    %v512 = vld [vmem:[#allocation4 + $0x450] sm:$0xf]
    %v513 = vld [vmem:[#allocation4 + $0x454] sm:$0xf]
    %v514 = vld [vmem:[#allocation4 + $0x458] sm:$0xf]
    %v515 = vld [vmem:[#allocation4 + $0x45c] sm:$0xf]
    %v516 = vld [vmem:[#allocation4 + $0x460] sm:$0xf]
    %v517 = vld [vmem:[#allocation4 + $0x464] sm:$0xf]
    %v518 = vld [vmem:[#allocation4 + $0x468] sm:$0xf]
    %v519 = vld [vmem:[#allocation4 + $0x46c] sm:$0xf]
    %v520 = vld [vmem:[#allocation4 + $0x470] sm:$0xf]
    %v521 = vld [vmem:[#allocation4 + $0x474] sm:$0xf]
    %v522 = vld [vmem:[#allocation4 + $0x478] sm:$0xf]
    %v523 = vld [vmem:[#allocation4 + $0x47c] sm:$0xf]
    %v524 = vld [vmem:[#allocation4 + $0x480] sm:$0xf]
    %v525 = vld [vmem:[#allocation4 + $0x484] sm:$0xf]
    %v526 = vld [vmem:[#allocation4 + $0x488] sm:$0xf]
    %v527 = vld [vmem:[#allocation4 + $0x48c] sm:$0xf]
    %v528 = vld [vmem:[#allocation4 + $0x490] sm:$0xf]
    %v529 = vld [vmem:[#allocation4 + $0x494] sm:$0xf]
    %v530 = vld [vmem:[#allocation4 + $0x498] sm:$0xf]
    %v531 = vld [vmem:[#allocation4 + $0x49c] sm:$0xf]
    %v532 = vld [vmem:[#allocation4 + $0x4a0] sm:$0xf]
    %v533 = vld [vmem:[#allocation4 + $0x4a4] sm:$0xf]
    %v534 = vld [vmem:[#allocation4 + $0x4a8] sm:$0xf]
    %v535 = vld [vmem:[#allocation4 + $0x4ac] sm:$0xf]
    %v536 = vld [vmem:[#allocation4 + $0x4b0] sm:$0xf]
    %v537 = vld [vmem:[#allocation4 + $0x4b4] sm:$0xf]
    %v538 = vld [vmem:[#allocation4 + $0x4b8] sm:$0xf]
    %v539 = vld [vmem:[#allocation4 + $0x4bc] sm:$0xf]
    %v540 = vld [vmem:[#allocation4 + $0x4c0] sm:$0xf]
    %v541 = vld [vmem:[#allocation4 + $0x4c4] sm:$0xf]
    %v542 = vld [vmem:[#allocation4 + $0x4c8] sm:$0xf]
    %v543 = vld [vmem:[#allocation4 + $0x4cc] sm:$0xf]
    %v544 = vld [vmem:[#allocation4 + $0x4d0] sm:$0xf]
    %v545 = vld [vmem:[#allocation4 + $0x4d4] sm:$0xf]
    %v546 = vld [vmem:[#allocation4 + $0x4d8] sm:$0xf]
    %v547 = vld [vmem:[#allocation4 + $0x4dc] sm:$0xf]
    %v548 = vld [vmem:[#allocation4 + $0x4e0] sm:$0xf]
    %v549 = vld [vmem:[#allocation4 + $0x4e4] sm:$0xf]
    %v550 = vld [vmem:[#allocation4 + $0x4e8] sm:$0xf]
    %v551 = vld [vmem:[#allocation4 + $0x4ec] sm:$0xf]
    %v552 = vld [vmem:[#allocation4 + $0x4f0] sm:$0xf]
    %v553 = vld [vmem:[#allocation4 + $0x4f4] sm:$0xf]
    %v554 = vld [vmem:[#allocation4 + $0x4f8] sm:$0xf]
    %v555 = vld [vmem:[#allocation4 + $0x4fc] sm:$0xf]
    %v556 = vld [vmem:[#allocation4 + $0x500] sm:$0xf]
    %v557 = vld [vmem:[#allocation4 + $0x504] sm:$0xf]
    %v558 = vld [vmem:[#allocation4 + $0x508] sm:$0xf]
    %v559 = vld [vmem:[#allocation4 + $0x50c] sm:$0xf]
    %v560 = vld [vmem:[#allocation4 + $0x510] sm:$0xf]
    %v561 = vld [vmem:[#allocation4 + $0x514] sm:$0xf]
    %v562 = vld [vmem:[#allocation4 + $0x518] sm:$0xf]
    %v563 = vld [vmem:[#allocation4 + $0x51c] sm:$0xf]
    %v564 = vld [vmem:[#allocation4 + $0x520] sm:$0xf]
    %v565 = vld [vmem:[#allocation4 + $0x524] sm:$0xf]
    %v566 = vld [vmem:[#allocation4 + $0x528] sm:$0xf]
    %v567 = vld [vmem:[#allocation4 + $0x52c] sm:$0xf]
    %v568 = vld [vmem:[#allocation4 + $0x530] sm:$0xf]
    %v569 = vld [vmem:[#allocation4 + $0x534] sm:$0xf]
    %v570 = vld [vmem:[#allocation4 + $0x538] sm:$0xf]
    %v571 = vld [vmem:[#allocation4 + $0x53c] sm:$0xf]
    %v572 = vld [vmem:[#allocation4 + $0x540] sm:$0xf]
    %v573 = vld [vmem:[#allocation4 + $0x544] sm:$0xf]
    %v574 = vld [vmem:[#allocation4 + $0x548] sm:$0xf]
    %v575 = vld [vmem:[#allocation4 + $0x54c] sm:$0xf]
    %v576 = vld [vmem:[#allocation4 + $0x550] sm:$0xf]
    %v577 = vld [vmem:[#allocation4 + $0x554] sm:$0xf]
    %v578 = vld [vmem:[#allocation4 + $0x558] sm:$0xf]
    %v579 = vld [vmem:[#allocation4 + $0x55c] sm:$0xf]
    %v580 = vld [vmem:[#allocation4 + $0x560] sm:$0xf]
    %v581 = vld [vmem:[#allocation4 + $0x564] sm:$0xf]
    %v582 = vld [vmem:[#allocation4 + $0x568] sm:$0xf]
    %v583 = vld [vmem:[#allocation4 + $0x56c] sm:$0xf]
    %v584 = vld [vmem:[#allocation4 + $0x570] sm:$0xf]
    %v585 = vld [vmem:[#allocation4 + $0x574] sm:$0xf]
    %v586 = vld [vmem:[#allocation4 + $0x578] sm:$0xf]
    %v587 = vld [vmem:[#allocation4 + $0x57c] sm:$0xf]
    %v588 = vld [vmem:[#allocation4 + $0x580] sm:$0xf]
    %v589 = vld [vmem:[#allocation4 + $0x584] sm:$0xf]
    %v590 = vld [vmem:[#allocation4 + $0x588] sm:$0xf]
    %v591 = vld [vmem:[#allocation4 + $0x58c] sm:$0xf]
    %v592 = vld [vmem:[#allocation4 + $0x590] sm:$0xf]
    %v593 = vld [vmem:[#allocation4 + $0x594] sm:$0xf]
    %v594 = vld [vmem:[#allocation4 + $0x598] sm:$0xf]
    %v595 = vld [vmem:[#allocation4 + $0x59c] sm:$0xf]
    %v596 = vld [vmem:[#allocation4 + $0x5a0] sm:$0xf]
    %v597 = vld [vmem:[#allocation4 + $0x5a4] sm:$0xf]
    %v598 = vld [vmem:[#allocation4 + $0x5a8] sm:$0xf]
    %v599 = vld [vmem:[#allocation4 + $0x5ac] sm:$0xf]
    %v600 = vld [vmem:[#allocation4 + $0x5b0] sm:$0xf]
    %v601 = vld [vmem:[#allocation4 + $0x5b4] sm:$0xf]
    %v602 = vld [vmem:[#allocation4 + $0x5b8] sm:$0xf]
    %v603 = vld [vmem:[#allocation4 + $0x5bc] sm:$0xf]
    %v604 = vld [vmem:[#allocation4 + $0x5c0] sm:$0xf]
    %v605 = vld [vmem:[#allocation4 + $0x5c4] sm:$0xf]
    %v606 = vld [vmem:[#allocation4 + $0x5c8] sm:$0xf]
    %v607 = vld [vmem:[#allocation4 + $0x5cc] sm:$0xf]
    %v608 = vld [vmem:[#allocation4 + $0x5d0] sm:$0xf]
    %v609 = vld [vmem:[#allocation4 + $0x5d4] sm:$0xf]
    %v610 = vld [vmem:[#allocation4 + $0x5d8] sm:$0xf]
    %v611 = vld [vmem:[#allocation4 + $0x5dc] sm:$0xf]
    %v612 = vld [vmem:[#allocation4 + $0x5e0] sm:$0xf]
    %v613 = vld [vmem:[#allocation4 + $0x5e4] sm:$0xf]
    %v614 = vld [vmem:[#allocation4 + $0x5e8] sm:$0xf]
    %v615 = vld [vmem:[#allocation4 + $0x5ec] sm:$0xf]
    %v616 = vld [vmem:[#allocation4 + $0x5f0] sm:$0xf]
    %v617 = vld [vmem:[#allocation4 + $0x5f4] sm:$0xf]
    %v618 = vld [vmem:[#allocation4 + $0x5f8] sm:$0xf]
    %v619 = vld [vmem:[#allocation4 + $0x5fc] sm:$0xf]
    %v620 = vld [vmem:[#allocation4 + $0x600] sm:$0xf]
    %v621 = vld [vmem:[#allocation4 + $0x604] sm:$0xf]
    %v622 = vld [vmem:[#allocation4 + $0x608] sm:$0xf]
    %v623 = vld [vmem:[#allocation4 + $0x60c] sm:$0xf]
    %v624 = vld [vmem:[#allocation4 + $0x610] sm:$0xf]
    %v625 = vld [vmem:[#allocation4 + $0x614] sm:$0xf]
    %v626 = vld [vmem:[#allocation4 + $0x618] sm:$0xf]
    %v627 = vld [vmem:[#allocation4 + $0x61c] sm:$0xf]
    %v628 = vld [vmem:[#allocation4 + $0x620] sm:$0xf]
    %v629 = vld [vmem:[#allocation4 + $0x624] sm:$0xf]
    %v630 = vld [vmem:[#allocation4 + $0x628] sm:$0xf]
    %v631 = vld [vmem:[#allocation4 + $0x62c] sm:$0xf]
    %v632 = vld [vmem:[#allocation4 + $0x630] sm:$0xf]
    %v633 = vld [vmem:[#allocation4 + $0x634] sm:$0xf]
    %v634 = vld [vmem:[#allocation4 + $0x638] sm:$0xf]
    %v635 = vld [vmem:[#allocation4 + $0x63c] sm:$0xf]
    %v636 = vld [vmem:[#allocation4 + $0x640] sm:$0xf]
    %v637 = vld [vmem:[#allocation4 + $0x644] sm:$0xf]
    %v638 = vld [vmem:[#allocation4 + $0x648] sm:$0xf]
    %v639 = vld [vmem:[#allocation4 + $0x64c] sm:$0xf]
    %v640 = vld [vmem:[#allocation4 + $0x650] sm:$0xf]
    %v641 = vld [vmem:[#allocation4 + $0x654] sm:$0xf]
    %v642 = vld [vmem:[#allocation4 + $0x658] sm:$0xf]
    %v643 = vld [vmem:[#allocation4 + $0x65c] sm:$0xf]
    %v644 = vld [vmem:[#allocation4 + $0x660] sm:$0xf]
    %v645 = vld [vmem:[#allocation4 + $0x664] sm:$0xf]
    %v646 = vld [vmem:[#allocation4 + $0x668] sm:$0xf]
    %v647 = vld [vmem:[#allocation4 + $0x66c] sm:$0xf]
    %v648 = vld [vmem:[#allocation4 + $0x670] sm:$0xf]
    %v649 = vld [vmem:[#allocation4 + $0x674] sm:$0xf]
    %v650 = vld [vmem:[#allocation4 + $0x678] sm:$0xf]
    %v651 = vld [vmem:[#allocation4 + $0x67c] sm:$0xf]
    %v652 = vld [vmem:[#allocation4 + $0x680] sm:$0xf]
    %v653 = vld [vmem:[#allocation4 + $0x684] sm:$0xf]
    %v654 = vld [vmem:[#allocation4 + $0x688] sm:$0xf]
    %v655 = vld [vmem:[#allocation4 + $0x68c] sm:$0xf]
    %v656 = vld [vmem:[#allocation4 + $0x690] sm:$0xf]
    %v657 = vld [vmem:[#allocation4 + $0x694] sm:$0xf]
    %v658 = vld [vmem:[#allocation4 + $0x698] sm:$0xf]
    %v659 = vld [vmem:[#allocation4 + $0x69c] sm:$0xf]
    %v660 = vld [vmem:[#allocation4 + $0x6a0] sm:$0xf]
    %v661 = vld [vmem:[#allocation4 + $0x6a4] sm:$0xf]
    %v662 = vld [vmem:[#allocation4 + $0x6a8] sm:$0xf]
    %v663 = vld [vmem:[#allocation4 + $0x6ac] sm:$0xf]
    %v664 = vld [vmem:[#allocation4 + $0x6b0] sm:$0xf]
    %v665 = vld [vmem:[#allocation4 + $0x6b4] sm:$0xf]
    %v666 = vld [vmem:[#allocation4 + $0x6b8] sm:$0xf]
    %v667 = vld [vmem:[#allocation4 + $0x6bc] sm:$0xf]
    %v668 = vld [vmem:[#allocation4 + $0x6c0] sm:$0xf]
    %v669 = vld [vmem:[#allocation4 + $0x6c4] sm:$0xf]
    %v670 = vld [vmem:[#allocation4 + $0x6c8] sm:$0xf]
    %v671 = vld [vmem:[#allocation4 + $0x6cc] sm:$0xf]
    %v672 = vld [vmem:[#allocation4 + $0x6d0] sm:$0xf]
    %v673 = vld [vmem:[#allocation4 + $0x6d4] sm:$0xf]
    %v674 = vld [vmem:[#allocation4 + $0x6d8] sm:$0xf]
    %v675 = vld [vmem:[#allocation4 + $0x6dc] sm:$0xf]
    %v676 = vld [vmem:[#allocation4 + $0x6e0] sm:$0xf]
    %v677 = vld [vmem:[#allocation4 + $0x6e4] sm:$0xf]
    %v678 = vld [vmem:[#allocation4 + $0x6e8] sm:$0xf]
    %v679 = vld [vmem:[#allocation4 + $0x6ec] sm:$0xf]
    %v680 = vld [vmem:[#allocation4 + $0x6f0] sm:$0xf]
    %v681 = vld [vmem:[#allocation4 + $0x6f4] sm:$0xf]
    %v682 = vld [vmem:[#allocation4 + $0x6f8] sm:$0xf]
    %v683 = vld [vmem:[#allocation4 + $0x6fc] sm:$0xf]
    %v684 = vld [vmem:[#allocation4 + $0x700] sm:$0xf]
    %v685 = vld [vmem:[#allocation4 + $0x704] sm:$0xf]
    %v686 = vld [vmem:[#allocation4 + $0x708] sm:$0xf]
    %v687 = vld [vmem:[#allocation4 + $0x70c] sm:$0xf]
    %v688 = vld [vmem:[#allocation4 + $0x710] sm:$0xf]
    %v689 = vld [vmem:[#allocation4 + $0x714] sm:$0xf]
    %v690 = vld [vmem:[#allocation4 + $0x718] sm:$0xf]
    %v691 = vld [vmem:[#allocation4 + $0x71c] sm:$0xf]
    %v692 = vld [vmem:[#allocation4 + $0x720] sm:$0xf]
    %v693 = vld [vmem:[#allocation4 + $0x724] sm:$0xf]
    %v694 = vld [vmem:[#allocation4 + $0x728] sm:$0xf]
    %v695 = vld [vmem:[#allocation4 + $0x72c] sm:$0xf]
    %v696 = vld [vmem:[#allocation4 + $0x730] sm:$0xf]
    %v697 = vld [vmem:[#allocation4 + $0x734] sm:$0xf]
    %v698 = vld [vmem:[#allocation4 + $0x738] sm:$0xf]
    %v699 = vld [vmem:[#allocation4 + $0x73c] sm:$0xf]
    %v700 = vld [vmem:[#allocation4 + $0x740] sm:$0xf]
    %v701 = vld [vmem:[#allocation4 + $0x744] sm:$0xf]
    %v702 = vld [vmem:[#allocation4 + $0x748] sm:$0xf]
    %v703 = vld [vmem:[#allocation4 + $0x74c] sm:$0xf]
    %v704 = vld [vmem:[#allocation4 + $0x750] sm:$0xf]
    %v705 = vld [vmem:[#allocation4 + $0x754] sm:$0xf]
    %v706 = vld [vmem:[#allocation4 + $0x758] sm:$0xf]
    %v707 = vld [vmem:[#allocation4 + $0x75c] sm:$0xf]
    %v708 = vld [vmem:[#allocation4 + $0x760] sm:$0xf]
    %v709 = vld [vmem:[#allocation4 + $0x764] sm:$0xf]
    %v710 = vld [vmem:[#allocation4 + $0x768] sm:$0xf]
    %v711 = vld [vmem:[#allocation4 + $0x76c] sm:$0xf]
    %v712 = vld [vmem:[#allocation4 + $0x770] sm:$0xf]
    %v713 = vld [vmem:[#allocation4 + $0x774] sm:$0xf]
    %v714 = vld [vmem:[#allocation4 + $0x778] sm:$0xf]
    %v715 = vld [vmem:[#allocation4 + $0x77c] sm:$0xf]
    %v716 = vld [vmem:[#allocation4 + $0x780] sm:$0xf]
    %v717 = vld [vmem:[#allocation4 + $0x784] sm:$0xf]
    %v718 = vld [vmem:[#allocation4 + $0x788] sm:$0xf]
    %v719 = vld [vmem:[#allocation4 + $0x78c] sm:$0xf]
    %v720 = vld [vmem:[#allocation4 + $0x790] sm:$0xf]
    %v721 = vld [vmem:[#allocation4 + $0x794] sm:$0xf]
    %v722 = vld [vmem:[#allocation4 + $0x798] sm:$0xf]
    %v723 = vld [vmem:[#allocation4 + $0x79c] sm:$0xf]
    %v724 = vld [vmem:[#allocation4 + $0x7a0] sm:$0xf]
    %v725 = vld [vmem:[#allocation4 + $0x7a4] sm:$0xf]
    %v726 = vld [vmem:[#allocation4 + $0x7a8] sm:$0xf]
    %v727 = vld [vmem:[#allocation4 + $0x7ac] sm:$0xf]
    %v728 = vld [vmem:[#allocation4 + $0x7b0] sm:$0xf]
    %v729 = vld [vmem:[#allocation4 + $0x7b4] sm:$0xf]
    %v730 = vld [vmem:[#allocation4 + $0x7b8] sm:$0xf]
    %v731 = vld [vmem:[#allocation4 + $0x7bc] sm:$0xf]
    %v732 = vld [vmem:[#allocation4 + $0x7c0] sm:$0xf]
    %v733 = vld [vmem:[#allocation4 + $0x7c4] sm:$0xf]
    %v734 = vld [vmem:[#allocation4 + $0x7c8] sm:$0xf]
    %v735 = vld [vmem:[#allocation4 + $0x7cc] sm:$0xf]
    %v736 = vld [vmem:[#allocation4 + $0x7d0] sm:$0xf]
    %v737 = vld [vmem:[#allocation4 + $0x7d4] sm:$0xf]
    %v738 = vld [vmem:[#allocation4 + $0x7d8] sm:$0xf]
    %v739 = vld [vmem:[#allocation4 + $0x7dc] sm:$0xf]
    %v740 = vld [vmem:[#allocation4 + $0x7e0] sm:$0xf]
    %v741 = vld [vmem:[#allocation4 + $0x7e4] sm:$0xf]
    %v742 = vld [vmem:[#allocation4 + $0x7e8] sm:$0xf]
    %v743 = vld [vmem:[#allocation4 + $0x7ec] sm:$0xf]
    %v744 = vld [vmem:[#allocation4 + $0x7f0] sm:$0xf]
    %v745 = vld [vmem:[#allocation4 + $0x7f4] sm:$0xf]
    %v746 = vld [vmem:[#allocation4 + $0x7f8] sm:$0xf]
    %v747 = vld [vmem:[#allocation4 + $0x7fc] sm:$0xf]
    %v748 = vld [vmem:[#allocation4 + $0x800] sm:$0xf]
    %v749 = vld [vmem:[#allocation4 + $0x804] sm:$0xf]
    %v750 = vld [vmem:[#allocation4 + $0x808] sm:$0xf]
    %v751 = vld [vmem:[#allocation4 + $0x80c] sm:$0xf]
    %v752 = vld [vmem:[#allocation4 + $0x810] sm:$0xf]
    %v753 = vld [vmem:[#allocation4 + $0x814] sm:$0xf]
    %v754 = vld [vmem:[#allocation4 + $0x818] sm:$0xf]
    %v755 = vld [vmem:[#allocation4 + $0x81c] sm:$0xf]
    %v756 = vld [vmem:[#allocation4 + $0x820] sm:$0xf]
    %v757 = vld [vmem:[#allocation4 + $0x824] sm:$0xf]
    %v758 = vld [vmem:[#allocation4 + $0x828] sm:$0xf]
    %v759 = vld [vmem:[#allocation4 + $0x82c] sm:$0xf]
    %v760 = vld [vmem:[#allocation4 + $0x830] sm:$0xf]
    %v761 = vld [vmem:[#allocation4 + $0x834] sm:$0xf]
    %v762 = vld [vmem:[#allocation4 + $0x838] sm:$0xf]
    %v763 = vld [vmem:[#allocation4 + $0x83c] sm:$0xf]
    %v764 = vld [vmem:[#allocation4 + $0x840] sm:$0xf]
    %v765 = vld [vmem:[#allocation4 + $0x844] sm:$0xf]
    %v766 = vld [vmem:[#allocation4 + $0x848] sm:$0xf]
    %v767 = vld [vmem:[#allocation4 + $0x84c] sm:$0xf]
    %v768 = vld [vmem:[#allocation4 + $0x850] sm:$0xf]
    %v769 = vld [vmem:[#allocation4 + $0x854] sm:$0xf]
    %v770 = vld [vmem:[#allocation4 + $0x858] sm:$0xf]
    %v771 = vld [vmem:[#allocation4 + $0x85c] sm:$0xf]
    %v772 = vld [vmem:[#allocation4 + $0x860] sm:$0xf]
    %v773 = vld [vmem:[#allocation4 + $0x864] sm:$0xf]
    %v774 = vld [vmem:[#allocation4 + $0x868] sm:$0xf]
    %v775 = vld [vmem:[#allocation4 + $0x86c] sm:$0xf]
    %v776 = vld [vmem:[#allocation4 + $0x870] sm:$0xf]
    %v777 = vld [vmem:[#allocation4 + $0x874] sm:$0xf]
    %v778 = vld [vmem:[#allocation4 + $0x878] sm:$0xf]
    %v779 = vld [vmem:[#allocation4 + $0x87c] sm:$0xf]
    %v780 = vld [vmem:[#allocation4 + $0x880] sm:$0xf]
    %v781 = vld [vmem:[#allocation4 + $0x884] sm:$0xf]
    %v782 = vld [vmem:[#allocation4 + $0x888] sm:$0xf]
    %v783 = vld [vmem:[#allocation4 + $0x88c] sm:$0xf]
    %v784 = vld [vmem:[#allocation4 + $0x890] sm:$0xf]
    %v785 = vld [vmem:[#allocation4 + $0x894] sm:$0xf]
    %v786 = vld [vmem:[#allocation4 + $0x898] sm:$0xf]
    %v787 = vld [vmem:[#allocation4 + $0x89c] sm:$0xf]
    %v788 = vld [vmem:[#allocation4 + $0x8a0] sm:$0xf]
    %v789 = vld [vmem:[#allocation4 + $0x8a4] sm:$0xf]
    %v790 = vld [vmem:[#allocation4 + $0x8a8] sm:$0xf]
    %v791 = vld [vmem:[#allocation4 + $0x8ac] sm:$0xf]
    %v792 = vld [vmem:[#allocation4 + $0x8b0] sm:$0xf]
    %v793 = vld [vmem:[#allocation4 + $0x8b4] sm:$0xf]
    %v794 = vld [vmem:[#allocation4 + $0x8b8] sm:$0xf]
    %v795 = vld [vmem:[#allocation4 + $0x8bc] sm:$0xf]
    %v796 = vld [vmem:[#allocation4 + $0x8c0] sm:$0xf]
    %v797 = vld [vmem:[#allocation4 + $0x8c4] sm:$0xf]
    %v798 = vld [vmem:[#allocation4 + $0x8c8] sm:$0xf]
    %v799 = vld [vmem:[#allocation4 + $0x8cc] sm:$0xf]
    %v800 = vld [vmem:[#allocation4 + $0x8d0] sm:$0xf]
    %v801 = vld [vmem:[#allocation4 + $0x8d4] sm:$0xf]
    %v802 = vld [vmem:[#allocation4 + $0x8d8] sm:$0xf]
    %v803 = vld [vmem:[#allocation4 + $0x8dc] sm:$0xf]
    %v804 = vld [vmem:[#allocation4 + $0x8e0] sm:$0xf]
    %v805 = vld [vmem:[#allocation4 + $0x8e4] sm:$0xf]
    %v806 = vld [vmem:[#allocation4 + $0x8e8] sm:$0xf]
    %v807 = vld [vmem:[#allocation4 + $0x8ec] sm:$0xf]
    %v808 = vld [vmem:[#allocation4 + $0x8f0] sm:$0xf]
    %v809 = vld [vmem:[#allocation4 + $0x8f4] sm:$0xf]
    %v810 = vld [vmem:[#allocation4 + $0x8f8] sm:$0xf]
    %v811 = vld [vmem:[#allocation4 + $0x8fc] sm:$0xf]
    %v812 = vld [vmem:[#allocation4 + $0x900] sm:$0xf]
    %v813 = vld [vmem:[#allocation4 + $0x904] sm:$0xf]
    %v814 = vld [vmem:[#allocation4 + $0x908] sm:$0xf]
    %v815 = vld [vmem:[#allocation4 + $0x90c] sm:$0xf]
    %v816 = vld [vmem:[#allocation4 + $0x910] sm:$0xf]
    %v817 = vld [vmem:[#allocation4 + $0x914] sm:$0xf]
    %v818 = vld [vmem:[#allocation4 + $0x918] sm:$0xf]
    %v819 = vld [vmem:[#allocation4 + $0x91c] sm:$0xf]
    %v820 = vld [vmem:[#allocation4 + $0x920] sm:$0xf]
    %v821 = vld [vmem:[#allocation4 + $0x924] sm:$0xf]
    %v822 = vld [vmem:[#allocation4 + $0x928] sm:$0xf]
    %v823 = vld [vmem:[#allocation4 + $0x92c] sm:$0xf]
    %v824 = vld [vmem:[#allocation4 + $0x930] sm:$0xf]
    %v825 = vld [vmem:[#allocation4 + $0x934] sm:$0xf]
    %v826 = vld [vmem:[#allocation4 + $0x938] sm:$0xf]
    %v827 = vld [vmem:[#allocation4 + $0x93c] sm:$0xf]
    %v828 = vld [vmem:[#allocation4 + $0x940] sm:$0xf]
    %v829 = vld [vmem:[#allocation4 + $0x944] sm:$0xf]
    %v830 = vld [vmem:[#allocation4 + $0x948] sm:$0xf]
    %v831 = vld [vmem:[#allocation4 + $0x94c] sm:$0xf]
    %v832 = vld [vmem:[#allocation4 + $0x950] sm:$0xf]
    %v833 = vld [vmem:[#allocation4 + $0x954] sm:$0xf]
    %v834 = vld [vmem:[#allocation4 + $0x958] sm:$0xf]
    %v835 = vld [vmem:[#allocation4 + $0x95c] sm:$0xf]
    %v836 = vld [vmem:[#allocation4 + $0x960] sm:$0xf]
    %v837 = vld [vmem:[#allocation4 + $0x964] sm:$0xf]
    %v838 = vld [vmem:[#allocation4 + $0x968] sm:$0xf]
    %v839 = vld [vmem:[#allocation4 + $0x96c] sm:$0xf]
    %v840 = vld [vmem:[#allocation4 + $0x970] sm:$0xf]
    %v841 = vld [vmem:[#allocation4 + $0x974] sm:$0xf]
    %v842 = vld [vmem:[#allocation4 + $0x978] sm:$0xf]
    %v843 = vld [vmem:[#allocation4 + $0x97c] sm:$0xf]
    %v844 = vld [vmem:[#allocation4 + $0x980] sm:$0xf]
    %v845 = vld [vmem:[#allocation4 + $0x984] sm:$0xf]
    %v846 = vld [vmem:[#allocation4 + $0x988] sm:$0xf]
    %v847 = vld [vmem:[#allocation4 + $0x98c] sm:$0xf]
    %v848 = vld [vmem:[#allocation4 + $0x990] sm:$0xf]
    %v849 = vld [vmem:[#allocation4 + $0x994] sm:$0xf]
    %v850 = vld [vmem:[#allocation4 + $0x998] sm:$0xf]
    %v851 = vld [vmem:[#allocation4 + $0x99c] sm:$0xf]
    %v852 = vld [vmem:[#allocation4 + $0x9a0] sm:$0xf]
    %v853 = vld [vmem:[#allocation4 + $0x9a4] sm:$0xf]
    %v854 = vld [vmem:[#allocation4 + $0x9a8] sm:$0xf]
    %v855 = vld [vmem:[#allocation4 + $0x9ac] sm:$0xf]
    %v856 = vld [vmem:[#allocation4 + $0x9b0] sm:$0xf]
    %v857 = vld [vmem:[#allocation4 + $0x9b4] sm:$0xf]
    %v858 = vld [vmem:[#allocation4 + $0x9b8] sm:$0xf]
    %v859 = vld [vmem:[#allocation4 + $0x9bc] sm:$0xf]
    %v860 = vld [vmem:[#allocation4 + $0x9c0] sm:$0xf]
    %v861 = vld [vmem:[#allocation4 + $0x9c4] sm:$0xf]
    %v862 = vld [vmem:[#allocation4 + $0x9c8] sm:$0xf]
    %v863 = vld [vmem:[#allocation4 + $0x9cc] sm:$0xf]
    %v864 = vld [vmem:[#allocation4 + $0x9d0] sm:$0xf]
    %v865 = vld [vmem:[#allocation4 + $0x9d4] sm:$0xf]
    %v866 = vld [vmem:[#allocation4 + $0x9d8] sm:$0xf]
    %v867 = vld [vmem:[#allocation4 + $0x9dc] sm:$0xf]
    %v868 = vld [vmem:[#allocation4 + $0x9e0] sm:$0xf]
    %v869 = vld [vmem:[#allocation4 + $0x9e4] sm:$0xf]
    %v870 = vld [vmem:[#allocation4 + $0x9e8] sm:$0xf]
    %v871 = vld [vmem:[#allocation4 + $0x9ec] sm:$0xf]
    %v872 = vld [vmem:[#allocation4 + $0x9f0] sm:$0xf]
    %v873 = vld [vmem:[#allocation4 + $0x9f4] sm:$0xf]
    %v874 = vld [vmem:[#allocation4 + $0x9f8] sm:$0xf]
    %v875 = vld [vmem:[#allocation4 + $0x9fc] sm:$0xf]
    %v876 = vld [vmem:[#allocation4 + $0xa00] sm:$0xf]
    %v877 = vld [vmem:[#allocation4 + $0xa04] sm:$0xf]
    %v878 = vld [vmem:[#allocation4 + $0xa08] sm:$0xf]
    %v879 = vld [vmem:[#allocation4 + $0xa0c] sm:$0xf]
    %v880 = vld [vmem:[#allocation4 + $0xa10] sm:$0xf]
    %v881 = vld [vmem:[#allocation4 + $0xa14] sm:$0xf]
    %v882 = vld [vmem:[#allocation4 + $0xa18] sm:$0xf]
    %v883 = vld [vmem:[#allocation4 + $0xa1c] sm:$0xf]
    %v884 = vld [vmem:[#allocation4 + $0xa20] sm:$0xf]
    %v885 = vld [vmem:[#allocation4 + $0xa24] sm:$0xf]
    %v886 = vld [vmem:[#allocation4 + $0xa28] sm:$0xf]
    %v887 = vld [vmem:[#allocation4 + $0xa2c] sm:$0xf]
    %v888 = vld [vmem:[#allocation4 + $0xa30] sm:$0xf]
    %v889 = vld [vmem:[#allocation4 + $0xa34] sm:$0xf]
    %v890 = vld [vmem:[#allocation4 + $0xa38] sm:$0xf]
    %v891 = vld [vmem:[#allocation4 + $0xa3c] sm:$0xf]
    %v892 = vld [vmem:[#allocation4 + $0xa40] sm:$0xf]
    %v893 = vld [vmem:[#allocation4 + $0xa44] sm:$0xf]
    %v894 = vld [vmem:[#allocation4 + $0xa48] sm:$0xf]
    %v895 = vld [vmem:[#allocation4 + $0xa4c] sm:$0xf]
    %v896 = vld [vmem:[#allocation4 + $0xa50] sm:$0xf]
    %v897 = vld [vmem:[#allocation4 + $0xa54] sm:$0xf]
    %v898 = vld [vmem:[#allocation4 + $0xa58] sm:$0xf]
    %v899 = vld [vmem:[#allocation4 + $0xa5c] sm:$0xf]
    %v900 = vld [vmem:[#allocation4 + $0xa60] sm:$0xf]
    %v901 = vld [vmem:[#allocation4 + $0xa64] sm:$0xf]
    %v902 = vld [vmem:[#allocation4 + $0xa68] sm:$0xf]
    %v903 = vld [vmem:[#allocation4 + $0xa6c] sm:$0xf]
    %v904 = vld [vmem:[#allocation4 + $0xa70] sm:$0xf]
    %v905 = vld [vmem:[#allocation4 + $0xa74] sm:$0xf]
    %v906 = vld [vmem:[#allocation4 + $0xa78] sm:$0xf]
    %v907 = vld [vmem:[#allocation4 + $0xa7c] sm:$0xf]
    %v908 = vld [vmem:[#allocation4 + $0xa80] sm:$0xf]
    %v909 = vld [vmem:[#allocation4 + $0xa84] sm:$0xf]
    %v910 = vld [vmem:[#allocation4 + $0xa88] sm:$0xf]
    %v911 = vld [vmem:[#allocation4 + $0xa8c] sm:$0xf]
    %v912 = vld [vmem:[#allocation4 + $0xa90] sm:$0xf]
    %v913 = vld [vmem:[#allocation4 + $0xa94] sm:$0xf]
    %v914 = vld [vmem:[#allocation4 + $0xa98] sm:$0xf]
    %v915 = vld [vmem:[#allocation4 + $0xa9c] sm:$0xf]
    %v916 = vld [vmem:[#allocation4 + $0xaa0] sm:$0xf]
    %v917 = vld [vmem:[#allocation4 + $0xaa4] sm:$0xf]
    %v918 = vld [vmem:[#allocation4 + $0xaa8] sm:$0xf]
    %v919 = vld [vmem:[#allocation4 + $0xaac] sm:$0xf]
    %v920 = vld [vmem:[#allocation4 + $0xab0] sm:$0xf]
    %v921 = vld [vmem:[#allocation4 + $0xab4] sm:$0xf]
    %v922 = vld [vmem:[#allocation4 + $0xab8] sm:$0xf]
    %v923 = vld [vmem:[#allocation4 + $0xabc] sm:$0xf]
    %v924 = vld [vmem:[#allocation4 + $0xac0] sm:$0xf]
    %v925 = vld [vmem:[#allocation4 + $0xac4] sm:$0xf]
    %v926 = vld [vmem:[#allocation4 + $0xac8] sm:$0xf]
    %v927 = vld [vmem:[#allocation4 + $0xacc] sm:$0xf]
    %v928 = vld [vmem:[#allocation4 + $0xad0] sm:$0xf]
    %v929 = vld [vmem:[#allocation4 + $0xad4] sm:$0xf]
    %v930 = vld [vmem:[#allocation4 + $0xad8] sm:$0xf]
    %v931 = vld [vmem:[#allocation4 + $0xadc] sm:$0xf]
    %v932 = vld [vmem:[#allocation4 + $0xae0] sm:$0xf]
    %v933 = vld [vmem:[#allocation4 + $0xae4] sm:$0xf]
    %v934 = vld [vmem:[#allocation4 + $0xae8] sm:$0xf]
    %v935 = vld [vmem:[#allocation4 + $0xaec] sm:$0xf]
    %v936 = vld [vmem:[#allocation4 + $0xaf0] sm:$0xf]
    %v937 = vld [vmem:[#allocation4 + $0xaf4] sm:$0xf]
    %v938 = vld [vmem:[#allocation4 + $0xaf8] sm:$0xf]
    %v939 = vld [vmem:[#allocation4 + $0xafc] sm:$0xf]
    %v940 = vld [vmem:[#allocation4 + $0xb00] sm:$0xf]
    %v941 = vld [vmem:[#allocation4 + $0xb04] sm:$0xf]
    %v942 = vld [vmem:[#allocation4 + $0xb08] sm:$0xf]
    %v943 = vld [vmem:[#allocation4 + $0xb0c] sm:$0xf]
    %v944 = vld [vmem:[#allocation4 + $0xb10] sm:$0xf]
    %v945 = vld [vmem:[#allocation4 + $0xb14] sm:$0xf]
    %v946 = vld [vmem:[#allocation4 + $0xb18] sm:$0xf]
    %v947 = vld [vmem:[#allocation4 + $0xb1c] sm:$0xf]
    %v948 = vld [vmem:[#allocation4 + $0xb20] sm:$0xf]
    %v949 = vld [vmem:[#allocation4 + $0xb24] sm:$0xf]
    %v950 = vld [vmem:[#allocation4 + $0xb28] sm:$0xf]
    %v951 = vld [vmem:[#allocation4 + $0xb2c] sm:$0xf]
    %v952 = vld [vmem:[#allocation4 + $0xb30] sm:$0xf]
    %v953 = vld [vmem:[#allocation4 + $0xb34] sm:$0xf]
    %v954 = vld [vmem:[#allocation4 + $0xb38] sm:$0xf]
    %v955 = vld [vmem:[#allocation4 + $0xb3c] sm:$0xf]
    %v956 = vld [vmem:[#allocation4 + $0xb40] sm:$0xf]
    %v957 = vld [vmem:[#allocation4 + $0xb44] sm:$0xf]
    %v958 = vld [vmem:[#allocation4 + $0xb48] sm:$0xf]
    %v959 = vld [vmem:[#allocation4 + $0xb4c] sm:$0xf]
    %v960 = vld [vmem:[#allocation4 + $0xb50] sm:$0xf]
    %v961 = vld [vmem:[#allocation4 + $0xb54] sm:$0xf]
    %v962 = vld [vmem:[#allocation4 + $0xb58] sm:$0xf]
    %v963 = vld [vmem:[#allocation4 + $0xb5c] sm:$0xf]
    %v964 = vld [vmem:[#allocation4 + $0xb60] sm:$0xf]
    %v965 = vld [vmem:[#allocation4 + $0xb64] sm:$0xf]
    %v966 = vld [vmem:[#allocation4 + $0xb68] sm:$0xf]
    %v967 = vld [vmem:[#allocation4 + $0xb6c] sm:$0xf]
    %v968 = vld [vmem:[#allocation4 + $0xb70] sm:$0xf]
    %v969 = vld [vmem:[#allocation4 + $0xb74] sm:$0xf]
    %v970 = vld [vmem:[#allocation4 + $0xb78] sm:$0xf]
    %v971 = vld [vmem:[#allocation4 + $0xb7c] sm:$0xf]
    %v972 = vld [vmem:[#allocation4 + $0xb80] sm:$0xf]
    %v973 = vld [vmem:[#allocation4 + $0xb84] sm:$0xf]
    %v974 = vld [vmem:[#allocation4 + $0xb88] sm:$0xf]
    %v975 = vld [vmem:[#allocation4 + $0xb8c] sm:$0xf]
    %v976 = vld [vmem:[#allocation4 + $0xb90] sm:$0xf]
    %v977 = vld [vmem:[#allocation4 + $0xb94] sm:$0xf]
    %v978 = vld [vmem:[#allocation4 + $0xb98] sm:$0xf]
    %v979 = vld [vmem:[#allocation4 + $0xb9c] sm:$0xf]
    %v980 = vld [vmem:[#allocation4 + $0xba0] sm:$0xf]
    %v981 = vld [vmem:[#allocation4 + $0xba4] sm:$0xf]
    %v982 = vld [vmem:[#allocation4 + $0xba8] sm:$0xf]
    %v983 = vld [vmem:[#allocation4 + $0xbac] sm:$0xf]
    %v984 = vld [vmem:[#allocation4 + $0xbb0] sm:$0xf]
    %v985 = vld [vmem:[#allocation4 + $0xbb4] sm:$0xf]
    %v986 = vld [vmem:[#allocation4 + $0xbb8] sm:$0xf]
    %v987 = vld [vmem:[#allocation4 + $0xbbc] sm:$0xf]
    %v988 = vld [vmem:[#allocation4 + $0xbc0] sm:$0xf]
    %v989 = vld [vmem:[#allocation4 + $0xbc4] sm:$0xf]
    %v990 = vld [vmem:[#allocation4 + $0xbc8] sm:$0xf]
    %v991 = vld [vmem:[#allocation4 + $0xbcc] sm:$0xf]
    %v992 = vld [vmem:[#allocation4 + $0xbd0] sm:$0xf]
    %v993 = vld [vmem:[#allocation4 + $0xbd4] sm:$0xf]
    %v994 = vld [vmem:[#allocation4 + $0xbd8] sm:$0xf]
    %v995 = vld [vmem:[#allocation4 + $0xbdc] sm:$0xf]
    %v996 = vld [vmem:[#allocation4 + $0xbe0] sm:$0xf]
    %v997 = vld [vmem:[#allocation4 + $0xbe4] sm:$0xf]
    %v998 = vld [vmem:[#allocation4 + $0xbe8] sm:$0xf]
    %v999 = vld [vmem:[#allocation4 + $0xbec] sm:$0xf]
    %v1000 = vld [vmem:[#allocation4 + $0xbf0] sm:$0xf]
    %v1001 = vld [vmem:[#allocation4 + $0xbf4] sm:$0xf]
    %v1002 = vld [vmem:[#allocation4 + $0xbf8] sm:$0xf]
    %v1003 = vld [vmem:[#allocation4 + $0xbfc] sm:$0xf]
    %v1004 = vld [vmem:[#allocation4 + $0xc00] sm:$0xf]
    %v1005 = vld [vmem:[#allocation4 + $0xc04] sm:$0xf]
    %v1006 = vld [vmem:[#allocation4 + $0xc08] sm:$0xf]
    %v1007 = vld [vmem:[#allocation4 + $0xc0c] sm:$0xf]
    %v1008 = vld [vmem:[#allocation4 + $0xc10] sm:$0xf]
    %v1009 = vld [vmem:[#allocation4 + $0xc14] sm:$0xf]
    %v1010 = vld [vmem:[#allocation4 + $0xc18] sm:$0xf]
    %v1011 = vld [vmem:[#allocation4 + $0xc1c] sm:$0xf]
    %v1012 = vld [vmem:[#allocation4 + $0xc20] sm:$0xf]
    %v1013 = vld [vmem:[#allocation4 + $0xc24] sm:$0xf]
    %v1014 = vld [vmem:[#allocation4 + $0xc28] sm:$0xf]
    %v1015 = vld [vmem:[#allocation4 + $0xc2c] sm:$0xf]
    %v1016 = vld [vmem:[#allocation4 + $0xc30] sm:$0xf]
    %v1017 = vld [vmem:[#allocation4 + $0xc34] sm:$0xf]
    %v1018 = vld [vmem:[#allocation4 + $0xc38] sm:$0xf]
    %v1019 = vld [vmem:[#allocation4 + $0xc3c] sm:$0xf]
    %v1020 = vld [vmem:[#allocation4 + $0xc40] sm:$0xf]
    %v1021 = vld [vmem:[#allocation4 + $0xc44] sm:$0xf]
    %v1022 = vld [vmem:[#allocation4 + $0xc48] sm:$0xf]
    %v1023 = vld [vmem:[#allocation4 + $0xc4c] sm:$0xf]
    %v1024 = vld [vmem:[#allocation4 + $0xc50] sm:$0xf]
    %v1025 = vld [vmem:[#allocation4 + $0xc54] sm:$0xf]
    %v1026 = vld [vmem:[#allocation4 + $0xc58] sm:$0xf]
    %v1027 = vld [vmem:[#allocation4 + $0xc5c] sm:$0xf]
    %v1028 = vld [vmem:[#allocation4 + $0xc60] sm:$0xf]
    %v1029 = vld [vmem:[#allocation4 + $0xc64] sm:$0xf]
    %v1030 = vld [vmem:[#allocation4 + $0xc68] sm:$0xf]
    %v1031 = vld [vmem:[#allocation4 + $0xc6c] sm:$0xf]
    %v1032 = vld [vmem:[#allocation4 + $0xc70] sm:$0xf]
    %v1033 = vld [vmem:[#allocation4 + $0xc74] sm:$0xf]
    %v1034 = vld [vmem:[#allocation4 + $0xc78] sm:$0xf]
    %v1035 = vld [vmem:[#allocation4 + $0xc7c] sm:$0xf]
    %v1036 = vld [vmem:[#allocation4 + $0xc80] sm:$0xf]
    %v1037 = vld [vmem:[#allocation4 + $0xc84] sm:$0xf]
    %v1038 = vld [vmem:[#allocation4 + $0xc88] sm:$0xf]
    %v1039 = vld [vmem:[#allocation4 + $0xc8c] sm:$0xf]
    %v1040 = vld [vmem:[#allocation4 + $0xc90] sm:$0xf]
    %v1041 = vld [vmem:[#allocation4 + $0xc94] sm:$0xf]
    %v1042 = vld [vmem:[#allocation4 + $0xc98] sm:$0xf]
    %v1043 = vld [vmem:[#allocation4 + $0xc9c] sm:$0xf]
    %v1044 = vld [vmem:[#allocation4 + $0xca0] sm:$0xf]
    %v1045 = vld [vmem:[#allocation4 + $0xca4] sm:$0xf]
    %v1046 = vld [vmem:[#allocation4 + $0xca8] sm:$0xf]
    %v1047 = vld [vmem:[#allocation4 + $0xcac] sm:$0xf]
    %v1048 = vld [vmem:[#allocation4 + $0xcb0] sm:$0xf]
    %v1049 = vld [vmem:[#allocation4 + $0xcb4] sm:$0xf]
    %v1050 = vld [vmem:[#allocation4 + $0xcb8] sm:$0xf]
    %v1051 = vld [vmem:[#allocation4 + $0xcbc] sm:$0xf]
    %v1052 = vld [vmem:[#allocation4 + $0xcc0] sm:$0xf]
    %v1053 = vld [vmem:[#allocation4 + $0xcc4] sm:$0xf]
    %v1054 = vld [vmem:[#allocation4 + $0xcc8] sm:$0xf]
    %v1055 = vld [vmem:[#allocation4 + $0xccc] sm:$0xf]
    %v1056 = vld [vmem:[#allocation4 + $0xcd0] sm:$0xf]
    %v1057 = vld [vmem:[#allocation4 + $0xcd4] sm:$0xf]
    %v1058 = vld [vmem:[#allocation4 + $0xcd8] sm:$0xf]
    %v1059 = vld [vmem:[#allocation4 + $0xcdc] sm:$0xf]
    %v1060 = vld [vmem:[#allocation4 + $0xce0] sm:$0xf]
    %v1061 = vld [vmem:[#allocation4 + $0xce4] sm:$0xf]
    %v1062 = vld [vmem:[#allocation4 + $0xce8] sm:$0xf]
    %v1063 = vld [vmem:[#allocation4 + $0xcec] sm:$0xf]
    %v1064 = vld [vmem:[#allocation4 + $0xcf0] sm:$0xf]
    %v1065 = vld [vmem:[#allocation4 + $0xcf4] sm:$0xf]
    %v1066 = vld [vmem:[#allocation4 + $0xcf8] sm:$0xf]
    %v1067 = vld [vmem:[#allocation4 + $0xcfc] sm:$0xf]
    %v1068 = vld [vmem:[#allocation4 + $0xd00] sm:$0xf]
    %v1069 = vld [vmem:[#allocation4 + $0xd04] sm:$0xf]
    %v1070 = vld [vmem:[#allocation4 + $0xd08] sm:$0xf]
    %v1071 = vld [vmem:[#allocation4 + $0xd0c] sm:$0xf]
    %v1072 = vld [vmem:[#allocation4 + $0xd10] sm:$0xf]
    %v1073 = vld [vmem:[#allocation4 + $0xd14] sm:$0xf]
    %v1074 = vld [vmem:[#allocation4 + $0xd18] sm:$0xf]
    %v1075 = vld [vmem:[#allocation4 + $0xd1c] sm:$0xf]
    %v1076 = vld [vmem:[#allocation4 + $0xd20] sm:$0xf]
    %v1077 = vld [vmem:[#allocation4 + $0xd24] sm:$0xf]
    %v1078 = vld [vmem:[#allocation4 + $0xd28] sm:$0xf]
    %v1079 = vld [vmem:[#allocation4 + $0xd2c] sm:$0xf]
    %v1080 = vld [vmem:[#allocation4 + $0xd30] sm:$0xf]
    %v1081 = vld [vmem:[#allocation4 + $0xd34] sm:$0xf]
    %v1082 = vld [vmem:[#allocation4 + $0xd38] sm:$0xf]
    %v1083 = vld [vmem:[#allocation4 + $0xd3c] sm:$0xf]
    %v1084 = vld [vmem:[#allocation4 + $0xd40] sm:$0xf]
    %v1085 = vld [vmem:[#allocation4 + $0xd44] sm:$0xf]
    %v1086 = vld [vmem:[#allocation4 + $0xd48] sm:$0xf]
    %v1087 = vld [vmem:[#allocation4 + $0xd4c] sm:$0xf]
    %v1088 = vld [vmem:[#allocation4 + $0xd50] sm:$0xf]
    %v1089 = vld [vmem:[#allocation4 + $0xd54] sm:$0xf]
    %v1090 = vld [vmem:[#allocation4 + $0xd58] sm:$0xf]
    %v1091 = vld [vmem:[#allocation4 + $0xd5c] sm:$0xf]
    %v1092 = vld [vmem:[#allocation4 + $0xd60] sm:$0xf]
    %v1093 = vld [vmem:[#allocation4 + $0xd64] sm:$0xf]
    %v1094 = vld [vmem:[#allocation4 + $0xd68] sm:$0xf]
    %v1095 = vld [vmem:[#allocation4 + $0xd6c] sm:$0xf]
    %v1096 = vld [vmem:[#allocation4 + $0xd70] sm:$0xf]
    %v1097 = vld [vmem:[#allocation4 + $0xd74] sm:$0xf]
    %v1098 = vld [vmem:[#allocation4 + $0xd78] sm:$0xf]
    %v1099 = vld [vmem:[#allocation4 + $0xd7c] sm:$0xf]
    %v1100 = vld [vmem:[#allocation4 + $0xd80] sm:$0xf]
    %v1101 = vld [vmem:[#allocation4 + $0xd84] sm:$0xf]
    %v1102 = vld [vmem:[#allocation4 + $0xd88] sm:$0xf]
    %v1103 = vld [vmem:[#allocation4 + $0xd8c] sm:$0xf]
    %v1104 = vld [vmem:[#allocation4 + $0xd90] sm:$0xf]
    %v1105 = vld [vmem:[#allocation4 + $0xd94] sm:$0xf]
    %v1106 = vld [vmem:[#allocation4 + $0xd98] sm:$0xf]
    %v1107 = vld [vmem:[#allocation4 + $0xd9c] sm:$0xf]
    %v1108 = vld [vmem:[#allocation4 + $0xda0] sm:$0xf]
    %v1109 = vld [vmem:[#allocation4 + $0xda4] sm:$0xf]
    %v1110 = vld [vmem:[#allocation4 + $0xda8] sm:$0xf]
    %v1111 = vld [vmem:[#allocation4 + $0xdac] sm:$0xf]
    %v1112 = vld [vmem:[#allocation4 + $0xdb0] sm:$0xf]
    %v1113 = vld [vmem:[#allocation4 + $0xdb4] sm:$0xf]
    %v1114 = vld [vmem:[#allocation4 + $0xdb8] sm:$0xf]
    %v1115 = vld [vmem:[#allocation4 + $0xdbc] sm:$0xf]
    %v1116 = vld [vmem:[#allocation4 + $0xdc0] sm:$0xf]
    %v1117 = vld [vmem:[#allocation4 + $0xdc4] sm:$0xf]
    %v1118 = vld [vmem:[#allocation4 + $0xdc8] sm:$0xf]
    %v1119 = vld [vmem:[#allocation4 + $0xdcc] sm:$0xf]
    %v1120 = vld [vmem:[#allocation4 + $0xdd0] sm:$0xf]
    %v1121 = vld [vmem:[#allocation4 + $0xdd4] sm:$0xf]
    %v1122 = vld [vmem:[#allocation4 + $0xdd8] sm:$0xf]
    %v1123 = vld [vmem:[#allocation4 + $0xddc] sm:$0xf]
    %v1124 = vld [vmem:[#allocation4 + $0xde0] sm:$0xf]
    %v1125 = vld [vmem:[#allocation4 + $0xde4] sm:$0xf]
    %v1126 = vld [vmem:[#allocation4 + $0xde8] sm:$0xf]
    %v1127 = vld [vmem:[#allocation4 + $0xdec] sm:$0xf]
    %v1128 = vld [vmem:[#allocation4 + $0xdf0] sm:$0xf]
    %v1129 = vld [vmem:[#allocation4 + $0xdf4] sm:$0xf]
    %v1130 = vld [vmem:[#allocation4 + $0xdf8] sm:$0xf]
    %v1131 = vld [vmem:[#allocation4 + $0xdfc] sm:$0xf]
    %v1132 = vld [vmem:[#allocation4 + $0xe00] sm:$0xf]
    %v1133 = vld [vmem:[#allocation4 + $0xe04] sm:$0xf]
    %v1134 = vld [vmem:[#allocation4 + $0xe08] sm:$0xf]
    %v1135 = vld [vmem:[#allocation4 + $0xe0c] sm:$0xf]
    %v1136 = vld [vmem:[#allocation4 + $0xe10] sm:$0xf]
    %v1137 = vld [vmem:[#allocation4 + $0xe14] sm:$0xf]
    %v1138 = vld [vmem:[#allocation4 + $0xe18] sm:$0xf]
    %v1139 = vld [vmem:[#allocation4 + $0xe1c] sm:$0xf]
    %v1140 = vld [vmem:[#allocation4 + $0xe20] sm:$0xf]
    %v1141 = vld [vmem:[#allocation4 + $0xe24] sm:$0xf]
    %v1142 = vld [vmem:[#allocation4 + $0xe28] sm:$0xf]
    %v1143 = vld [vmem:[#allocation4 + $0xe2c] sm:$0xf]
    %v1144 = vld [vmem:[#allocation4 + $0xe30] sm:$0xf]
    %v1145 = vld [vmem:[#allocation4 + $0xe34] sm:$0xf]
    %v1146 = vld [vmem:[#allocation4 + $0xe38] sm:$0xf]
    %v1147 = vld [vmem:[#allocation4 + $0xe3c] sm:$0xf]
    %v1148 = vld [vmem:[#allocation4 + $0xe40] sm:$0xf]
    %v1149 = vld [vmem:[#allocation4 + $0xe44] sm:$0xf]
    %v1150 = vld [vmem:[#allocation4 + $0xe48] sm:$0xf]
    %v1151 = vld [vmem:[#allocation4 + $0xe4c] sm:$0xf]
    %v1152 = vld [vmem:[#allocation4 + $0xe50] sm:$0xf]
    %v1153 = vld [vmem:[#allocation4 + $0xe54] sm:$0xf]
    %v1154 = vld [vmem:[#allocation4 + $0xe58] sm:$0xf]
    %v1155 = vld [vmem:[#allocation4 + $0xe5c] sm:$0xf]
    %v1156 = vld [vmem:[#allocation4 + $0xe60] sm:$0xf]
    %v1157 = vld [vmem:[#allocation4 + $0xe64] sm:$0xf]
    %v1158 = vld [vmem:[#allocation4 + $0xe68] sm:$0xf]
    %v1159 = vld [vmem:[#allocation4 + $0xe6c] sm:$0xf]
    %v1160 = vld [vmem:[#allocation4 + $0xe70] sm:$0xf]
    %v1161 = vld [vmem:[#allocation4 + $0xe74] sm:$0xf]
    %v1162 = vld [vmem:[#allocation4 + $0xe78] sm:$0xf]
    %v1163 = vld [vmem:[#allocation4 + $0xe7c] sm:$0xf]
    %v1164 = vld [vmem:[#allocation4 + $0xe80] sm:$0xf]
    %v1165 = vld [vmem:[#allocation4 + $0xe84] sm:$0xf]
    %v1166 = vld [vmem:[#allocation4 + $0xe88] sm:$0xf]
    %v1167 = vld [vmem:[#allocation4 + $0xe8c] sm:$0xf]
    %v1168 = vld [vmem:[#allocation4 + $0xe90] sm:$0xf]
    %v1169 = vld [vmem:[#allocation4 + $0xe94] sm:$0xf]
    %v1170 = vld [vmem:[#allocation4 + $0xe98] sm:$0xf]
    %v1171 = vld [vmem:[#allocation4 + $0xe9c] sm:$0xf]
    %v1172 = vld [vmem:[#allocation4 + $0xea0] sm:$0xf]
    %v1173 = vld [vmem:[#allocation4 + $0xea4] sm:$0xf]
    %v1174 = vld [vmem:[#allocation4 + $0xea8] sm:$0xf]
    %v1175 = vld [vmem:[#allocation4 + $0xeac] sm:$0xf]
    %v1176 = vld [vmem:[#allocation4 + $0xeb0] sm:$0xf]
    %v1177 = vld [vmem:[#allocation4 + $0xeb4] sm:$0xf]
    %v1178 = vld [vmem:[#allocation4 + $0xeb8] sm:$0xf]
    %v1179 = vld [vmem:[#allocation4 + $0xebc] sm:$0xf]
    %v1180 = vld [vmem:[#allocation4 + $0xec0] sm:$0xf]
    %v1181 = vld [vmem:[#allocation4 + $0xec4] sm:$0xf]
    %v1182 = vld [vmem:[#allocation4 + $0xec8] sm:$0xf]
    %v1183 = vld [vmem:[#allocation4 + $0xecc] sm:$0xf]
    %v1184 = vld [vmem:[#allocation4 + $0xed0] sm:$0xf]
    %v1185 = vld [vmem:[#allocation4 + $0xed4] sm:$0xf]
    %v1186 = vld [vmem:[#allocation4 + $0xed8] sm:$0xf]
    %v1187 = vld [vmem:[#allocation4 + $0xedc] sm:$0xf]
    %v1188 = vld [vmem:[#allocation4 + $0xee0] sm:$0xf]
    %v1189 = vld [vmem:[#allocation4 + $0xee4] sm:$0xf]
    %v1190 = vld [vmem:[#allocation4 + $0xee8] sm:$0xf]
    %v1191 = vld [vmem:[#allocation4 + $0xeec] sm:$0xf]
    %v1192 = vld [vmem:[#allocation4 + $0xef0] sm:$0xf]
    %v1193 = vld [vmem:[#allocation4 + $0xef4] sm:$0xf]
    %v1194 = vld [vmem:[#allocation4 + $0xef8] sm:$0xf]
    %v1195 = vld [vmem:[#allocation4 + $0xefc] sm:$0xf]
    %v1196 = vld [vmem:[#allocation4 + $0xf00] sm:$0xf]
    %v1197 = vld [vmem:[#allocation4 + $0xf04] sm:$0xf]
    %v1198 = vld [vmem:[#allocation4 + $0xf08] sm:$0xf]
    %v1199 = vld [vmem:[#allocation4 + $0xf0c] sm:$0xf]
    %v1200 = vld [vmem:[#allocation4 + $0xf10] sm:$0xf]
    %v1201 = vld [vmem:[#allocation4 + $0xf14] sm:$0xf]
    %v1202 = vld [vmem:[#allocation4 + $0xf18] sm:$0xf]
    %v1203 = vld [vmem:[#allocation4 + $0xf1c] sm:$0xf]
    %v1204 = vld [vmem:[#allocation4 + $0xf20] sm:$0xf]
    %v1205 = vld [vmem:[#allocation6] sm:$0x1]
    %v1207 = vlaneseq
    %v1208 = vshrl.u32 %v1207, 7
    %v1209 = vsub.s32 0, %v1208
    %v1210 = vrot.slane %v1205, %v1209
    %v2181 = vunpack.c.l.b16 %v236
    %v2182 = vunpack.c.l.b16 %v237
    %v2183 = vunpack.c.l.b16 %v238
    %v2184 = vunpack.c.l.b16 %v239
    %v2185 = vunpack.c.l.b16 %v240
    %v2186 = vunpack.c.l.b16 %v241
    %v2187 = vunpack.c.l.b16 %v242
    %v2188 = vunpack.c.l.b16 %v243
    %v2189 = vunpack.c.l.b16 %v244
    %v2190 = vunpack.c.l.b16 %v245
    %v2191 = vunpack.c.l.b16 %v246
    %v2192 = vunpack.c.l.b16 %v247
    %v2193 = vunpack.c.l.b16 %v248
    %v2194 = vunpack.c.l.b16 %v249
    %v2195 = vunpack.c.l.b16 %v250
    %v2196 = vunpack.c.l.b16 %v251
    %v2197 = vunpack.c.l.b16 %v252
    %v2198 = vunpack.c.l.b16 %v253
    %v2199 = vunpack.c.l.b16 %v254
    %v2200 = vunpack.c.l.b16 %v255
    %v2201 = vunpack.c.l.b16 %v256
    %v2202 = vunpack.c.l.b16 %v257
    %v2203 = vunpack.c.l.b16 %v258
    %v2204 = vunpack.c.l.b16 %v259
    %v2205 = vunpack.c.l.b16 %v260
    %v2206 = vunpack.c.l.b16 %v261
    %v2207 = vunpack.c.l.b16 %v262
    %v2208 = vunpack.c.l.b16 %v263
    %v2209 = vunpack.c.l.b16 %v264
    %v2210 = vunpack.c.l.b16 %v265
    %v2211 = vunpack.c.l.b16 %v266
    %v2212 = vunpack.c.l.b16 %v267
    %v2213 = vunpack.c.l.b16 %v268
    %v2214 = vunpack.c.l.b16 %v269
    %v2215 = vunpack.c.l.b16 %v270
    %v2216 = vunpack.c.l.b16 %v271
    %v2217 = vunpack.c.l.b16 %v272
    %v2218 = vunpack.c.l.b16 %v273
    %v2219 = vunpack.c.l.b16 %v274
    %v2220 = vunpack.c.l.b16 %v275
    %v2221 = vunpack.c.l.b16 %v276
    %v2222 = vunpack.c.l.b16 %v277
    %v2223 = vunpack.c.l.b16 %v278
    %v2224 = vunpack.c.l.b16 %v279
    %v2225 = vunpack.c.l.b16 %v280
    %v2226 = vunpack.c.l.b16 %v281
    %v2227 = vunpack.c.l.b16 %v282
    %v2228 = vunpack.c.l.b16 %v283
    %v2229 = vunpack.c.l.b16 %v284
    %v2230 = vunpack.c.l.b16 %v285
    %v2231 = vunpack.c.l.b16 %v286
    %v2232 = vunpack.c.l.b16 %v287
    %v2233 = vunpack.c.l.b16 %v288
    %v2234 = vunpack.c.l.b16 %v289
    %v2235 = vunpack.c.l.b16 %v290
    %v2236 = vunpack.c.l.b16 %v291
    %v2237 = vunpack.c.l.b16 %v292
    %v2238 = vunpack.c.l.b16 %v293
    %v2239 = vunpack.c.l.b16 %v294
    %v2240 = vunpack.c.l.b16 %v295
    %v2241 = vunpack.c.l.b16 %v296
    %v2242 = vunpack.c.l.b16 %v297
    %v2243 = vunpack.c.l.b16 %v298
    %v2244 = vunpack.c.l.b16 %v299
    %v2245 = vunpack.c.l.b16 %v300
    %v2246 = vunpack.c.l.b16 %v301
    %v2247 = vunpack.c.l.b16 %v302
    %v2248 = vunpack.c.l.b16 %v303
    %v2249 = vunpack.c.l.b16 %v304
    %v2250 = vunpack.c.l.b16 %v305
    %v2251 = vunpack.c.l.b16 %v306
    %v2252 = vunpack.c.l.b16 %v307
    %v2253 = vunpack.c.l.b16 %v308
    %v2254 = vunpack.c.l.b16 %v309
    %v2255 = vunpack.c.l.b16 %v310
    %v2256 = vunpack.c.l.b16 %v311
    %v2257 = vunpack.c.l.b16 %v312
    %v2258 = vunpack.c.l.b16 %v313
    %v2259 = vunpack.c.l.b16 %v314
    %v2260 = vunpack.c.l.b16 %v315
    %v2261 = vunpack.c.l.b16 %v316
    %v2262 = vunpack.c.l.b16 %v317
    %v2263 = vunpack.c.l.b16 %v318
    %v2264 = vunpack.c.l.b16 %v319
    %v2265 = vunpack.c.l.b16 %v320
    %v2266 = vunpack.c.l.b16 %v321
    %v2267 = vunpack.c.l.b16 %v322
    %v2268 = vunpack.c.l.b16 %v323
    %v2269 = vunpack.c.l.b16 %v324
    %v2270 = vunpack.c.l.b16 %v325
    %v2271 = vunpack.c.l.b16 %v326
    %v2272 = vunpack.c.l.b16 %v327
    %v2273 = vunpack.c.l.b16 %v328
    %v2274 = vunpack.c.l.b16 %v329
    %v2275 = vunpack.c.l.b16 %v330
    %v2276 = vunpack.c.l.b16 %v331
    %v2277 = vunpack.c.l.b16 %v332
    %v2278 = vunpack.c.l.b16 %v333
    %v2279 = vunpack.c.l.b16 %v334
    %v2280 = vunpack.c.l.b16 %v335
    %v2281 = vunpack.c.l.b16 %v336
    %v2282 = vunpack.c.l.b16 %v337
    %v2283 = vunpack.c.l.b16 %v338
    %v2284 = vunpack.c.l.b16 %v339
    %v2285 = vunpack.c.l.b16 %v340
    %v2286 = vunpack.c.l.b16 %v341
    %v2287 = vunpack.c.l.b16 %v342
    %v2288 = vunpack.c.l.b16 %v343
    %v2289 = vunpack.c.l.b16 %v344
    %v2290 = vunpack.c.l.b16 %v345
    %v2291 = vunpack.c.l.b16 %v346
    %v2292 = vunpack.c.l.b16 %v347
    %v2293 = vunpack.c.l.b16 %v348
    %v2294 = vunpack.c.l.b16 %v349
    %v2295 = vunpack.c.l.b16 %v350
    %v2296 = vunpack.c.l.b16 %v351
    %v2297 = vunpack.c.l.b16 %v352
    %v2298 = vunpack.c.l.b16 %v353
    %v2299 = vunpack.c.l.b16 %v354
    %v2300 = vunpack.c.l.b16 %v355
    %v2301 = vunpack.c.l.b16 %v356
    %v2302 = vunpack.c.l.b16 %v357
    %v2303 = vunpack.c.l.b16 %v358
    %v2304 = vunpack.c.l.b16 %v359
    %v2305 = vunpack.c.l.b16 %v360
    %v2306 = vunpack.c.l.b16 %v361
    %v2307 = vunpack.c.l.b16 %v362
    %v2308 = vunpack.c.l.b16 %v363
    %v2309 = vunpack.c.l.b16 %v364
    %v2310 = vunpack.c.l.b16 %v365
    %v2311 = vunpack.c.l.b16 %v366
    %v2312 = vunpack.c.l.b16 %v367
    %v2313 = vunpack.c.l.b16 %v368
    %v2314 = vunpack.c.l.b16 %v369
    %v2315 = vunpack.c.l.b16 %v370
    %v2316 = vunpack.c.l.b16 %v371
    %v2317 = vunpack.c.l.b16 %v372
    %v2318 = vunpack.c.l.b16 %v373
    %v2319 = vunpack.c.l.b16 %v374
    %v2320 = vunpack.c.l.b16 %v375
    %v2321 = vunpack.c.l.b16 %v376
    %v2322 = vunpack.c.l.b16 %v377
    %v2323 = vunpack.c.l.b16 %v378
    %v2324 = vunpack.c.l.b16 %v379
    %v2325 = vunpack.c.l.b16 %v380
    %v2326 = vunpack.c.l.b16 %v381
    %v2327 = vunpack.c.l.b16 %v382
    %v2328 = vunpack.c.l.b16 %v383
    %v2329 = vunpack.c.l.b16 %v384
    %v2330 = vunpack.c.l.b16 %v385
    %v2331 = vunpack.c.l.b16 %v386
    %v2332 = vunpack.c.l.b16 %v387
    %v2333 = vunpack.c.l.b16 %v388
    %v2334 = vunpack.c.l.b16 %v389
    %v2335 = vunpack.c.l.b16 %v390
    %v2336 = vunpack.c.l.b16 %v391
    %v2337 = vunpack.c.l.b16 %v392
    %v2338 = vunpack.c.l.b16 %v393
    %v2339 = vunpack.c.l.b16 %v394
    %v2340 = vunpack.c.l.b16 %v395
    %v2341 = vunpack.c.l.b16 %v396
    %v2342 = vunpack.c.l.b16 %v397
    %v2343 = vunpack.c.l.b16 %v398
    %v2344 = vunpack.c.l.b16 %v399
    %v2345 = vunpack.c.l.b16 %v400
    %v2346 = vunpack.c.l.b16 %v401
    %v2347 = vunpack.c.l.b16 %v402
    %v2348 = vunpack.c.l.b16 %v403
    %v2349 = vunpack.c.l.b16 %v404
    %v2350 = vunpack.c.l.b16 %v405
    %v2351 = vunpack.c.l.b16 %v406
    %v2352 = vunpack.c.l.b16 %v407
    %v2353 = vunpack.c.l.b16 %v408
    %v2354 = vunpack.c.l.b16 %v409
    %v2355 = vunpack.c.l.b16 %v410
    %v2356 = vunpack.c.l.b16 %v411
    %v2357 = vunpack.c.l.b16 %v412
    %v2358 = vunpack.c.l.b16 %v413
    %v2359 = vunpack.c.l.b16 %v414
    %v2360 = vunpack.c.l.b16 %v415
    %v2361 = vunpack.c.l.b16 %v416
    %v2362 = vunpack.c.l.b16 %v417
    %v2363 = vunpack.c.l.b16 %v418
    %v2364 = vunpack.c.l.b16 %v419
    %v2365 = vunpack.c.l.b16 %v420
    %v2366 = vunpack.c.l.b16 %v421
    %v2367 = vunpack.c.l.b16 %v422
    %v2368 = vunpack.c.l.b16 %v423
    %v2369 = vunpack.c.l.b16 %v424
    %v2370 = vunpack.c.l.b16 %v425
    %v2371 = vunpack.c.l.b16 %v426
    %v2372 = vunpack.c.l.b16 %v427
    %v2373 = vunpack.c.l.b16 %v428
    %v2374 = vunpack.c.l.b16 %v429
    %v2375 = vunpack.c.l.b16 %v430
    %v2376 = vunpack.c.l.b16 %v431
    %v2377 = vunpack.c.l.b16 %v432
    %v2378 = vunpack.c.l.b16 %v433
    %v2379 = vunpack.c.l.b16 %v434
    %v2380 = vunpack.c.l.b16 %v435
    %v2381 = vunpack.c.l.b16 %v436
    %v2382 = vunpack.c.l.b16 %v437
    %v2383 = vunpack.c.l.b16 %v438
    %v2384 = vunpack.c.l.b16 %v439
    %v2385 = vunpack.c.l.b16 %v440
    %v2386 = vunpack.c.l.b16 %v441
    %v2387 = vunpack.c.l.b16 %v442
    %v2388 = vunpack.c.l.b16 %v443
    %v2389 = vunpack.c.l.b16 %v444
    %v2390 = vunpack.c.l.b16 %v445
    %v2391 = vunpack.c.l.b16 %v446
    %v2392 = vunpack.c.l.b16 %v447
    %v2393 = vunpack.c.l.b16 %v448
    %v2394 = vunpack.c.l.b16 %v449
    %v2395 = vunpack.c.l.b16 %v450
    %v2396 = vunpack.c.l.b16 %v451
    %v2397 = vunpack.c.l.b16 %v452
    %v2398 = vunpack.c.l.b16 %v453
    %v2399 = vunpack.c.l.b16 %v454
    %v2400 = vunpack.c.l.b16 %v455
    %v2401 = vunpack.c.l.b16 %v456
    %v2402 = vunpack.c.l.b16 %v457
    %v2403 = vunpack.c.l.b16 %v458
    %v2404 = vunpack.c.l.b16 %v459
    %v2405 = vunpack.c.l.b16 %v460
    %v2406 = vunpack.c.l.b16 %v461
    %v2407 = vunpack.c.l.b16 %v462
    %v2408 = vunpack.c.l.b16 %v463
    %v2409 = vunpack.c.l.b16 %v464
    %v2410 = vunpack.c.l.b16 %v465
    %v2411 = vunpack.c.l.b16 %v466
    %v2412 = vunpack.c.l.b16 %v467
    %v2413 = vunpack.c.l.b16 %v468
    %v2414 = vunpack.c.l.b16 %v469
    %v2415 = vunpack.c.l.b16 %v470
    %v2416 = vunpack.c.l.b16 %v471
    %v2417 = vunpack.c.l.b16 %v472
    %v2418 = vunpack.c.l.b16 %v473
    %v2419 = vunpack.c.l.b16 %v474
    %v2420 = vunpack.c.l.b16 %v475
    %v2421 = vunpack.c.l.b16 %v476
    %v2422 = vunpack.c.l.b16 %v477
    %v2423 = vunpack.c.l.b16 %v478
    %v2424 = vunpack.c.l.b16 %v479
    %v2425 = vunpack.c.l.b16 %v480
    %v2426 = vunpack.c.l.b16 %v481
    %v2427 = vunpack.c.l.b16 %v482
    %v2428 = vunpack.c.l.b16 %v483
    %v2429 = vunpack.c.l.b16 %v484
    %v2430 = vunpack.c.l.b16 %v485
    %v2431 = vunpack.c.l.b16 %v486
    %v2432 = vunpack.c.l.b16 %v487
    %v2433 = vunpack.c.l.b16 %v488
    %v2434 = vunpack.c.l.b16 %v489
    %v2435 = vunpack.c.l.b16 %v490
    %v2436 = vunpack.c.l.b16 %v491
    %v2437 = vunpack.c.l.b16 %v492
    %v2438 = vunpack.c.l.b16 %v493
    %v2439 = vunpack.c.l.b16 %v494
    %v2440 = vunpack.c.l.b16 %v495
    %v2441 = vunpack.c.l.b16 %v496
    %v2442 = vunpack.c.l.b16 %v497
    %v2443 = vunpack.c.l.b16 %v498
    %v2444 = vunpack.c.l.b16 %v499
    %v2445 = vunpack.c.l.b16 %v500
    %v2446 = vunpack.c.l.b16 %v501
    %v2447 = vunpack.c.l.b16 %v502
    %v2448 = vunpack.c.l.b16 %v503
    %v2449 = vunpack.c.l.b16 %v504
    %v2450 = vunpack.c.l.b16 %v505
    %v2451 = vunpack.c.l.b16 %v506
    %v2452 = vunpack.c.l.b16 %v507
    %v2453 = vunpack.c.l.b16 %v508
    %v2454 = vunpack.c.l.b16 %v509
    %v2455 = vunpack.c.l.b16 %v510
    %v2456 = vunpack.c.l.b16 %v511
    %v2457 = vunpack.c.l.b16 %v512
    %v2458 = vunpack.c.l.b16 %v513
    %v2459 = vunpack.c.l.b16 %v514
    %v2460 = vunpack.c.l.b16 %v515
    %v2461 = vunpack.c.l.b16 %v516
    %v2462 = vunpack.c.l.b16 %v517
    %v2463 = vunpack.c.l.b16 %v518
    %v2464 = vunpack.c.l.b16 %v519
    %v2465 = vunpack.c.l.b16 %v520
    %v2466 = vunpack.c.l.b16 %v521
    %v2467 = vunpack.c.l.b16 %v522
    %v2468 = vunpack.c.l.b16 %v523
    %v2469 = vunpack.c.l.b16 %v524
    %v2470 = vunpack.c.l.b16 %v525
    %v2471 = vunpack.c.l.b16 %v526
    %v2472 = vunpack.c.l.b16 %v527
    %v2473 = vunpack.c.l.b16 %v528
    %v2474 = vunpack.c.l.b16 %v529
    %v2475 = vunpack.c.l.b16 %v530
    %v2476 = vunpack.c.l.b16 %v531
    %v2477 = vunpack.c.l.b16 %v532
    %v2478 = vunpack.c.l.b16 %v533
    %v2479 = vunpack.c.l.b16 %v534
    %v2480 = vunpack.c.l.b16 %v535
    %v2481 = vunpack.c.l.b16 %v536
    %v2482 = vunpack.c.l.b16 %v537
    %v2483 = vunpack.c.l.b16 %v538
    %v2484 = vunpack.c.l.b16 %v539
    %v2485 = vunpack.c.l.b16 %v540
    %v2486 = vunpack.c.l.b16 %v541
    %v2487 = vunpack.c.l.b16 %v542
    %v2488 = vunpack.c.l.b16 %v543
    %v2489 = vunpack.c.l.b16 %v544
    %v2490 = vunpack.c.l.b16 %v545
    %v2491 = vunpack.c.l.b16 %v546
    %v2492 = vunpack.c.l.b16 %v547
    %v2493 = vunpack.c.l.b16 %v548
    %v2494 = vunpack.c.l.b16 %v549
    %v2495 = vunpack.c.l.b16 %v550
    %v2496 = vunpack.c.l.b16 %v551
    %v2497 = vunpack.c.l.b16 %v552
    %v2498 = vunpack.c.l.b16 %v553
    %v2499 = vunpack.c.l.b16 %v554
    %v2500 = vunpack.c.l.b16 %v555
    %v2501 = vunpack.c.l.b16 %v556
    %v2502 = vunpack.c.l.b16 %v557
    %v2503 = vunpack.c.l.b16 %v558
    %v2504 = vunpack.c.l.b16 %v559
    %v2505 = vunpack.c.l.b16 %v560
    %v2506 = vunpack.c.l.b16 %v561
    %v2507 = vunpack.c.l.b16 %v562
    %v2508 = vunpack.c.l.b16 %v563
    %v2509 = vunpack.c.l.b16 %v564
    %v2510 = vunpack.c.l.b16 %v565
    %v2511 = vunpack.c.l.b16 %v566
    %v2512 = vunpack.c.l.b16 %v567
    %v2513 = vunpack.c.l.b16 %v568
    %v2514 = vunpack.c.l.b16 %v569
    %v2515 = vunpack.c.l.b16 %v570
    %v2516 = vunpack.c.l.b16 %v571
    %v2517 = vunpack.c.l.b16 %v572
    %v2518 = vunpack.c.l.b16 %v573
    %v2519 = vunpack.c.l.b16 %v574
    %v2520 = vunpack.c.l.b16 %v575
    %v2521 = vunpack.c.l.b16 %v576
    %v2522 = vunpack.c.l.b16 %v577
    %v2523 = vunpack.c.l.b16 %v578
    %v2524 = vunpack.c.l.b16 %v579
    %v2525 = vunpack.c.l.b16 %v580
    %v2526 = vunpack.c.l.b16 %v581
    %v2527 = vunpack.c.l.b16 %v582
    %v2528 = vunpack.c.l.b16 %v583
    %v2529 = vunpack.c.l.b16 %v584
    %v2530 = vunpack.c.l.b16 %v585
    %v2531 = vunpack.c.l.b16 %v586
    %v2532 = vunpack.c.l.b16 %v587
    %v2533 = vunpack.c.l.b16 %v588
    %v2534 = vunpack.c.l.b16 %v589
    %v2535 = vunpack.c.l.b16 %v590
    %v2536 = vunpack.c.l.b16 %v591
    %v2537 = vunpack.c.l.b16 %v592
    %v2538 = vunpack.c.l.b16 %v593
    %v2539 = vunpack.c.l.b16 %v594
    %v2540 = vunpack.c.l.b16 %v595
    %v2541 = vunpack.c.l.b16 %v596
    %v2542 = vunpack.c.l.b16 %v597
    %v2543 = vunpack.c.l.b16 %v598
    %v2544 = vunpack.c.l.b16 %v599
    %v2545 = vunpack.c.l.b16 %v600
    %v2546 = vunpack.c.l.b16 %v601
    %v2547 = vunpack.c.l.b16 %v602
    %v2548 = vunpack.c.l.b16 %v603
    %v2549 = vunpack.c.l.b16 %v604
    %v2550 = vunpack.c.l.b16 %v605
    %v2551 = vunpack.c.l.b16 %v606
    %v2552 = vunpack.c.l.b16 %v607
    %v2553 = vunpack.c.l.b16 %v608
    %v2554 = vunpack.c.l.b16 %v609
    %v2555 = vunpack.c.l.b16 %v610
    %v2556 = vunpack.c.l.b16 %v611
    %v2557 = vunpack.c.l.b16 %v612
    %v2558 = vunpack.c.l.b16 %v613
    %v2559 = vunpack.c.l.b16 %v614
    %v2560 = vunpack.c.l.b16 %v615
    %v2561 = vunpack.c.l.b16 %v616
    %v2562 = vunpack.c.l.b16 %v617
    %v2563 = vunpack.c.l.b16 %v618
    %v2564 = vunpack.c.l.b16 %v619
    %v2565 = vunpack.c.l.b16 %v620
    %v2566 = vunpack.c.l.b16 %v621
    %v2567 = vunpack.c.l.b16 %v622
    %v2568 = vunpack.c.l.b16 %v623
    %v2569 = vunpack.c.l.b16 %v624
    %v2570 = vunpack.c.l.b16 %v625
    %v2571 = vunpack.c.l.b16 %v626
    %v2572 = vunpack.c.l.b16 %v627
    %v2573 = vunpack.c.l.b16 %v628
    %v2574 = vunpack.c.l.b16 %v629
    %v2575 = vunpack.c.l.b16 %v630
    %v2576 = vunpack.c.l.b16 %v631
    %v2577 = vunpack.c.l.b16 %v632
    %v2578 = vunpack.c.l.b16 %v633
    %v2579 = vunpack.c.l.b16 %v634
    %v2580 = vunpack.c.l.b16 %v635
    %v2581 = vunpack.c.l.b16 %v636
    %v2582 = vunpack.c.l.b16 %v637
    %v2583 = vunpack.c.l.b16 %v638
    %v2584 = vunpack.c.l.b16 %v639
    %v2585 = vunpack.c.l.b16 %v640
    %v2586 = vunpack.c.l.b16 %v641
    %v2587 = vunpack.c.l.b16 %v642
    %v2588 = vunpack.c.l.b16 %v643
    %v2589 = vunpack.c.l.b16 %v644
    %v2590 = vunpack.c.l.b16 %v645
    %v2591 = vunpack.c.l.b16 %v646
    %v2592 = vunpack.c.l.b16 %v647
    %v2593 = vunpack.c.l.b16 %v648
    %v2594 = vunpack.c.l.b16 %v649
    %v2595 = vunpack.c.l.b16 %v650
    %v2596 = vunpack.c.l.b16 %v651
    %v2597 = vunpack.c.l.b16 %v652
    %v2598 = vunpack.c.l.b16 %v653
    %v2599 = vunpack.c.l.b16 %v654
    %v2600 = vunpack.c.l.b16 %v655
    %v2601 = vunpack.c.l.b16 %v656
    %v2602 = vunpack.c.l.b16 %v657
    %v2603 = vunpack.c.l.b16 %v658
    %v2604 = vunpack.c.l.b16 %v659
    %v2605 = vunpack.c.l.b16 %v660
    %v2606 = vunpack.c.l.b16 %v661
    %v2607 = vunpack.c.l.b16 %v662
    %v2608 = vunpack.c.l.b16 %v663
    %v2609 = vunpack.c.l.b16 %v664
    %v2610 = vunpack.c.l.b16 %v665
    %v2611 = vunpack.c.l.b16 %v666
    %v2612 = vunpack.c.l.b16 %v667
    %v2613 = vunpack.c.l.b16 %v668
    %v2614 = vunpack.c.l.b16 %v669
    %v2615 = vunpack.c.l.b16 %v670
    %v2616 = vunpack.c.l.b16 %v671
    %v2617 = vunpack.c.l.b16 %v672
    %v2618 = vunpack.c.l.b16 %v673
    %v2619 = vunpack.c.l.b16 %v674
    %v2620 = vunpack.c.l.b16 %v675
    %v2621 = vunpack.c.l.b16 %v676
    %v2622 = vunpack.c.l.b16 %v677
    %v2623 = vunpack.c.l.b16 %v678
    %v2624 = vunpack.c.l.b16 %v679
    %v2625 = vunpack.c.l.b16 %v680
    %v2626 = vunpack.c.l.b16 %v681
    %v2627 = vunpack.c.l.b16 %v682
    %v2628 = vunpack.c.l.b16 %v683
    %v2629 = vunpack.c.l.b16 %v684
    %v2630 = vunpack.c.l.b16 %v685
    %v2631 = vunpack.c.l.b16 %v686
    %v2632 = vunpack.c.l.b16 %v687
    %v2633 = vunpack.c.l.b16 %v688
    %v2634 = vunpack.c.l.b16 %v689
    %v2635 = vunpack.c.l.b16 %v690
    %v2636 = vunpack.c.l.b16 %v691
    %v2637 = vunpack.c.l.b16 %v692
    %v2638 = vunpack.c.l.b16 %v693
    %v2639 = vunpack.c.l.b16 %v694
    %v2640 = vunpack.c.l.b16 %v695
    %v2641 = vunpack.c.l.b16 %v696
    %v2642 = vunpack.c.l.b16 %v697
    %v2643 = vunpack.c.l.b16 %v698
    %v2644 = vunpack.c.l.b16 %v699
    %v2645 = vunpack.c.l.b16 %v700
    %v2646 = vunpack.c.l.b16 %v701
    %v2647 = vunpack.c.l.b16 %v702
    %v2648 = vunpack.c.l.b16 %v703
    %v2649 = vunpack.c.l.b16 %v704
    %v2650 = vunpack.c.l.b16 %v705
    %v2651 = vunpack.c.l.b16 %v706
    %v2652 = vunpack.c.l.b16 %v707
    %v2653 = vunpack.c.l.b16 %v708
    %v2654 = vunpack.c.l.b16 %v709
    %v2655 = vunpack.c.l.b16 %v710
    %v2656 = vunpack.c.l.b16 %v711
    %v2657 = vunpack.c.l.b16 %v712
    %v2658 = vunpack.c.l.b16 %v713
    %v2659 = vunpack.c.l.b16 %v714
    %v2660 = vunpack.c.l.b16 %v715
    %v2661 = vunpack.c.l.b16 %v716
    %v2662 = vunpack.c.l.b16 %v717
    %v2663 = vunpack.c.l.b16 %v718
    %v2664 = vunpack.c.l.b16 %v719
    %v2665 = vunpack.c.l.b16 %v720
    %v2666 = vunpack.c.l.b16 %v721
    %v2667 = vunpack.c.l.b16 %v722
    %v2668 = vunpack.c.l.b16 %v723
    %v2669 = vunpack.c.l.b16 %v724
    %v2670 = vunpack.c.l.b16 %v725
    %v2671 = vunpack.c.l.b16 %v726
    %v2672 = vunpack.c.l.b16 %v727
    %v2673 = vunpack.c.l.b16 %v728
    %v2674 = vunpack.c.l.b16 %v729
    %v2675 = vunpack.c.l.b16 %v730
    %v2676 = vunpack.c.l.b16 %v731
    %v2677 = vunpack.c.l.b16 %v732
    %v2678 = vunpack.c.l.b16 %v733
    %v2679 = vunpack.c.l.b16 %v734
    %v2680 = vunpack.c.l.b16 %v735
    %v2681 = vunpack.c.l.b16 %v736
    %v2682 = vunpack.c.l.b16 %v737
    %v2683 = vunpack.c.l.b16 %v738
    %v2684 = vunpack.c.l.b16 %v739
    %v2685 = vunpack.c.l.b16 %v740
    %v2686 = vunpack.c.l.b16 %v741
    %v2687 = vunpack.c.l.b16 %v742
    %v2688 = vunpack.c.l.b16 %v743
    %v2689 = vunpack.c.l.b16 %v744
    %v2690 = vunpack.c.l.b16 %v745
    %v2691 = vunpack.c.l.b16 %v746
    %v2692 = vunpack.c.l.b16 %v747
    %v2693 = vunpack.c.l.b16 %v748
    %v2694 = vunpack.c.l.b16 %v749
    %v2695 = vunpack.c.l.b16 %v750
    %v2696 = vunpack.c.l.b16 %v751
    %v2697 = vunpack.c.l.b16 %v752
    %v2698 = vunpack.c.l.b16 %v753
    %v2699 = vunpack.c.l.b16 %v754
    %v2700 = vunpack.c.l.b16 %v755
    %v2701 = vunpack.c.l.b16 %v756
    %v2702 = vunpack.c.l.b16 %v757
    %v2703 = vunpack.c.l.b16 %v758
    %v2704 = vunpack.c.l.b16 %v759
    %v2705 = vunpack.c.l.b16 %v760
    %v2706 = vunpack.c.l.b16 %v761
    %v2707 = vunpack.c.l.b16 %v762
    %v2708 = vunpack.c.l.b16 %v763
    %v2709 = vunpack.c.l.b16 %v764
    %v2710 = vunpack.c.l.b16 %v765
    %v2711 = vunpack.c.l.b16 %v766
    %v2712 = vunpack.c.l.b16 %v767
    %v2713 = vunpack.c.l.b16 %v768
    %v2714 = vunpack.c.l.b16 %v769
    %v2715 = vunpack.c.l.b16 %v770
    %v2716 = vunpack.c.l.b16 %v771
    %v2717 = vunpack.c.l.b16 %v772
    %v2718 = vunpack.c.l.b16 %v773
    %v2719 = vunpack.c.l.b16 %v774
    %v2720 = vunpack.c.l.b16 %v775
    %v2721 = vunpack.c.l.b16 %v776
    %v2722 = vunpack.c.l.b16 %v777
    %v2723 = vunpack.c.l.b16 %v778
    %v2724 = vunpack.c.l.b16 %v779
    %v2725 = vunpack.c.l.b16 %v780
    %v2726 = vunpack.c.l.b16 %v781
    %v2727 = vunpack.c.l.b16 %v782
    %v2728 = vunpack.c.l.b16 %v783
    %v2729 = vunpack.c.l.b16 %v784
    %v2730 = vunpack.c.l.b16 %v785
    %v2731 = vunpack.c.l.b16 %v786
    %v2732 = vunpack.c.l.b16 %v787
    %v2733 = vunpack.c.l.b16 %v788
    %v2734 = vunpack.c.l.b16 %v789
    %v2735 = vunpack.c.l.b16 %v790
    %v2736 = vunpack.c.l.b16 %v791
    %v2737 = vunpack.c.l.b16 %v792
    %v2738 = vunpack.c.l.b16 %v793
    %v2739 = vunpack.c.l.b16 %v794
    %v2740 = vunpack.c.l.b16 %v795
    %v2741 = vunpack.c.l.b16 %v796
    %v2742 = vunpack.c.l.b16 %v797
    %v2743 = vunpack.c.l.b16 %v798
    %v2744 = vunpack.c.l.b16 %v799
    %v2745 = vunpack.c.l.b16 %v800
    %v2746 = vunpack.c.l.b16 %v801
    %v2747 = vunpack.c.l.b16 %v802
    %v2748 = vunpack.c.l.b16 %v803
    %v2749 = vunpack.c.l.b16 %v804
    %v2750 = vunpack.c.l.b16 %v805
    %v2751 = vunpack.c.l.b16 %v806
    %v2752 = vunpack.c.l.b16 %v807
    %v2753 = vunpack.c.l.b16 %v808
    %v2754 = vunpack.c.l.b16 %v809
    %v2755 = vunpack.c.l.b16 %v810
    %v2756 = vunpack.c.l.b16 %v811
    %v2757 = vunpack.c.l.b16 %v812
    %v2758 = vunpack.c.l.b16 %v813
    %v2759 = vunpack.c.l.b16 %v814
    %v2760 = vunpack.c.l.b16 %v815
    %v2761 = vunpack.c.l.b16 %v816
    %v2762 = vunpack.c.l.b16 %v817
    %v2763 = vunpack.c.l.b16 %v818
    %v2764 = vunpack.c.l.b16 %v819
    %v2765 = vunpack.c.l.b16 %v820
    %v2766 = vunpack.c.l.b16 %v821
    %v2767 = vunpack.c.l.b16 %v822
    %v2768 = vunpack.c.l.b16 %v823
    %v2769 = vunpack.c.l.b16 %v824
    %v2770 = vunpack.c.l.b16 %v825
    %v2771 = vunpack.c.l.b16 %v826
    %v2772 = vunpack.c.l.b16 %v827
    %v2773 = vunpack.c.l.b16 %v828
    %v2774 = vunpack.c.l.b16 %v829
    %v2775 = vunpack.c.l.b16 %v830
    %v2776 = vunpack.c.l.b16 %v831
    %v2777 = vunpack.c.l.b16 %v832
    %v2778 = vunpack.c.l.b16 %v833
    %v2779 = vunpack.c.l.b16 %v834
    %v2780 = vunpack.c.l.b16 %v835
    %v2781 = vunpack.c.l.b16 %v836
    %v2782 = vunpack.c.l.b16 %v837
    %v2783 = vunpack.c.l.b16 %v838
    %v2784 = vunpack.c.l.b16 %v839
    %v2785 = vunpack.c.l.b16 %v840
    %v2786 = vunpack.c.l.b16 %v841
    %v2787 = vunpack.c.l.b16 %v842
    %v2788 = vunpack.c.l.b16 %v843
    %v2789 = vunpack.c.l.b16 %v844
    %v2790 = vunpack.c.l.b16 %v845
    %v2791 = vunpack.c.l.b16 %v846
    %v2792 = vunpack.c.l.b16 %v847
    %v2793 = vunpack.c.l.b16 %v848
    %v2794 = vunpack.c.l.b16 %v849
    %v2795 = vunpack.c.l.b16 %v850
    %v2796 = vunpack.c.l.b16 %v851
    %v2797 = vunpack.c.l.b16 %v852
    %v2798 = vunpack.c.l.b16 %v853
    %v2799 = vunpack.c.l.b16 %v854
    %v2800 = vunpack.c.l.b16 %v855
    %v2801 = vunpack.c.l.b16 %v856
    %v2802 = vunpack.c.l.b16 %v857
    %v2803 = vunpack.c.l.b16 %v858
    %v2804 = vunpack.c.l.b16 %v859
    %v2805 = vunpack.c.l.b16 %v860
    %v2806 = vunpack.c.l.b16 %v861
    %v2807 = vunpack.c.l.b16 %v862
    %v2808 = vunpack.c.l.b16 %v863
    %v2809 = vunpack.c.l.b16 %v864
    %v2810 = vunpack.c.l.b16 %v865
    %v2811 = vunpack.c.l.b16 %v866
    %v2812 = vunpack.c.l.b16 %v867
    %v2813 = vunpack.c.l.b16 %v868
    %v2814 = vunpack.c.l.b16 %v869
    %v2815 = vunpack.c.l.b16 %v870
    %v2816 = vunpack.c.l.b16 %v871
    %v2817 = vunpack.c.l.b16 %v872
    %v2818 = vunpack.c.l.b16 %v873
    %v2819 = vunpack.c.l.b16 %v874
    %v2820 = vunpack.c.l.b16 %v875
    %v2821 = vunpack.c.l.b16 %v876
    %v2822 = vunpack.c.l.b16 %v877
    %v2823 = vunpack.c.l.b16 %v878
    %v2824 = vunpack.c.l.b16 %v879
    %v2825 = vunpack.c.l.b16 %v880
    %v2826 = vunpack.c.l.b16 %v881
    %v2827 = vunpack.c.l.b16 %v882
    %v2828 = vunpack.c.l.b16 %v883
    %v2829 = vunpack.c.l.b16 %v884
    %v2830 = vunpack.c.l.b16 %v885
    %v2831 = vunpack.c.l.b16 %v886
    %v2832 = vunpack.c.l.b16 %v887
    %v2833 = vunpack.c.l.b16 %v888
    %v2834 = vunpack.c.l.b16 %v889
    %v2835 = vunpack.c.l.b16 %v890
    %v2836 = vunpack.c.l.b16 %v891
    %v2837 = vunpack.c.l.b16 %v892
    %v2838 = vunpack.c.l.b16 %v893
    %v2839 = vunpack.c.l.b16 %v894
    %v2840 = vunpack.c.l.b16 %v895
    %v2841 = vunpack.c.l.b16 %v896
    %v2842 = vunpack.c.l.b16 %v897
    %v2843 = vunpack.c.l.b16 %v898
    %v2844 = vunpack.c.l.b16 %v899
    %v2845 = vunpack.c.l.b16 %v900
    %v2846 = vunpack.c.l.b16 %v901
    %v2847 = vunpack.c.l.b16 %v902
    %v2848 = vunpack.c.l.b16 %v903
    %v2849 = vunpack.c.l.b16 %v904
    %v2850 = vunpack.c.l.b16 %v905
    %v2851 = vunpack.c.l.b16 %v906
    %v2852 = vunpack.c.l.b16 %v907
    %v2853 = vunpack.c.l.b16 %v908
    %v2854 = vunpack.c.l.b16 %v909
    %v2855 = vunpack.c.l.b16 %v910
    %v2856 = vunpack.c.l.b16 %v911
    %v2857 = vunpack.c.l.b16 %v912
    %v2858 = vunpack.c.l.b16 %v913
    %v2859 = vunpack.c.l.b16 %v914
    %v2860 = vunpack.c.l.b16 %v915
    %v2861 = vunpack.c.l.b16 %v916
    %v2862 = vunpack.c.l.b16 %v917
    %v2863 = vunpack.c.l.b16 %v918
    %v2864 = vunpack.c.l.b16 %v919
    %v2865 = vunpack.c.l.b16 %v920
    %v2866 = vunpack.c.l.b16 %v921
    %v2867 = vunpack.c.l.b16 %v922
    %v2868 = vunpack.c.l.b16 %v923
    %v2869 = vunpack.c.l.b16 %v924
    %v2870 = vunpack.c.l.b16 %v925
    %v2871 = vunpack.c.l.b16 %v926
    %v2872 = vunpack.c.l.b16 %v927
    %v2873 = vunpack.c.l.b16 %v928
    %v2874 = vunpack.c.l.b16 %v929
    %v2875 = vunpack.c.l.b16 %v930
    %v2876 = vunpack.c.l.b16 %v931
    %v2877 = vunpack.c.l.b16 %v932
    %v2878 = vunpack.c.l.b16 %v933
    %v2879 = vunpack.c.l.b16 %v934
    %v2880 = vunpack.c.l.b16 %v935
    %v2881 = vunpack.c.l.b16 %v936
    %v2882 = vunpack.c.l.b16 %v937
    %v2883 = vunpack.c.l.b16 %v938
    %v2884 = vunpack.c.l.b16 %v939
    %v2885 = vunpack.c.l.b16 %v940
    %v2886 = vunpack.c.l.b16 %v941
    %v2887 = vunpack.c.l.b16 %v942
    %v2888 = vunpack.c.l.b16 %v943
    %v2889 = vunpack.c.l.b16 %v944
    %v2890 = vunpack.c.l.b16 %v945
    %v2891 = vunpack.c.l.b16 %v946
    %v2892 = vunpack.c.l.b16 %v947
    %v2893 = vunpack.c.l.b16 %v948
    %v2894 = vunpack.c.l.b16 %v949
    %v2895 = vunpack.c.l.b16 %v950
    %v2896 = vunpack.c.l.b16 %v951
    %v2897 = vunpack.c.l.b16 %v952
    %v2898 = vunpack.c.l.b16 %v953
    %v2899 = vunpack.c.l.b16 %v954
    %v2900 = vunpack.c.l.b16 %v955
    %v2901 = vunpack.c.l.b16 %v956
    %v2902 = vunpack.c.l.b16 %v957
    %v2903 = vunpack.c.l.b16 %v958
    %v2904 = vunpack.c.l.b16 %v959
    %v2905 = vunpack.c.l.b16 %v960
    %v2906 = vunpack.c.l.b16 %v961
    %v2907 = vunpack.c.l.b16 %v962
    %v2908 = vunpack.c.l.b16 %v963
    %v2909 = vunpack.c.l.b16 %v964
    %v2910 = vunpack.c.l.b16 %v965
    %v2911 = vunpack.c.l.b16 %v966
    %v2912 = vunpack.c.l.b16 %v967
    %v2913 = vunpack.c.l.b16 %v968
    %v2914 = vunpack.c.l.b16 %v969
    %v2915 = vunpack.c.l.b16 %v970
    %v2916 = vunpack.c.l.b16 %v971
    %v2917 = vunpack.c.l.b16 %v972
    %v2918 = vunpack.c.l.b16 %v973
    %v2919 = vunpack.c.l.b16 %v974
    %v2920 = vunpack.c.l.b16 %v975
    %v2921 = vunpack.c.l.b16 %v976
    %v2922 = vunpack.c.l.b16 %v977
    %v2923 = vunpack.c.l.b16 %v978
    %v2924 = vunpack.c.l.b16 %v979
    %v2925 = vunpack.c.l.b16 %v980
    %v2926 = vunpack.c.l.b16 %v981
    %v2927 = vunpack.c.l.b16 %v982
    %v2928 = vunpack.c.l.b16 %v983
    %v2929 = vunpack.c.l.b16 %v984
    %v2930 = vunpack.c.l.b16 %v985
    %v2931 = vunpack.c.l.b16 %v986
    %v2932 = vunpack.c.l.b16 %v987
    %v2933 = vunpack.c.l.b16 %v988
    %v2934 = vunpack.c.l.b16 %v989
    %v2935 = vunpack.c.l.b16 %v990
    %v2936 = vunpack.c.l.b16 %v991
    %v2937 = vunpack.c.l.b16 %v992
    %v2938 = vunpack.c.l.b16 %v993
    %v2939 = vunpack.c.l.b16 %v994
    %v2940 = vunpack.c.l.b16 %v995
    %v2941 = vunpack.c.l.b16 %v996
    %v2942 = vunpack.c.l.b16 %v997
    %v2943 = vunpack.c.l.b16 %v998
    %v2944 = vunpack.c.l.b16 %v999
    %v2945 = vunpack.c.l.b16 %v1000
    %v2946 = vunpack.c.l.b16 %v1001
    %v2947 = vunpack.c.l.b16 %v1002
    %v2948 = vunpack.c.l.b16 %v1003
    %v2949 = vunpack.c.l.b16 %v1004
    %v2950 = vunpack.c.l.b16 %v1005
    %v2951 = vunpack.c.l.b16 %v1006
    %v2952 = vunpack.c.l.b16 %v1007
    %v2953 = vunpack.c.l.b16 %v1008
    %v2954 = vunpack.c.l.b16 %v1009
    %v2955 = vunpack.c.l.b16 %v1010
    %v2956 = vunpack.c.l.b16 %v1011
    %v2957 = vunpack.c.l.b16 %v1012
    %v2958 = vunpack.c.l.b16 %v1013
    %v2959 = vunpack.c.l.b16 %v1014
    %v2960 = vunpack.c.l.b16 %v1015
    %v2961 = vunpack.c.l.b16 %v1016
    %v2962 = vunpack.c.l.b16 %v1017
    %v2963 = vunpack.c.l.b16 %v1018
    %v2964 = vunpack.c.l.b16 %v1019
    %v2965 = vunpack.c.l.b16 %v1020
    %v2966 = vunpack.c.l.b16 %v1021
    %v2967 = vunpack.c.l.b16 %v1022
    %v2968 = vunpack.c.l.b16 %v1023
    %v2969 = vunpack.c.l.b16 %v1024
    %v2970 = vunpack.c.l.b16 %v1025
    %v2971 = vunpack.c.l.b16 %v1026
    %v2972 = vunpack.c.l.b16 %v1027
    %v2973 = vunpack.c.l.b16 %v1028
    %v2974 = vunpack.c.l.b16 %v1029
    %v2975 = vunpack.c.l.b16 %v1030
    %v2976 = vunpack.c.l.b16 %v1031
    %v2977 = vunpack.c.l.b16 %v1032
    %v2978 = vunpack.c.l.b16 %v1033
    %v2979 = vunpack.c.l.b16 %v1034
    %v2980 = vunpack.c.l.b16 %v1035
    %v2981 = vunpack.c.l.b16 %v1036
    %v2982 = vunpack.c.l.b16 %v1037
    %v2983 = vunpack.c.l.b16 %v1038
    %v2984 = vunpack.c.l.b16 %v1039
    %v2985 = vunpack.c.l.b16 %v1040
    %v2986 = vunpack.c.l.b16 %v1041
    %v2987 = vunpack.c.l.b16 %v1042
    %v2988 = vunpack.c.l.b16 %v1043
    %v2989 = vunpack.c.l.b16 %v1044
    %v2990 = vunpack.c.l.b16 %v1045
    %v2991 = vunpack.c.l.b16 %v1046
    %v2992 = vunpack.c.l.b16 %v1047
    %v2993 = vunpack.c.l.b16 %v1048
    %v2994 = vunpack.c.l.b16 %v1049
    %v2995 = vunpack.c.l.b16 %v1050
    %v2996 = vunpack.c.l.b16 %v1051
    %v2997 = vunpack.c.l.b16 %v1052
    %v2998 = vunpack.c.l.b16 %v1053
    %v2999 = vunpack.c.l.b16 %v1054
    %v3000 = vunpack.c.l.b16 %v1055
    %v3001 = vunpack.c.l.b16 %v1056
    %v3002 = vunpack.c.l.b16 %v1057
    %v3003 = vunpack.c.l.b16 %v1058
    %v3004 = vunpack.c.l.b16 %v1059
    %v3005 = vunpack.c.l.b16 %v1060
    %v3006 = vunpack.c.l.b16 %v1061
    %v3007 = vunpack.c.l.b16 %v1062
    %v3008 = vunpack.c.l.b16 %v1063
    %v3009 = vunpack.c.l.b16 %v1064
    %v3010 = vunpack.c.l.b16 %v1065
    %v3011 = vunpack.c.l.b16 %v1066
    %v3012 = vunpack.c.l.b16 %v1067
    %v3013 = vunpack.c.l.b16 %v1068
    %v3014 = vunpack.c.l.b16 %v1069
    %v3015 = vunpack.c.l.b16 %v1070
    %v3016 = vunpack.c.l.b16 %v1071
    %v3017 = vunpack.c.l.b16 %v1072
    %v3018 = vunpack.c.l.b16 %v1073
    %v3019 = vunpack.c.l.b16 %v1074
    %v3020 = vunpack.c.l.b16 %v1075
    %v3021 = vunpack.c.l.b16 %v1076
    %v3022 = vunpack.c.l.b16 %v1077
    %v3023 = vunpack.c.l.b16 %v1078
    %v3024 = vunpack.c.l.b16 %v1079
    %v3025 = vunpack.c.l.b16 %v1080
    %v3026 = vunpack.c.l.b16 %v1081
    %v3027 = vunpack.c.l.b16 %v1082
    %v3028 = vunpack.c.l.b16 %v1083
    %v3029 = vunpack.c.l.b16 %v1084
    %v3030 = vunpack.c.l.b16 %v1085
    %v3031 = vunpack.c.l.b16 %v1086
    %v3032 = vunpack.c.l.b16 %v1087
    %v3033 = vunpack.c.l.b16 %v1088
    %v3034 = vunpack.c.l.b16 %v1089
    %v3035 = vunpack.c.l.b16 %v1090
    %v3036 = vunpack.c.l.b16 %v1091
    %v3037 = vunpack.c.l.b16 %v1092
    %v3038 = vunpack.c.l.b16 %v1093
    %v3039 = vunpack.c.l.b16 %v1094
    %v3040 = vunpack.c.l.b16 %v1095
    %v3041 = vunpack.c.l.b16 %v1096
    %v3042 = vunpack.c.l.b16 %v1097
    %v3043 = vunpack.c.l.b16 %v1098
    %v3044 = vunpack.c.l.b16 %v1099
    %v3045 = vunpack.c.l.b16 %v1100
    %v3046 = vunpack.c.l.b16 %v1101
    %v3047 = vunpack.c.l.b16 %v1102
    %v3048 = vunpack.c.l.b16 %v1103
    %v3049 = vunpack.c.l.b16 %v1104
    %v3050 = vunpack.c.l.b16 %v1105
    %v3051 = vunpack.c.l.b16 %v1106
    %v3052 = vunpack.c.l.b16 %v1107
    %v3053 = vunpack.c.l.b16 %v1108
    %v3054 = vunpack.c.l.b16 %v1109
    %v3055 = vunpack.c.l.b16 %v1110
    %v3056 = vunpack.c.l.b16 %v1111
    %v3057 = vunpack.c.l.b16 %v1112
    %v3058 = vunpack.c.l.b16 %v1113
    %v3059 = vunpack.c.l.b16 %v1114
    %v3060 = vunpack.c.l.b16 %v1115
    %v3061 = vunpack.c.l.b16 %v1116
    %v3062 = vunpack.c.l.b16 %v1117
    %v3063 = vunpack.c.l.b16 %v1118
    %v3064 = vunpack.c.l.b16 %v1119
    %v3065 = vunpack.c.l.b16 %v1120
    %v3066 = vunpack.c.l.b16 %v1121
    %v3067 = vunpack.c.l.b16 %v1122
    %v3068 = vunpack.c.l.b16 %v1123
    %v3069 = vunpack.c.l.b16 %v1124
    %v3070 = vunpack.c.l.b16 %v1125
    %v3071 = vunpack.c.l.b16 %v1126
    %v3072 = vunpack.c.l.b16 %v1127
    %v3073 = vunpack.c.l.b16 %v1128
    %v3074 = vunpack.c.l.b16 %v1129
    %v3075 = vunpack.c.l.b16 %v1130
    %v3076 = vunpack.c.l.b16 %v1131
    %v3077 = vunpack.c.l.b16 %v1132
    %v3078 = vunpack.c.l.b16 %v1133
    %v3079 = vunpack.c.l.b16 %v1134
    %v3080 = vunpack.c.l.b16 %v1135
    %v3081 = vunpack.c.l.b16 %v1136
    %v3082 = vunpack.c.l.b16 %v1137
    %v3083 = vunpack.c.l.b16 %v1138
    %v3084 = vunpack.c.l.b16 %v1139
    %v3085 = vunpack.c.l.b16 %v1140
    %v3086 = vunpack.c.l.b16 %v1141
    %v3087 = vunpack.c.l.b16 %v1142
    %v3088 = vunpack.c.l.b16 %v1143
    %v3089 = vunpack.c.l.b16 %v1144
    %v3090 = vunpack.c.l.b16 %v1145
    %v3091 = vunpack.c.l.b16 %v1146
    %v3092 = vunpack.c.l.b16 %v1147
    %v3093 = vunpack.c.l.b16 %v1148
    %v3094 = vunpack.c.l.b16 %v1149
    %v3095 = vunpack.c.l.b16 %v1150
    %v3096 = vunpack.c.l.b16 %v1151
    %v3097 = vunpack.c.l.b16 %v1152
    %v3098 = vunpack.c.l.b16 %v1153
    %v3099 = vunpack.c.l.b16 %v1154
    %v3100 = vunpack.c.l.b16 %v1155
    %v3101 = vunpack.c.l.b16 %v1156
    %v3102 = vunpack.c.l.b16 %v1157
    %v3103 = vunpack.c.l.b16 %v1158
    %v3104 = vunpack.c.l.b16 %v1159
    %v3105 = vunpack.c.l.b16 %v1160
    %v3106 = vunpack.c.l.b16 %v1161
    %v3107 = vunpack.c.l.b16 %v1162
    %v3108 = vunpack.c.l.b16 %v1163
    %v3109 = vunpack.c.l.b16 %v1164
    %v3110 = vunpack.c.l.b16 %v1165
    %v3111 = vunpack.c.l.b16 %v1166
    %v3112 = vunpack.c.l.b16 %v1167
    %v3113 = vunpack.c.l.b16 %v1168
    %v3114 = vunpack.c.l.b16 %v1169
    %v3115 = vunpack.c.l.b16 %v1170
    %v3116 = vunpack.c.l.b16 %v1171
    %v3117 = vunpack.c.l.b16 %v1172
    %v3118 = vunpack.c.l.b16 %v1173
    %v3119 = vunpack.c.l.b16 %v1174
    %v3120 = vunpack.c.l.b16 %v1175
    %v3121 = vunpack.c.l.b16 %v1176
    %v3122 = vunpack.c.l.b16 %v1177
    %v3123 = vunpack.c.l.b16 %v1178
    %v3124 = vunpack.c.l.b16 %v1179
    %v3125 = vunpack.c.l.b16 %v1180
    %v3126 = vunpack.c.l.b16 %v1181
    %v3127 = vunpack.c.l.b16 %v1182
    %v3128 = vunpack.c.l.b16 %v1183
    %v3129 = vunpack.c.l.b16 %v1184
    %v3130 = vunpack.c.l.b16 %v1185
    %v3131 = vunpack.c.l.b16 %v1186
    %v3132 = vunpack.c.l.b16 %v1187
    %v3133 = vunpack.c.l.b16 %v1188
    %v3134 = vunpack.c.l.b16 %v1189
    %v3135 = vunpack.c.l.b16 %v1190
    %v3136 = vunpack.c.l.b16 %v1191
    %v3137 = vunpack.c.l.b16 %v1192
    %v3138 = vunpack.c.l.b16 %v1193
    %v3139 = vunpack.c.l.b16 %v1194
    %v3140 = vunpack.c.l.b16 %v1195
    %v3141 = vunpack.c.l.b16 %v1196
    %v3142 = vunpack.c.l.b16 %v1197
    %v3143 = vunpack.c.l.b16 %v1198
    %v3144 = vunpack.c.l.b16 %v1199
    %v3145 = vunpack.c.l.b16 %v1200
    %v3146 = vunpack.c.l.b16 %v1201
    %v3147 = vunpack.c.l.b16 %v1202
    %v3148 = vunpack.c.l.b16 %v1203
    %v3149 = vunpack.c.l.b16 %v1204
    %v3150 = vpack.c.b16 %v2182, %v2181
    %v3151 = vpack.c.b16 %v2184, %v2183
    %v3152 = vpack.c.b16 %v2186, %v2185
    %v3153 = vpack.c.b16 %v2188, %v2187
    %v3154 = vpack.c.b16 %v2190, %v2189
    %v3155 = vpack.c.b16 %v2192, %v2191
    %v3156 = vpack.c.b16 %v2194, %v2193
    %v3157 = vpack.c.b16 %v2196, %v2195
    %v3158 = vpack.c.b16 %v2198, %v2197
    %v3159 = vpack.c.b16 %v2200, %v2199
    %v3160 = vpack.c.b16 %v2202, %v2201
    %v3161 = vpack.c.b16 %v2204, %v2203
    %v3162 = vpack.c.b16 %v2206, %v2205
    %v3163 = vpack.c.b16 %v2208, %v2207
    %v3164 = vpack.c.b16 %v2210, %v2209
    %v3165 = vpack.c.b16 %v2212, %v2211
    %v3166 = vpack.c.b16 %v2214, %v2213
    %v3167 = vpack.c.b16 %v2216, %v2215
    %v3168 = vpack.c.b16 %v2218, %v2217
    %v3169 = vpack.c.b16 %v2220, %v2219
    %v3170 = vpack.c.b16 %v2222, %v2221
    %v3171 = vpack.c.b16 %v2224, %v2223
    %v3172 = vpack.c.b16 %v2226, %v2225
    %v3173 = vpack.c.b16 %v2228, %v2227
    %v3174 = vpack.c.b16 %v2230, %v2229
    %v3175 = vpack.c.b16 %v2232, %v2231
    %v3176 = vpack.c.b16 %v2234, %v2233
    %v3177 = vpack.c.b16 %v2236, %v2235
    %v3178 = vpack.c.b16 %v2238, %v2237
    %v3179 = vpack.c.b16 %v2240, %v2239
    %v3180 = vpack.c.b16 %v2242, %v2241
    %v3181 = vpack.c.b16 %v2244, %v2243
    %v3182 = vpack.c.b16 %v2246, %v2245
    %v3183 = vpack.c.b16 %v2248, %v2247
    %v3184 = vpack.c.b16 %v2250, %v2249
    %v3185 = vpack.c.b16 %v2252, %v2251
    %v3186 = vpack.c.b16 %v2254, %v2253
    %v3187 = vpack.c.b16 %v2256, %v2255
    %v3188 = vpack.c.b16 %v2258, %v2257
    %v3189 = vpack.c.b16 %v2260, %v2259
    %v3190 = vpack.c.b16 %v2262, %v2261
    %v3191 = vpack.c.b16 %v2264, %v2263
    %v3192 = vpack.c.b16 %v2266, %v2265
    %v3193 = vpack.c.b16 %v2268, %v2267
    %v3194 = vpack.c.b16 %v2270, %v2269
    %v3195 = vpack.c.b16 %v2272, %v2271
    %v3196 = vpack.c.b16 %v2274, %v2273
    %v3197 = vpack.c.b16 %v2276, %v2275
    %v3198 = vpack.c.b16 %v2278, %v2277
    %v3199 = vpack.c.b16 %v2280, %v2279
    %v3200 = vpack.c.b16 %v2282, %v2281
    %v3201 = vpack.c.b16 %v2284, %v2283
    %v3202 = vpack.c.b16 %v2286, %v2285
    %v3203 = vpack.c.b16 %v2288, %v2287
    %v3204 = vpack.c.b16 %v2290, %v2289
    %v3205 = vpack.c.b16 %v2292, %v2291
    %v3206 = vpack.c.b16 %v2294, %v2293
    %v3207 = vpack.c.b16 %v2296, %v2295
    %v3208 = vpack.c.b16 %v2298, %v2297
    %v3209 = vpack.c.b16 %v2300, %v2299
    %v3210 = vpack.c.b16 %v2302, %v2301
    %v3211 = vpack.c.b16 %v2304, %v2303
    %v3212 = vpack.c.b16 %v2306, %v2305
    %v3213 = vpack.c.b16 %v2308, %v2307
    %v3214 = vpack.c.b16 %v2310, %v2309
    %v3215 = vpack.c.b16 %v2312, %v2311
    %v3216 = vpack.c.b16 %v2314, %v2313
    %v3217 = vpack.c.b16 %v2316, %v2315
    %v3218 = vpack.c.b16 %v2318, %v2317
    %v3219 = vpack.c.b16 %v2320, %v2319
    %v3220 = vpack.c.b16 %v2322, %v2321
    %v3221 = vpack.c.b16 %v2324, %v2323
    %v3222 = vpack.c.b16 %v2326, %v2325
    %v3223 = vpack.c.b16 %v2328, %v2327
    %v3224 = vpack.c.b16 %v2330, %v2329
    %v3225 = vpack.c.b16 %v2332, %v2331
    %v3226 = vpack.c.b16 %v2334, %v2333
    %v3227 = vpack.c.b16 %v2336, %v2335
    %v3228 = vpack.c.b16 %v2338, %v2337
    %v3229 = vpack.c.b16 %v2340, %v2339
    %v3230 = vpack.c.b16 %v2342, %v2341
    %v3231 = vpack.c.b16 %v2344, %v2343
    %v3232 = vpack.c.b16 %v2346, %v2345
    %v3233 = vpack.c.b16 %v2348, %v2347
    %v3234 = vpack.c.b16 %v2350, %v2349
    %v3235 = vpack.c.b16 %v2352, %v2351
    %v3236 = vpack.c.b16 %v2354, %v2353
    %v3237 = vpack.c.b16 %v2356, %v2355
    %v3238 = vpack.c.b16 %v2358, %v2357
    %v3239 = vpack.c.b16 %v2360, %v2359
    %v3240 = vpack.c.b16 %v2362, %v2361
    %v3241 = vpack.c.b16 %v2364, %v2363
    %v3242 = vpack.c.b16 %v2366, %v2365
    %v3243 = vpack.c.b16 %v2368, %v2367
    %v3244 = vpack.c.b16 %v2370, %v2369
    %v3245 = vpack.c.b16 %v2372, %v2371
    %v3246 = vpack.c.b16 %v2374, %v2373
    %v3247 = vpack.c.b16 %v2376, %v2375
    %v3248 = vpack.c.b16 %v2378, %v2377
    %v3249 = vpack.c.b16 %v2380, %v2379
    %v3250 = vpack.c.b16 %v2382, %v2381
    %v3251 = vpack.c.b16 %v2384, %v2383
    %v3252 = vpack.c.b16 %v2386, %v2385
    %v3253 = vpack.c.b16 %v2388, %v2387
    %v3254 = vpack.c.b16 %v2390, %v2389
    %v3255 = vpack.c.b16 %v2392, %v2391
    %v3256 = vpack.c.b16 %v2394, %v2393
    %v3257 = vpack.c.b16 %v2396, %v2395
    %v3258 = vpack.c.b16 %v2398, %v2397
    %v3259 = vpack.c.b16 %v2400, %v2399
    %v3260 = vpack.c.b16 %v2402, %v2401
    %v3261 = vpack.c.b16 %v2404, %v2403
    %v3262 = vpack.c.b16 %v2406, %v2405
    %v3263 = vpack.c.b16 %v2408, %v2407
    %v3264 = vpack.c.b16 %v2410, %v2409
    %v3265 = vpack.c.b16 %v2412, %v2411
    %v3266 = vpack.c.b16 %v2414, %v2413
    %v3267 = vpack.c.b16 %v2416, %v2415
    %v3268 = vpack.c.b16 %v2418, %v2417
    %v3269 = vpack.c.b16 %v2420, %v2419
    %v3270 = vpack.c.b16 %v2422, %v2421
    %v3271 = vpack.c.b16 %v2424, %v2423
    %v3272 = vpack.c.b16 %v2426, %v2425
    %v3273 = vpack.c.b16 %v2428, %v2427
    %v3274 = vpack.c.b16 %v2430, %v2429
    %v3275 = vpack.c.b16 %v2432, %v2431
    %v3276 = vpack.c.b16 %v2434, %v2433
    %v3277 = vpack.c.b16 %v2436, %v2435
    %v3278 = vpack.c.b16 %v2438, %v2437
    %v3279 = vpack.c.b16 %v2440, %v2439
    %v3280 = vpack.c.b16 %v2442, %v2441
    %v3281 = vpack.c.b16 %v2444, %v2443
    %v3282 = vpack.c.b16 %v2446, %v2445
    %v3283 = vpack.c.b16 %v2448, %v2447
    %v3284 = vpack.c.b16 %v2450, %v2449
    %v3285 = vpack.c.b16 %v2452, %v2451
    %v3286 = vpack.c.b16 %v2454, %v2453
    %v3287 = vpack.c.b16 %v2456, %v2455
    %v3288 = vpack.c.b16 %v2458, %v2457
    %v3289 = vpack.c.b16 %v2460, %v2459
    %v3290 = vpack.c.b16 %v2462, %v2461
    %v3291 = vpack.c.b16 %v2464, %v2463
    %v3292 = vpack.c.b16 %v2466, %v2465
    %v3293 = vpack.c.b16 %v2468, %v2467
    %v3294 = vpack.c.b16 %v2470, %v2469
    %v3295 = vpack.c.b16 %v2472, %v2471
    %v3296 = vpack.c.b16 %v2474, %v2473
    %v3297 = vpack.c.b16 %v2476, %v2475
    %v3298 = vpack.c.b16 %v2478, %v2477
    %v3299 = vpack.c.b16 %v2480, %v2479
    %v3300 = vpack.c.b16 %v2482, %v2481
    %v3301 = vpack.c.b16 %v2484, %v2483
    %v3302 = vpack.c.b16 %v2486, %v2485
    %v3303 = vpack.c.b16 %v2488, %v2487
    %v3304 = vpack.c.b16 %v2490, %v2489
    %v3305 = vpack.c.b16 %v2492, %v2491
    %v3306 = vpack.c.b16 %v2494, %v2493
    %v3307 = vpack.c.b16 %v2496, %v2495
    %v3308 = vpack.c.b16 %v2498, %v2497
    %v3309 = vpack.c.b16 %v2500, %v2499
    %v3310 = vpack.c.b16 %v2502, %v2501
    %v3311 = vpack.c.b16 %v2504, %v2503
    %v3312 = vpack.c.b16 %v2506, %v2505
    %v3313 = vpack.c.b16 %v2508, %v2507
    %v3314 = vpack.c.b16 %v2510, %v2509
    %v3315 = vpack.c.b16 %v2512, %v2511
    %v3316 = vpack.c.b16 %v2514, %v2513
    %v3317 = vpack.c.b16 %v2516, %v2515
    %v3318 = vpack.c.b16 %v2518, %v2517
    %v3319 = vpack.c.b16 %v2520, %v2519
    %v3320 = vpack.c.b16 %v2522, %v2521
    %v3321 = vpack.c.b16 %v2524, %v2523
    %v3322 = vpack.c.b16 %v2526, %v2525
    %v3323 = vpack.c.b16 %v2528, %v2527
    %v3324 = vpack.c.b16 %v2530, %v2529
    %v3325 = vpack.c.b16 %v2532, %v2531
    %v3326 = vpack.c.b16 %v2534, %v2533
    %v3327 = vpack.c.b16 %v2536, %v2535
    %v3328 = vpack.c.b16 %v2538, %v2537
    %v3329 = vpack.c.b16 %v2540, %v2539
    %v3330 = vpack.c.b16 %v2542, %v2541
    %v3331 = vpack.c.b16 %v2544, %v2543
    %v3332 = vpack.c.b16 %v2546, %v2545
    %v3333 = vpack.c.b16 %v2548, %v2547
    %v3334 = vpack.c.b16 %v2550, %v2549
    %v3335 = vpack.c.b16 %v2552, %v2551
    %v3336 = vpack.c.b16 %v2554, %v2553
    %v3337 = vpack.c.b16 %v2556, %v2555
    %v3338 = vpack.c.b16 %v2558, %v2557
    %v3339 = vpack.c.b16 %v2560, %v2559
    %v3340 = vpack.c.b16 %v2562, %v2561
    %v3341 = vpack.c.b16 %v2564, %v2563
    %v3342 = vpack.c.b16 %v2566, %v2565
    %v3343 = vpack.c.b16 %v2568, %v2567
    %v3344 = vpack.c.b16 %v2570, %v2569
    %v3345 = vpack.c.b16 %v2572, %v2571
    %v3346 = vpack.c.b16 %v2574, %v2573
    %v3347 = vpack.c.b16 %v2576, %v2575
    %v3348 = vpack.c.b16 %v2578, %v2577
    %v3349 = vpack.c.b16 %v2580, %v2579
    %v3350 = vpack.c.b16 %v2582, %v2581
    %v3351 = vpack.c.b16 %v2584, %v2583
    %v3352 = vpack.c.b16 %v2586, %v2585
    %v3353 = vpack.c.b16 %v2588, %v2587
    %v3354 = vpack.c.b16 %v2590, %v2589
    %v3355 = vpack.c.b16 %v2592, %v2591
    %v3356 = vpack.c.b16 %v2594, %v2593
    %v3357 = vpack.c.b16 %v2596, %v2595
    %v3358 = vpack.c.b16 %v2598, %v2597
    %v3359 = vpack.c.b16 %v2600, %v2599
    %v3360 = vpack.c.b16 %v2602, %v2601
    %v3361 = vpack.c.b16 %v2604, %v2603
    %v3362 = vpack.c.b16 %v2606, %v2605
    %v3363 = vpack.c.b16 %v2608, %v2607
    %v3364 = vpack.c.b16 %v2610, %v2609
    %v3365 = vpack.c.b16 %v2612, %v2611
    %v3366 = vpack.c.b16 %v2614, %v2613
    %v3367 = vpack.c.b16 %v2616, %v2615
    %v3368 = vpack.c.b16 %v2618, %v2617
    %v3369 = vpack.c.b16 %v2620, %v2619
    %v3370 = vpack.c.b16 %v2622, %v2621
    %v3371 = vpack.c.b16 %v2624, %v2623
    %v3372 = vpack.c.b16 %v2626, %v2625
    %v3373 = vpack.c.b16 %v2628, %v2627
    %v3374 = vpack.c.b16 %v2630, %v2629
    %v3375 = vpack.c.b16 %v2632, %v2631
    %v3376 = vpack.c.b16 %v2634, %v2633
    %v3377 = vpack.c.b16 %v2636, %v2635
    %v3378 = vpack.c.b16 %v2638, %v2637
    %v3379 = vpack.c.b16 %v2640, %v2639
    %v3380 = vpack.c.b16 %v2642, %v2641
    %v3381 = vpack.c.b16 %v2644, %v2643
    %v3382 = vpack.c.b16 %v2646, %v2645
    %v3383 = vpack.c.b16 %v2648, %v2647
    %v3384 = vpack.c.b16 %v2650, %v2649
    %v3385 = vpack.c.b16 %v2652, %v2651
    %v3386 = vpack.c.b16 %v2654, %v2653
    %v3387 = vpack.c.b16 %v2656, %v2655
    %v3388 = vpack.c.b16 %v2658, %v2657
    %v3389 = vpack.c.b16 %v2660, %v2659
    %v3390 = vpack.c.b16 %v2662, %v2661
    %v3391 = vpack.c.b16 %v2664, %v2663
    %v3392 = vpack.c.b16 %v2666, %v2665
    %v3393 = vpack.c.b16 %v2668, %v2667
    %v3394 = vpack.c.b16 %v2670, %v2669
    %v3395 = vpack.c.b16 %v2672, %v2671
    %v3396 = vpack.c.b16 %v2674, %v2673
    %v3397 = vpack.c.b16 %v2676, %v2675
    %v3398 = vpack.c.b16 %v2678, %v2677
    %v3399 = vpack.c.b16 %v2680, %v2679
    %v3400 = vpack.c.b16 %v2682, %v2681
    %v3401 = vpack.c.b16 %v2684, %v2683
    %v3402 = vpack.c.b16 %v2686, %v2685
    %v3403 = vpack.c.b16 %v2688, %v2687
    %v3404 = vpack.c.b16 %v2690, %v2689
    %v3405 = vpack.c.b16 %v2692, %v2691
    %v3406 = vpack.c.b16 %v2694, %v2693
    %v3407 = vpack.c.b16 %v2696, %v2695
    %v3408 = vpack.c.b16 %v2698, %v2697
    %v3409 = vpack.c.b16 %v2700, %v2699
    %v3410 = vpack.c.b16 %v2702, %v2701
    %v3411 = vpack.c.b16 %v2704, %v2703
    %v3412 = vpack.c.b16 %v2706, %v2705
    %v3413 = vpack.c.b16 %v2708, %v2707
    %v3414 = vpack.c.b16 %v2710, %v2709
    %v3415 = vpack.c.b16 %v2712, %v2711
    %v3416 = vpack.c.b16 %v2714, %v2713
    %v3417 = vpack.c.b16 %v2716, %v2715
    %v3418 = vpack.c.b16 %v2718, %v2717
    %v3419 = vpack.c.b16 %v2720, %v2719
    %v3420 = vpack.c.b16 %v2722, %v2721
    %v3421 = vpack.c.b16 %v2724, %v2723
    %v3422 = vpack.c.b16 %v2726, %v2725
    %v3423 = vpack.c.b16 %v2728, %v2727
    %v3424 = vpack.c.b16 %v2730, %v2729
    %v3425 = vpack.c.b16 %v2732, %v2731
    %v3426 = vpack.c.b16 %v2734, %v2733
    %v3427 = vpack.c.b16 %v2736, %v2735
    %v3428 = vpack.c.b16 %v2738, %v2737
    %v3429 = vpack.c.b16 %v2740, %v2739
    %v3430 = vpack.c.b16 %v2742, %v2741
    %v3431 = vpack.c.b16 %v2744, %v2743
    %v3432 = vpack.c.b16 %v2746, %v2745
    %v3433 = vpack.c.b16 %v2748, %v2747
    %v3434 = vpack.c.b16 %v2750, %v2749
    %v3435 = vpack.c.b16 %v2752, %v2751
    %v3436 = vpack.c.b16 %v2754, %v2753
    %v3437 = vpack.c.b16 %v2756, %v2755
    %v3438 = vpack.c.b16 %v2758, %v2757
    %v3439 = vpack.c.b16 %v2760, %v2759
    %v3440 = vpack.c.b16 %v2762, %v2761
    %v3441 = vpack.c.b16 %v2764, %v2763
    %v3442 = vpack.c.b16 %v2766, %v2765
    %v3443 = vpack.c.b16 %v2768, %v2767
    %v3444 = vpack.c.b16 %v2770, %v2769
    %v3445 = vpack.c.b16 %v2772, %v2771
    %v3446 = vpack.c.b16 %v2774, %v2773
    %v3447 = vpack.c.b16 %v2776, %v2775
    %v3448 = vpack.c.b16 %v2778, %v2777
    %v3449 = vpack.c.b16 %v2780, %v2779
    %v3450 = vpack.c.b16 %v2782, %v2781
    %v3451 = vpack.c.b16 %v2784, %v2783
    %v3452 = vpack.c.b16 %v2786, %v2785
    %v3453 = vpack.c.b16 %v2788, %v2787
    %v3454 = vpack.c.b16 %v2790, %v2789
    %v3455 = vpack.c.b16 %v2792, %v2791
    %v3456 = vpack.c.b16 %v2794, %v2793
    %v3457 = vpack.c.b16 %v2796, %v2795
    %v3458 = vpack.c.b16 %v2798, %v2797
    %v3459 = vpack.c.b16 %v2800, %v2799
    %v3460 = vpack.c.b16 %v2802, %v2801
    %v3461 = vpack.c.b16 %v2804, %v2803
    %v3462 = vpack.c.b16 %v2806, %v2805
    %v3463 = vpack.c.b16 %v2808, %v2807
    %v3464 = vpack.c.b16 %v2810, %v2809
    %v3465 = vpack.c.b16 %v2812, %v2811
    %v3466 = vpack.c.b16 %v2814, %v2813
    %v3467 = vpack.c.b16 %v2816, %v2815
    %v3468 = vpack.c.b16 %v2818, %v2817
    %v3469 = vpack.c.b16 %v2820, %v2819
    %v3470 = vpack.c.b16 %v2822, %v2821
    %v3471 = vpack.c.b16 %v2824, %v2823
    %v3472 = vpack.c.b16 %v2826, %v2825
    %v3473 = vpack.c.b16 %v2828, %v2827
    %v3474 = vpack.c.b16 %v2830, %v2829
    %v3475 = vpack.c.b16 %v2832, %v2831
    %v3476 = vpack.c.b16 %v2834, %v2833
    %v3477 = vpack.c.b16 %v2836, %v2835
    %v3478 = vpack.c.b16 %v2838, %v2837
    %v3479 = vpack.c.b16 %v2840, %v2839
    %v3480 = vpack.c.b16 %v2842, %v2841
    %v3481 = vpack.c.b16 %v2844, %v2843
    %v3482 = vpack.c.b16 %v2846, %v2845
    %v3483 = vpack.c.b16 %v2848, %v2847
    %v3484 = vpack.c.b16 %v2850, %v2849
    %v3485 = vpack.c.b16 %v2852, %v2851
    %v3486 = vpack.c.b16 %v2854, %v2853
    %v3487 = vpack.c.b16 %v2856, %v2855
    %v3488 = vpack.c.b16 %v2858, %v2857
    %v3489 = vpack.c.b16 %v2860, %v2859
    %v3490 = vpack.c.b16 %v2862, %v2861
    %v3491 = vpack.c.b16 %v2864, %v2863
    %v3492 = vpack.c.b16 %v2866, %v2865
    %v3493 = vpack.c.b16 %v2868, %v2867
    %v3494 = vpack.c.b16 %v2870, %v2869
    %v3495 = vpack.c.b16 %v2872, %v2871
    %v3496 = vpack.c.b16 %v2874, %v2873
    %v3497 = vpack.c.b16 %v2876, %v2875
    %v3498 = vpack.c.b16 %v2878, %v2877
    %v3499 = vpack.c.b16 %v2880, %v2879
    %v3500 = vpack.c.b16 %v2882, %v2881
    %v3501 = vpack.c.b16 %v2884, %v2883
    %v3502 = vpack.c.b16 %v2886, %v2885
    %v3503 = vpack.c.b16 %v2888, %v2887
    %v3504 = vpack.c.b16 %v2890, %v2889
    %v3505 = vpack.c.b16 %v2892, %v2891
    %v3506 = vpack.c.b16 %v2894, %v2893
    %v3507 = vpack.c.b16 %v2896, %v2895
    %v3508 = vpack.c.b16 %v2898, %v2897
    %v3509 = vpack.c.b16 %v2900, %v2899
    %v3510 = vpack.c.b16 %v2902, %v2901
    %v3511 = vpack.c.b16 %v2904, %v2903
    %v3512 = vpack.c.b16 %v2906, %v2905
    %v3513 = vpack.c.b16 %v2908, %v2907
    %v3514 = vpack.c.b16 %v2910, %v2909
    %v3515 = vpack.c.b16 %v2912, %v2911
    %v3516 = vpack.c.b16 %v2914, %v2913
    %v3517 = vpack.c.b16 %v2916, %v2915
    %v3518 = vpack.c.b16 %v2918, %v2917
    %v3519 = vpack.c.b16 %v2920, %v2919
    %v3520 = vpack.c.b16 %v2922, %v2921
    %v3521 = vpack.c.b16 %v2924, %v2923
    %v3522 = vpack.c.b16 %v2926, %v2925
    %v3523 = vpack.c.b16 %v2928, %v2927
    %v3524 = vpack.c.b16 %v2930, %v2929
    %v3525 = vpack.c.b16 %v2932, %v2931
    %v3526 = vpack.c.b16 %v2934, %v2933
    %v3527 = vpack.c.b16 %v2936, %v2935
    %v3528 = vpack.c.b16 %v2938, %v2937
    %v3529 = vpack.c.b16 %v2940, %v2939
    %v3530 = vpack.c.b16 %v2942, %v2941
    %v3531 = vpack.c.b16 %v2944, %v2943
    %v3532 = vpack.c.b16 %v2946, %v2945
    %v3533 = vpack.c.b16 %v2948, %v2947
    %v3534 = vpack.c.b16 %v2950, %v2949
    %v3535 = vpack.c.b16 %v2952, %v2951
    %v3536 = vpack.c.b16 %v2954, %v2953
    %v3537 = vpack.c.b16 %v2956, %v2955
    %v3538 = vpack.c.b16 %v2958, %v2957
    %v3539 = vpack.c.b16 %v2960, %v2959
    %v3540 = vpack.c.b16 %v2962, %v2961
    %v3541 = vpack.c.b16 %v2964, %v2963
    %v3542 = vpack.c.b16 %v2966, %v2965
    %v3543 = vpack.c.b16 %v2968, %v2967
    %v3544 = vpack.c.b16 %v2970, %v2969
    %v3545 = vpack.c.b16 %v2972, %v2971
    %v3546 = vpack.c.b16 %v2974, %v2973
    %v3547 = vpack.c.b16 %v2976, %v2975
    %v3548 = vpack.c.b16 %v2978, %v2977
    %v3549 = vpack.c.b16 %v2980, %v2979
    %v3550 = vpack.c.b16 %v2982, %v2981
    %v3551 = vpack.c.b16 %v2984, %v2983
    %v3552 = vpack.c.b16 %v2986, %v2985
    %v3553 = vpack.c.b16 %v2988, %v2987
    %v3554 = vpack.c.b16 %v2990, %v2989
    %v3555 = vpack.c.b16 %v2992, %v2991
    %v3556 = vpack.c.b16 %v2994, %v2993
    %v3557 = vpack.c.b16 %v2996, %v2995
    %v3558 = vpack.c.b16 %v2998, %v2997
    %v3559 = vpack.c.b16 %v3000, %v2999
    %v3560 = vpack.c.b16 %v3002, %v3001
    %v3561 = vpack.c.b16 %v3004, %v3003
    %v3562 = vpack.c.b16 %v3006, %v3005
    %v3563 = vpack.c.b16 %v3008, %v3007
    %v3564 = vpack.c.b16 %v3010, %v3009
    %v3565 = vpack.c.b16 %v3012, %v3011
    %v3566 = vpack.c.b16 %v3014, %v3013
    %v3567 = vpack.c.b16 %v3016, %v3015
    %v3568 = vpack.c.b16 %v3018, %v3017
    %v3569 = vpack.c.b16 %v3020, %v3019
    %v3570 = vpack.c.b16 %v3022, %v3021
    %v3571 = vpack.c.b16 %v3024, %v3023
    %v3572 = vpack.c.b16 %v3026, %v3025
    %v3573 = vpack.c.b16 %v3028, %v3027
    %v3574 = vpack.c.b16 %v3030, %v3029
    %v3575 = vpack.c.b16 %v3032, %v3031
    %v3576 = vpack.c.b16 %v3034, %v3033
    %v3577 = vpack.c.b16 %v3036, %v3035
    %v3578 = vpack.c.b16 %v3038, %v3037
    %v3579 = vpack.c.b16 %v3040, %v3039
    %v3580 = vpack.c.b16 %v3042, %v3041
    %v3581 = vpack.c.b16 %v3044, %v3043
    %v3582 = vpack.c.b16 %v3046, %v3045
    %v3583 = vpack.c.b16 %v3048, %v3047
    %v3584 = vpack.c.b16 %v3050, %v3049
    %v3585 = vpack.c.b16 %v3052, %v3051
    %v3586 = vpack.c.b16 %v3054, %v3053
    %v3587 = vpack.c.b16 %v3056, %v3055
    %v3588 = vpack.c.b16 %v3058, %v3057
    %v3589 = vpack.c.b16 %v3060, %v3059
    %v3590 = vpack.c.b16 %v3062, %v3061
    %v3591 = vpack.c.b16 %v3064, %v3063
    %v3592 = vpack.c.b16 %v3066, %v3065
    %v3593 = vpack.c.b16 %v3068, %v3067
    %v3594 = vpack.c.b16 %v3070, %v3069
    %v3595 = vpack.c.b16 %v3072, %v3071
    %v3596 = vpack.c.b16 %v3074, %v3073
    %v3597 = vpack.c.b16 %v3076, %v3075
    %v3598 = vpack.c.b16 %v3078, %v3077
    %v3599 = vpack.c.b16 %v3080, %v3079
    %v3600 = vpack.c.b16 %v3082, %v3081
    %v3601 = vpack.c.b16 %v3084, %v3083
    %v3602 = vpack.c.b16 %v3086, %v3085
    %v3603 = vpack.c.b16 %v3088, %v3087
    %v3604 = vpack.c.b16 %v3090, %v3089
    %v3605 = vpack.c.b16 %v3092, %v3091
    %v3606 = vpack.c.b16 %v3094, %v3093
    %v3607 = vpack.c.b16 %v3096, %v3095
    %v3608 = vpack.c.b16 %v3098, %v3097
    %v3609 = vpack.c.b16 %v3100, %v3099
    %v3610 = vpack.c.b16 %v3102, %v3101
    %v3611 = vpack.c.b16 %v3104, %v3103
    %v3612 = vpack.c.b16 %v3106, %v3105
    %v3613 = vpack.c.b16 %v3108, %v3107
    %v3614 = vpack.c.b16 %v3110, %v3109
    %v3615 = vpack.c.b16 %v3112, %v3111
    %v3616 = vpack.c.b16 %v3114, %v3113
    %v3617 = vpack.c.b16 %v3116, %v3115
    %v3618 = vpack.c.b16 %v3118, %v3117
    %v3619 = vpack.c.b16 %v3120, %v3119
    %v3620 = vpack.c.b16 %v3122, %v3121
    %v3621 = vpack.c.b16 %v3124, %v3123
    %v3622 = vpack.c.b16 %v3126, %v3125
    %v3623 = vpack.c.b16 %v3128, %v3127
    %v3624 = vpack.c.b16 %v3130, %v3129
    %v3625 = vpack.c.b16 %v3132, %v3131
    %v3626 = vpack.c.b16 %v3134, %v3133
    %v3627 = vpack.c.b16 %v3136, %v3135
    %v3628 = vpack.c.b16 %v3138, %v3137
    %v3629 = vpack.c.b16 %v3140, %v3139
    %v3630 = vpack.c.b16 %v3142, %v3141
    %v3631 = vpack.c.b16 %v3144, %v3143
    %v3632 = vpack.c.b16 %v3146, %v3145
    %v3633 = vpack.c.b16 %v3148, %v3147
    %v3634 = vpack.c.b16 %v3149, %v3149
    %vm4119 = vcmask 588800
    %v4121 = vsel %vm4119, %v235, 0
    %vm4123 = vcmask 1043456
    %v4125 = vsel %vm4123, %v3634, 0
    %4127 = vmatprep.subr.bf16.mxu0 0
    %4128 = vmatpush1.bf16.msra.mxu0 %v3150
    %4129 = vmatprep.subr.bf16.mxu0 0
    %4130 = vmatpush1.bf16.msra.mxu0 %v3151
    %4131 = vmatprep.subr.bf16.mxu0 0
    %4132 = vmatpush1.bf16.msra.mxu0 %v3152
    %4133 = vmatprep.subr.bf16.mxu0 0
    %4134 = vmatpush1.bf16.msra.mxu0 %v3153
    %4135 = vmatprep.subr.bf16.mxu0 0
    %4136 = vmatpush1.bf16.msra.mxu0 %v3154
    %4137 = vmatprep.subr.bf16.mxu0 0
    %4138 = vmatpush1.bf16.msra.mxu0 %v3155
    %4139 = vmatprep.subr.bf16.mxu0 0
    %4140 = vmatpush1.bf16.msra.mxu0 %v3156
    %4141 = vmatprep.subr.bf16.mxu0 0
    %4142 = vmatpush1.bf16.msra.mxu0 %v3157
    %4143 = vmatprep.subr.bf16.mxu0 0
    %4144 = vmatpush1.bf16.msra.mxu0 %v3158
    %4145 = vmatprep.subr.bf16.mxu0 0
    %4146 = vmatpush1.bf16.msra.mxu0 %v3159
    %4147 = vmatprep.subr.bf16.mxu0 0
    %4148 = vmatpush1.bf16.msra.mxu0 %v3160
    %4149 = vmatprep.subr.bf16.mxu0 0
    %4150 = vmatpush1.bf16.msra.mxu0 %v3161
    %4151 = vmatprep.subr.bf16.mxu0 0
    %4152 = vmatpush1.bf16.msra.mxu0 %v3162
    %4153 = vmatprep.subr.bf16.mxu0 0
    %4154 = vmatpush1.bf16.msra.mxu0 %v3163
    %4155 = vmatprep.subr.bf16.mxu0 0
    %4156 = vmatpush1.bf16.msra.mxu0 %v3164
    %4157 = vmatprep.subr.bf16.mxu0 0
    %4158 = vmatpush1.bf16.msra.mxu0 %v3165
    %4159 = vmatprep.mubr.bf16.mxu0 %v176
    %4160 = vmatmul.mubr.bf16.gmra.mrb[0].mxu0 %v175
    %v4161 = vpop.f32.mrb[0].mxu0
    %v4162 = vadd.f32 %v1210, %v4161
    %v4163 = vpop.f32.mrb[0].mxu0
    %v4164 = vpop.f32.mrb[0].mxu0
    %v4165 = vpop.f32.mrb[0].mxu0
    %4166 = vdwg.mxu0
    %4167 = vmatprep.subr.bf16.mxu0 0
    %4168 = vmatpush1.bf16.msra.mxu0 %v3166
    %4169 = vmatprep.subr.bf16.mxu0 0
    %4170 = vmatpush1.bf16.msra.mxu0 %v3167
    %4171 = vmatprep.subr.bf16.mxu0 0
    %4172 = vmatpush1.bf16.msra.mxu0 %v3168
    %4173 = vmatprep.subr.bf16.mxu0 0
    %4174 = vmatpush1.bf16.msra.mxu0 %v3169
    %4175 = vmatprep.subr.bf16.mxu0 0
    %4176 = vmatpush1.bf16.msra.mxu0 %v3170
    %4177 = vmatprep.subr.bf16.mxu0 0
    %4178 = vmatpush1.bf16.msra.mxu0 %v3171
    %4179 = vmatprep.subr.bf16.mxu0 0
    %4180 = vmatpush1.bf16.msra.mxu0 %v3172
    %4181 = vmatprep.subr.bf16.mxu0 0
    %4182 = vmatpush1.bf16.msra.mxu0 %v3173
    %4183 = vmatprep.subr.bf16.mxu0 0
    %4184 = vmatpush1.bf16.msra.mxu0 %v3174
    %4185 = vmatprep.subr.bf16.mxu0 0
    %4186 = vmatpush1.bf16.msra.mxu0 %v3175
    %4187 = vmatprep.subr.bf16.mxu0 0
    %4188 = vmatpush1.bf16.msra.mxu0 %v3176
    %4189 = vmatprep.subr.bf16.mxu0 0
    %4190 = vmatpush1.bf16.msra.mxu0 %v3177
    %4191 = vmatprep.subr.bf16.mxu0 0
    %4192 = vmatpush1.bf16.msra.mxu0 %v3178
    %4193 = vmatprep.subr.bf16.mxu0 0
    %4194 = vmatpush1.bf16.msra.mxu0 %v3179
    %4195 = vmatprep.subr.bf16.mxu0 0
    %4196 = vmatpush1.bf16.msra.mxu0 %v3180
    %4197 = vmatprep.subr.bf16.mxu0 0
    %4198 = vmatpush1.bf16.msra.mxu0 %v3181
    %4199 = vmatprep.mubr.bf16.mxu0 %v178
    %4200 = vmatmul.mubr.bf16.gmra.mrb[0].mxu0 %v177
    %v4201 = vpop.f32.mrb[0].mxu0
    %v4202 = vadd.f32 %v4162, %v4201
    %v4203 = vpop.f32.mrb[0].mxu0
    %v4204 = vpop.f32.mrb[0].mxu0
    %v4205 = vpop.f32.mrb[0].mxu0
    %4206 = vdwg.mxu0
    %4207 = vmatprep.subr.bf16.mxu0 0
    %4208 = vmatpush1.bf16.msra.mxu0 %v3182
    %4209 = vmatprep.subr.bf16.mxu0 0
    %4210 = vmatpush1.bf16.msra.mxu0 %v3183
    %4211 = vmatprep.subr.bf16.mxu0 0
    %4212 = vmatpush1.bf16.msra.mxu0 %v3184
    %4213 = vmatprep.subr.bf16.mxu0 0
    %4214 = vmatpush1.bf16.msra.mxu0 %v3185
    %4215 = vmatprep.subr.bf16.mxu0 0
    %4216 = vmatpush1.bf16.msra.mxu0 %v3186
    %4217 = vmatprep.subr.bf16.mxu0 0
    %4218 = vmatpush1.bf16.msra.mxu0 %v3187
    %4219 = vmatprep.subr.bf16.mxu0 0
    %4220 = vmatpush1.bf16.msra.mxu0 %v3188
    %4221 = vmatprep.subr.bf16.mxu0 0
    %4222 = vmatpush1.bf16.msra.mxu0 %v3189
    %4223 = vmatprep.subr.bf16.mxu0 0
    %4224 = vmatpush1.bf16.msra.mxu0 %v3190
    %4225 = vmatprep.subr.bf16.mxu0 0
    %4226 = vmatpush1.bf16.msra.mxu0 %v3191
    %4227 = vmatprep.subr.bf16.mxu0 0
    %4228 = vmatpush1.bf16.msra.mxu0 %v3192
    %4229 = vmatprep.subr.bf16.mxu0 0
    %4230 = vmatpush1.bf16.msra.mxu0 %v3193
    %4231 = vmatprep.subr.bf16.mxu0 0
    %4232 = vmatpush1.bf16.msra.mxu0 %v3194
    %4233 = vmatprep.subr.bf16.mxu0 0
    %4234 = vmatpush1.bf16.msra.mxu0 %v3195
    %4235 = vmatprep.subr.bf16.mxu0 0
    %4236 = vmatpush1.bf16.msra.mxu0 %v3196
    %4237 = vmatprep.subr.bf16.mxu0 0
    %4238 = vmatpush1.bf16.msra.mxu0 %v3197
    %4239 = vmatprep.mubr.bf16.mxu0 %v180
    %4240 = vmatmul.mubr.bf16.gmra.mrb[0].mxu0 %v179
    %v4241 = vpop.f32.mrb[0].mxu0
    %v4242 = vadd.f32 %v4202, %v4241
    %v4243 = vpop.f32.mrb[0].mxu0
    %v4244 = vpop.f32.mrb[0].mxu0
    %v4245 = vpop.f32.mrb[0].mxu0
    %4246 = vdwg.mxu0
    %4247 = vmatprep.subr.bf16.mxu0 0
    %4248 = vmatpush1.bf16.msra.mxu0 %v3198
    %4249 = vmatprep.subr.bf16.mxu0 0
    %4250 = vmatpush1.bf16.msra.mxu0 %v3199
    %4251 = vmatprep.subr.bf16.mxu0 0
    %4252 = vmatpush1.bf16.msra.mxu0 %v3200
    %4253 = vmatprep.subr.bf16.mxu0 0
    %4254 = vmatpush1.bf16.msra.mxu0 %v3201
    %4255 = vmatprep.subr.bf16.mxu0 0
    %4256 = vmatpush1.bf16.msra.mxu0 %v3202
    %4257 = vmatprep.subr.bf16.mxu0 0
    %4258 = vmatpush1.bf16.msra.mxu0 %v3203
    %4259 = vmatprep.subr.bf16.mxu0 0
    %4260 = vmatpush1.bf16.msra.mxu0 %v3204
    %4261 = vmatprep.subr.bf16.mxu0 0
    %4262 = vmatpush1.bf16.msra.mxu0 %v3205
    %4263 = vmatprep.subr.bf16.mxu0 0
    %4264 = vmatpush1.bf16.msra.mxu0 %v3206
    %4265 = vmatprep.subr.bf16.mxu0 0
    %4266 = vmatpush1.bf16.msra.mxu0 %v3207
    %4267 = vmatprep.subr.bf16.mxu0 0
    %4268 = vmatpush1.bf16.msra.mxu0 %v3208
    %4269 = vmatprep.subr.bf16.mxu0 0
    %4270 = vmatpush1.bf16.msra.mxu0 %v3209
    %4271 = vmatprep.subr.bf16.mxu0 0
    %4272 = vmatpush1.bf16.msra.mxu0 %v3210
    %4273 = vmatprep.subr.bf16.mxu0 0
    %4274 = vmatpush1.bf16.msra.mxu0 %v3211
    %4275 = vmatprep.subr.bf16.mxu0 0
    %4276 = vmatpush1.bf16.msra.mxu0 %v3212
    %4277 = vmatprep.subr.bf16.mxu0 0
    %4278 = vmatpush1.bf16.msra.mxu0 %v3213
    %4279 = vmatprep.mubr.bf16.mxu0 %v182
    %4280 = vmatmul.mubr.bf16.gmra.mrb[0].mxu0 %v181
    %v4281 = vpop.f32.mrb[0].mxu0
    %v4282 = vadd.f32 %v4242, %v4281
    %v4283 = vpop.f32.mrb[0].mxu0
    %v4284 = vpop.f32.mrb[0].mxu0
    %v4285 = vpop.f32.mrb[0].mxu0
    %4286 = vdwg.mxu0
    %4287 = vmatprep.subr.bf16.mxu0 0
    %4288 = vmatpush1.bf16.msra.mxu0 %v3214
    %4289 = vmatprep.subr.bf16.mxu0 0
    %4290 = vmatpush1.bf16.msra.mxu0 %v3215
    %4291 = vmatprep.subr.bf16.mxu0 0
    %4292 = vmatpush1.bf16.msra.mxu0 %v3216
    %4293 = vmatprep.subr.bf16.mxu0 0
    %4294 = vmatpush1.bf16.msra.mxu0 %v3217
    %4295 = vmatprep.subr.bf16.mxu0 0
    %4296 = vmatpush1.bf16.msra.mxu0 %v3218
    %4297 = vmatprep.subr.bf16.mxu0 0
    %4298 = vmatpush1.bf16.msra.mxu0 %v3219
    %4299 = vmatprep.subr.bf16.mxu0 0
    %4300 = vmatpush1.bf16.msra.mxu0 %v3220
    %4301 = vmatprep.subr.bf16.mxu0 0
    %4302 = vmatpush1.bf16.msra.mxu0 %v3221
    %4303 = vmatprep.subr.bf16.mxu0 0
    %4304 = vmatpush1.bf16.msra.mxu0 %v3222
    %4305 = vmatprep.subr.bf16.mxu0 0
    %4306 = vmatpush1.bf16.msra.mxu0 %v3223
    %4307 = vmatprep.subr.bf16.mxu0 0
    %4308 = vmatpush1.bf16.msra.mxu0 %v3224
    %4309 = vmatprep.subr.bf16.mxu0 0
    %4310 = vmatpush1.bf16.msra.mxu0 %v3225
    %4311 = vmatprep.subr.bf16.mxu0 0
    %4312 = vmatpush1.bf16.msra.mxu0 %v3226
    %4313 = vmatprep.subr.bf16.mxu0 0
    %4314 = vmatpush1.bf16.msra.mxu0 %v3227
    %4315 = vmatprep.subr.bf16.mxu0 0
    %4316 = vmatpush1.bf16.msra.mxu0 %v3228
    %4317 = vmatprep.subr.bf16.mxu0 0
    %4318 = vmatpush1.bf16.msra.mxu0 %v3229
    %4319 = vmatprep.mubr.bf16.mxu0 %v184
    %4320 = vmatmul.mubr.bf16.gmra.mrb[0].mxu0 %v183
    %v4321 = vpop.f32.mrb[0].mxu0
    %v4322 = vadd.f32 %v4282, %v4321
    %v4323 = vpop.f32.mrb[0].mxu0
    %v4324 = vpop.f32.mrb[0].mxu0
    %v4325 = vpop.f32.mrb[0].mxu0
    %4326 = vdwg.mxu0
    %4327 = vmatprep.subr.bf16.mxu0 0
    %4328 = vmatpush1.bf16.msra.mxu0 %v3230
    %4329 = vmatprep.subr.bf16.mxu0 0
    %4330 = vmatpush1.bf16.msra.mxu0 %v3231
    %4331 = vmatprep.subr.bf16.mxu0 0
    %4332 = vmatpush1.bf16.msra.mxu0 %v3232
    %4333 = vmatprep.subr.bf16.mxu0 0
    %4334 = vmatpush1.bf16.msra.mxu0 %v3233
    %4335 = vmatprep.subr.bf16.mxu0 0
    %4336 = vmatpush1.bf16.msra.mxu0 %v3234
    %4337 = vmatprep.subr.bf16.mxu0 0
    %4338 = vmatpush1.bf16.msra.mxu0 %v3235
    %4339 = vmatprep.subr.bf16.mxu0 0
    %4340 = vmatpush1.bf16.msra.mxu0 %v3236
    %4341 = vmatprep.subr.bf16.mxu0 0
    %4342 = vmatpush1.bf16.msra.mxu0 %v3237
    %4343 = vmatprep.subr.bf16.mxu0 0
    %4344 = vmatpush1.bf16.msra.mxu0 %v3238
    %4345 = vmatprep.subr.bf16.mxu0 0
    %4346 = vmatpush1.bf16.msra.mxu0 %v3239
    %4347 = vmatprep.subr.bf16.mxu0 0
    %4348 = vmatpush1.bf16.msra.mxu0 %v3240
    %4349 = vmatprep.subr.bf16.mxu0 0
    %4350 = vmatpush1.bf16.msra.mxu0 %v3241
    %4351 = vmatprep.subr.bf16.mxu0 0
    %4352 = vmatpush1.bf16.msra.mxu0 %v3242
    %4353 = vmatprep.subr.bf16.mxu0 0
    %4354 = vmatpush1.bf16.msra.mxu0 %v3243
    %4355 = vmatprep.subr.bf16.mxu0 0
    %4356 = vmatpush1.bf16.msra.mxu0 %v3244
    %4357 = vmatprep.subr.bf16.mxu0 0
    %4358 = vmatpush1.bf16.msra.mxu0 %v3245
    %4359 = vmatprep.mubr.bf16.mxu0 %v186
    %4360 = vmatmul.mubr.bf16.gmra.mrb[0].mxu0 %v185
    %v4361 = vpop.f32.mrb[0].mxu0
    %v4362 = vadd.f32 %v4322, %v4361
    %v4363 = vpop.f32.mrb[0].mxu0
    %v4364 = vpop.f32.mrb[0].mxu0
    %v4365 = vpop.f32.mrb[0].mxu0
    %4366 = vdwg.mxu0
    %4367 = vmatprep.subr.bf16.mxu0 0
    %4368 = vmatpush1.bf16.msra.mxu0 %v3246
    %4369 = vmatprep.subr.bf16.mxu0 0
    %4370 = vmatpush1.bf16.msra.mxu0 %v3247
    %4371 = vmatprep.subr.bf16.mxu0 0
    %4372 = vmatpush1.bf16.msra.mxu0 %v3248
    %4373 = vmatprep.subr.bf16.mxu0 0
    %4374 = vmatpush1.bf16.msra.mxu0 %v3249
    %4375 = vmatprep.subr.bf16.mxu0 0
    %4376 = vmatpush1.bf16.msra.mxu0 %v3250
    %4377 = vmatprep.subr.bf16.mxu0 0
    %4378 = vmatpush1.bf16.msra.mxu0 %v3251
    %4379 = vmatprep.subr.bf16.mxu0 0
    %4380 = vmatpush1.bf16.msra.mxu0 %v3252
    %4381 = vmatprep.subr.bf16.mxu0 0
    %4382 = vmatpush1.bf16.msra.mxu0 %v3253
    %4383 = vmatprep.subr.bf16.mxu0 0
    %4384 = vmatpush1.bf16.msra.mxu0 %v3254
    %4385 = vmatprep.subr.bf16.mxu0 0
    %4386 = vmatpush1.bf16.msra.mxu0 %v3255
    %4387 = vmatprep.subr.bf16.mxu0 0
    %4388 = vmatpush1.bf16.msra.mxu0 %v3256
    %4389 = vmatprep.subr.bf16.mxu0 0
    %4390 = vmatpush1.bf16.msra.mxu0 %v3257
    %4391 = vmatprep.subr.bf16.mxu0 0
    %4392 = vmatpush1.bf16.msra.mxu0 %v3258
    %4393 = vmatprep.subr.bf16.mxu0 0
    %4394 = vmatpush1.bf16.msra.mxu0 %v3259
    %4395 = vmatprep.subr.bf16.mxu0 0
    %4396 = vmatpush1.bf16.msra.mxu0 %v3260
    %4397 = vmatprep.subr.bf16.mxu0 0
    %4398 = vmatpush1.bf16.msra.mxu0 %v3261
    %4399 = vmatprep.mubr.bf16.mxu0 %v188
    %4400 = vmatmul.mubr.bf16.gmra.mrb[0].mxu0 %v187
    %v4401 = vpop.f32.mrb[0].mxu0
    %v4402 = vadd.f32 %v4362, %v4401
    %v4403 = vpop.f32.mrb[0].mxu0
    %v4404 = vpop.f32.mrb[0].mxu0
    %v4405 = vpop.f32.mrb[0].mxu0
    %4406 = vdwg.mxu0
    %4407 = vmatprep.subr.bf16.mxu0 0
    %4408 = vmatpush1.bf16.msra.mxu0 %v3262
    %4409 = vmatprep.subr.bf16.mxu0 0
    %4410 = vmatpush1.bf16.msra.mxu0 %v3263
    %4411 = vmatprep.subr.bf16.mxu0 0
    %4412 = vmatpush1.bf16.msra.mxu0 %v3264
    %4413 = vmatprep.subr.bf16.mxu0 0
    %4414 = vmatpush1.bf16.msra.mxu0 %v3265
    %4415 = vmatprep.subr.bf16.mxu0 0
    %4416 = vmatpush1.bf16.msra.mxu0 %v3266
    %4417 = vmatprep.subr.bf16.mxu0 0
    %4418 = vmatpush1.bf16.msra.mxu0 %v3267
    %4419 = vmatprep.subr.bf16.mxu0 0
    %4420 = vmatpush1.bf16.msra.mxu0 %v3268
    %4421 = vmatprep.subr.bf16.mxu0 0
    %4422 = vmatpush1.bf16.msra.mxu0 %v3269
    %4423 = vmatprep.subr.bf16.mxu0 0
    %4424 = vmatpush1.bf16.msra.mxu0 %v3270
    %4425 = vmatprep.subr.bf16.mxu0 0
    %4426 = vmatpush1.bf16.msra.mxu0 %v3271
    %4427 = vmatprep.subr.bf16.mxu0 0
    %4428 = vmatpush1.bf16.msra.mxu0 %v3272
    %4429 = vmatprep.subr.bf16.mxu0 0
    %4430 = vmatpush1.bf16.msra.mxu0 %v3273
    %4431 = vmatprep.subr.bf16.mxu0 0
    %4432 = vmatpush1.bf16.msra.mxu0 %v3274
    %4433 = vmatprep.subr.bf16.mxu0 0
    %4434 = vmatpush1.bf16.msra.mxu0 %v3275
    %4435 = vmatprep.subr.bf16.mxu0 0
    %4436 = vmatpush1.bf16.msra.mxu0 %v3276
    %4437 = vmatprep.subr.bf16.mxu0 0
    %4438 = vmatpush1.bf16.msra.mxu0 %v3277
    %4439 = vmatprep.mubr.bf16.mxu0 %v190
    %4440 = vmatmul.mubr.bf16.gmra.mrb[0].mxu0 %v189
    %v4441 = vpop.f32.mrb[0].mxu0
    %v4442 = vadd.f32 %v4402, %v4441
    %v4443 = vpop.f32.mrb[0].mxu0
    %v4444 = vpop.f32.mrb[0].mxu0
    %v4445 = vpop.f32.mrb[0].mxu0
    %4446 = vdwg.mxu0
    %4447 = vmatprep.subr.bf16.mxu0 0
    %4448 = vmatpush1.bf16.msra.mxu0 %v3278
    %4449 = vmatprep.subr.bf16.mxu0 0
    %4450 = vmatpush1.bf16.msra.mxu0 %v3279
    %4451 = vmatprep.subr.bf16.mxu0 0
    %4452 = vmatpush1.bf16.msra.mxu0 %v3280
    %4453 = vmatprep.subr.bf16.mxu0 0
    %4454 = vmatpush1.bf16.msra.mxu0 %v3281
    %4455 = vmatprep.subr.bf16.mxu0 0
    %4456 = vmatpush1.bf16.msra.mxu0 %v3282
    %4457 = vmatprep.subr.bf16.mxu0 0
    %4458 = vmatpush1.bf16.msra.mxu0 %v3283
    %4459 = vmatprep.subr.bf16.mxu0 0
    %4460 = vmatpush1.bf16.msra.mxu0 %v3284
    %4461 = vmatprep.subr.bf16.mxu0 0
    %4462 = vmatpush1.bf16.msra.mxu0 %v3285
    %4463 = vmatprep.subr.bf16.mxu0 0
    %4464 = vmatpush1.bf16.msra.mxu0 %v3286
    %4465 = vmatprep.subr.bf16.mxu0 0
    %4466 = vmatpush1.bf16.msra.mxu0 %v3287
    %4467 = vmatprep.subr.bf16.mxu0 0
    %4468 = vmatpush1.bf16.msra.mxu0 %v3288
    %4469 = vmatprep.subr.bf16.mxu0 0
    %4470 = vmatpush1.bf16.msra.mxu0 %v3289
    %4471 = vmatprep.subr.bf16.mxu0 0
    %4472 = vmatpush1.bf16.msra.mxu0 %v3290
    %4473 = vmatprep.subr.bf16.mxu0 0
    %4474 = vmatpush1.bf16.msra.mxu0 %v3291
    %4475 = vmatprep.subr.bf16.mxu0 0
    %4476 = vmatpush1.bf16.msra.mxu0 %v3292
    %4477 = vmatprep.subr.bf16.mxu0 0
    %4478 = vmatpush1.bf16.msra.mxu0 %v3293
    %4479 = vmatprep.mubr.bf16.mxu0 %v192
    %4480 = vmatmul.mubr.bf16.gmra.mrb[0].mxu0 %v191
    %v4481 = vpop.f32.mrb[0].mxu0
    %v4482 = vadd.f32 %v4442, %v4481
    %v4483 = vpop.f32.mrb[0].mxu0
    %v4484 = vpop.f32.mrb[0].mxu0
    %v4485 = vpop.f32.mrb[0].mxu0
    %4486 = vdwg.mxu0
    %4487 = vmatprep.subr.bf16.mxu0 0
    %4488 = vmatpush1.bf16.msra.mxu0 %v3294
    %4489 = vmatprep.subr.bf16.mxu0 0
    %4490 = vmatpush1.bf16.msra.mxu0 %v3295
    %4491 = vmatprep.subr.bf16.mxu0 0
    %4492 = vmatpush1.bf16.msra.mxu0 %v3296
    %4493 = vmatprep.subr.bf16.mxu0 0
    %4494 = vmatpush1.bf16.msra.mxu0 %v3297
    %4495 = vmatprep.subr.bf16.mxu0 0
    %4496 = vmatpush1.bf16.msra.mxu0 %v3298
    %4497 = vmatprep.subr.bf16.mxu0 0
    %4498 = vmatpush1.bf16.msra.mxu0 %v3299
    %4499 = vmatprep.subr.bf16.mxu0 0
    %4500 = vmatpush1.bf16.msra.mxu0 %v3300
    %4501 = vmatprep.subr.bf16.mxu0 0
    %4502 = vmatpush1.bf16.msra.mxu0 %v3301
    %4503 = vmatprep.subr.bf16.mxu0 0
    %4504 = vmatpush1.bf16.msra.mxu0 %v3302
    %4505 = vmatprep.subr.bf16.mxu0 0
    %4506 = vmatpush1.bf16.msra.mxu0 %v3303
    %4507 = vmatprep.subr.bf16.mxu0 0
    %4508 = vmatpush1.bf16.msra.mxu0 %v3304
    %4509 = vmatprep.subr.bf16.mxu0 0
    %4510 = vmatpush1.bf16.msra.mxu0 %v3305
    %4511 = vmatprep.subr.bf16.mxu0 0
    %4512 = vmatpush1.bf16.msra.mxu0 %v3306
    %4513 = vmatprep.subr.bf16.mxu0 0
    %4514 = vmatpush1.bf16.msra.mxu0 %v3307
    %4515 = vmatprep.subr.bf16.mxu0 0
    %4516 = vmatpush1.bf16.msra.mxu0 %v3308
    %4517 = vmatprep.subr.bf16.mxu0 0
    %4518 = vmatpush1.bf16.msra.mxu0 %v3309
    %4519 = vmatprep.mubr.bf16.mxu0 %v194
    %4520 = vmatmul.mubr.bf16.gmra.mrb[0].mxu0 %v193
    %v4521 = vpop.f32.mrb[0].mxu0
    %v4522 = vadd.f32 %v4482, %v4521
    %v4523 = vpop.f32.mrb[0].mxu0
    %v4524 = vpop.f32.mrb[0].mxu0
    %v4525 = vpop.f32.mrb[0].mxu0
    %4526 = vdwg.mxu0
    %4527 = vmatprep.subr.bf16.mxu0 0
    %4528 = vmatpush1.bf16.msra.mxu0 %v3310
    %4529 = vmatprep.subr.bf16.mxu0 0
    %4530 = vmatpush1.bf16.msra.mxu0 %v3311
    %4531 = vmatprep.subr.bf16.mxu0 0
    %4532 = vmatpush1.bf16.msra.mxu0 %v3312
    %4533 = vmatprep.subr.bf16.mxu0 0
    %4534 = vmatpush1.bf16.msra.mxu0 %v3313
    %4535 = vmatprep.subr.bf16.mxu0 0
    %4536 = vmatpush1.bf16.msra.mxu0 %v3314
    %4537 = vmatprep.subr.bf16.mxu0 0
    %4538 = vmatpush1.bf16.msra.mxu0 %v3315
    %4539 = vmatprep.subr.bf16.mxu0 0
    %4540 = vmatpush1.bf16.msra.mxu0 %v3316
    %4541 = vmatprep.subr.bf16.mxu0 0
    %4542 = vmatpush1.bf16.msra.mxu0 %v3317
    %4543 = vmatprep.subr.bf16.mxu0 0
    %4544 = vmatpush1.bf16.msra.mxu0 %v3318
    %4545 = vmatprep.subr.bf16.mxu0 0
    %4546 = vmatpush1.bf16.msra.mxu0 %v3319
    %4547 = vmatprep.subr.bf16.mxu0 0
    %4548 = vmatpush1.bf16.msra.mxu0 %v3320
    %4549 = vmatprep.subr.bf16.mxu0 0
    %4550 = vmatpush1.bf16.msra.mxu0 %v3321
    %4551 = vmatprep.subr.bf16.mxu0 0
    %4552 = vmatpush1.bf16.msra.mxu0 %v3322
    %4553 = vmatprep.subr.bf16.mxu0 0
    %4554 = vmatpush1.bf16.msra.mxu0 %v3323
    %4555 = vmatprep.subr.bf16.mxu0 0
    %4556 = vmatpush1.bf16.msra.mxu0 %v3324
    %4557 = vmatprep.subr.bf16.mxu0 0
    %4558 = vmatpush1.bf16.msra.mxu0 %v3325
    %4559 = vmatprep.mubr.bf16.mxu0 %v196
    %4560 = vmatmul.mubr.bf16.gmra.mrb[0].mxu0 %v195
    %v4561 = vpop.f32.mrb[0].mxu0
    %v4562 = vadd.f32 %v4522, %v4561
    %v4563 = vpop.f32.mrb[0].mxu0
    %v4564 = vpop.f32.mrb[0].mxu0
    %v4565 = vpop.f32.mrb[0].mxu0
    %4566 = vdwg.mxu0
    %4567 = vmatprep.subr.bf16.mxu0 0
    %4568 = vmatpush1.bf16.msra.mxu0 %v3326
    %4569 = vmatprep.subr.bf16.mxu0 0
    %4570 = vmatpush1.bf16.msra.mxu0 %v3327
    %4571 = vmatprep.subr.bf16.mxu0 0
    %4572 = vmatpush1.bf16.msra.mxu0 %v3328
    %4573 = vmatprep.subr.bf16.mxu0 0
    %4574 = vmatpush1.bf16.msra.mxu0 %v3329
    %4575 = vmatprep.subr.bf16.mxu0 0
    %4576 = vmatpush1.bf16.msra.mxu0 %v3330
    %4577 = vmatprep.subr.bf16.mxu0 0
    %4578 = vmatpush1.bf16.msra.mxu0 %v3331
    %4579 = vmatprep.subr.bf16.mxu0 0
    %4580 = vmatpush1.bf16.msra.mxu0 %v3332
    %4581 = vmatprep.subr.bf16.mxu0 0
    %4582 = vmatpush1.bf16.msra.mxu0 %v3333
    %4583 = vmatprep.subr.bf16.mxu0 0
    %4584 = vmatpush1.bf16.msra.mxu0 %v3334
    %4585 = vmatprep.subr.bf16.mxu0 0
    %4586 = vmatpush1.bf16.msra.mxu0 %v3335
    %4587 = vmatprep.subr.bf16.mxu0 0
    %4588 = vmatpush1.bf16.msra.mxu0 %v3336
    %4589 = vmatprep.subr.bf16.mxu0 0
    %4590 = vmatpush1.bf16.msra.mxu0 %v3337
    %4591 = vmatprep.subr.bf16.mxu0 0
    %4592 = vmatpush1.bf16.msra.mxu0 %v3338
    %4593 = vmatprep.subr.bf16.mxu0 0
    %4594 = vmatpush1.bf16.msra.mxu0 %v3339
    %4595 = vmatprep.subr.bf16.mxu0 0
    %4596 = vmatpush1.bf16.msra.mxu0 %v3340
    %4597 = vmatprep.subr.bf16.mxu0 0
    %4598 = vmatpush1.bf16.msra.mxu0 %v3341
    %4599 = vmatprep.mubr.bf16.mxu0 %v198
    %4600 = vmatmul.mubr.bf16.gmra.mrb[0].mxu0 %v197
    %v4601 = vpop.f32.mrb[0].mxu0
    %v4602 = vadd.f32 %v4562, %v4601
    %v4603 = vpop.f32.mrb[0].mxu0
    %v4604 = vpop.f32.mrb[0].mxu0
    %v4605 = vpop.f32.mrb[0].mxu0
    %4606 = vdwg.mxu0
    %4607 = vmatprep.subr.bf16.mxu0 0
    %4608 = vmatpush1.bf16.msra.mxu0 %v3342
    %4609 = vmatprep.subr.bf16.mxu0 0
    %4610 = vmatpush1.bf16.msra.mxu0 %v3343
    %4611 = vmatprep.subr.bf16.mxu0 0
    %4612 = vmatpush1.bf16.msra.mxu0 %v3344
    %4613 = vmatprep.subr.bf16.mxu0 0
    %4614 = vmatpush1.bf16.msra.mxu0 %v3345
    %4615 = vmatprep.subr.bf16.mxu0 0
    %4616 = vmatpush1.bf16.msra.mxu0 %v3346
    %4617 = vmatprep.subr.bf16.mxu0 0
    %4618 = vmatpush1.bf16.msra.mxu0 %v3347
    %4619 = vmatprep.subr.bf16.mxu0 0
    %4620 = vmatpush1.bf16.msra.mxu0 %v3348
    %4621 = vmatprep.subr.bf16.mxu0 0
    %4622 = vmatpush1.bf16.msra.mxu0 %v3349
    %4623 = vmatprep.subr.bf16.mxu0 0
    %4624 = vmatpush1.bf16.msra.mxu0 %v3350
    %4625 = vmatprep.subr.bf16.mxu0 0
    %4626 = vmatpush1.bf16.msra.mxu0 %v3351
    %4627 = vmatprep.subr.bf16.mxu0 0
    %4628 = vmatpush1.bf16.msra.mxu0 %v3352
    %4629 = vmatprep.subr.bf16.mxu0 0
    %4630 = vmatpush1.bf16.msra.mxu0 %v3353
    %4631 = vmatprep.subr.bf16.mxu0 0
    %4632 = vmatpush1.bf16.msra.mxu0 %v3354
    %4633 = vmatprep.subr.bf16.mxu0 0
    %4634 = vmatpush1.bf16.msra.mxu0 %v3355
    %4635 = vmatprep.subr.bf16.mxu0 0
    %4636 = vmatpush1.bf16.msra.mxu0 %v3356
    %4637 = vmatprep.subr.bf16.mxu0 0
    %4638 = vmatpush1.bf16.msra.mxu0 %v3357
    %4639 = vmatprep.mubr.bf16.mxu0 %v200
    %4640 = vmatmul.mubr.bf16.gmra.mrb[0].mxu0 %v199
    %v4641 = vpop.f32.mrb[0].mxu0
    %v4642 = vadd.f32 %v4602, %v4641
    %v4643 = vpop.f32.mrb[0].mxu0
    %v4644 = vpop.f32.mrb[0].mxu0
    %v4645 = vpop.f32.mrb[0].mxu0
    %4646 = vdwg.mxu0
    %4647 = vmatprep.subr.bf16.mxu0 0
    %4648 = vmatpush1.bf16.msra.mxu0 %v3358
    %4649 = vmatprep.subr.bf16.mxu0 0
    %4650 = vmatpush1.bf16.msra.mxu0 %v3359
    %4651 = vmatprep.subr.bf16.mxu0 0
    %4652 = vmatpush1.bf16.msra.mxu0 %v3360
    %4653 = vmatprep.subr.bf16.mxu0 0
    %4654 = vmatpush1.bf16.msra.mxu0 %v3361
    %4655 = vmatprep.subr.bf16.mxu0 0
    %4656 = vmatpush1.bf16.msra.mxu0 %v3362
    %4657 = vmatprep.subr.bf16.mxu0 0
    %4658 = vmatpush1.bf16.msra.mxu0 %v3363
    %4659 = vmatprep.subr.bf16.mxu0 0
    %4660 = vmatpush1.bf16.msra.mxu0 %v3364
    %4661 = vmatprep.subr.bf16.mxu0 0
    %4662 = vmatpush1.bf16.msra.mxu0 %v3365
    %4663 = vmatprep.subr.bf16.mxu0 0
    %4664 = vmatpush1.bf16.msra.mxu0 %v3366
    %4665 = vmatprep.subr.bf16.mxu0 0
    %4666 = vmatpush1.bf16.msra.mxu0 %v3367
    %4667 = vmatprep.subr.bf16.mxu0 0
    %4668 = vmatpush1.bf16.msra.mxu0 %v3368
    %4669 = vmatprep.subr.bf16.mxu0 0
    %4670 = vmatpush1.bf16.msra.mxu0 %v3369
    %4671 = vmatprep.subr.bf16.mxu0 0
    %4672 = vmatpush1.bf16.msra.mxu0 %v3370
    %4673 = vmatprep.subr.bf16.mxu0 0
    %4674 = vmatpush1.bf16.msra.mxu0 %v3371
    %4675 = vmatprep.subr.bf16.mxu0 0
    %4676 = vmatpush1.bf16.msra.mxu0 %v3372
    %4677 = vmatprep.subr.bf16.mxu0 0
    %4678 = vmatpush1.bf16.msra.mxu0 %v3373
    %4679 = vmatprep.mubr.bf16.mxu0 %v202
    %4680 = vmatmul.mubr.bf16.gmra.mrb[0].mxu0 %v201
    %v4681 = vpop.f32.mrb[0].mxu0
    %v4682 = vadd.f32 %v4642, %v4681
    %v4683 = vpop.f32.mrb[0].mxu0
    %v4684 = vpop.f32.mrb[0].mxu0
    %v4685 = vpop.f32.mrb[0].mxu0
    %4686 = vdwg.mxu0
    %4687 = vmatprep.subr.bf16.mxu0 0
    %4688 = vmatpush1.bf16.msra.mxu0 %v3374
    %4689 = vmatprep.subr.bf16.mxu0 0
    %4690 = vmatpush1.bf16.msra.mxu0 %v3375
    %4691 = vmatprep.subr.bf16.mxu0 0
    %4692 = vmatpush1.bf16.msra.mxu0 %v3376
    %4693 = vmatprep.subr.bf16.mxu0 0
    %4694 = vmatpush1.bf16.msra.mxu0 %v3377
    %4695 = vmatprep.subr.bf16.mxu0 0
    %4696 = vmatpush1.bf16.msra.mxu0 %v3378
    %4697 = vmatprep.subr.bf16.mxu0 0
    %4698 = vmatpush1.bf16.msra.mxu0 %v3379
    %4699 = vmatprep.subr.bf16.mxu0 0
    %4700 = vmatpush1.bf16.msra.mxu0 %v3380
    %4701 = vmatprep.subr.bf16.mxu0 0
    %4702 = vmatpush1.bf16.msra.mxu0 %v3381
    %4703 = vmatprep.subr.bf16.mxu0 0
    %4704 = vmatpush1.bf16.msra.mxu0 %v3382
    %4705 = vmatprep.subr.bf16.mxu0 0
    %4706 = vmatpush1.bf16.msra.mxu0 %v3383
    %4707 = vmatprep.subr.bf16.mxu0 0
    %4708 = vmatpush1.bf16.msra.mxu0 %v3384
    %4709 = vmatprep.subr.bf16.mxu0 0
    %4710 = vmatpush1.bf16.msra.mxu0 %v3385
    %4711 = vmatprep.subr.bf16.mxu0 0
    %4712 = vmatpush1.bf16.msra.mxu0 %v3386
    %4713 = vmatprep.subr.bf16.mxu0 0
    %4714 = vmatpush1.bf16.msra.mxu0 %v3387
    %4715 = vmatprep.subr.bf16.mxu0 0
    %4716 = vmatpush1.bf16.msra.mxu0 %v3388
    %4717 = vmatprep.subr.bf16.mxu0 0
    %4718 = vmatpush1.bf16.msra.mxu0 %v3389
    %4719 = vmatprep.mubr.bf16.mxu0 %v204
    %4720 = vmatmul.mubr.bf16.gmra.mrb[0].mxu0 %v203
    %v4721 = vpop.f32.mrb[0].mxu0
    %v4722 = vadd.f32 %v4682, %v4721
    %v4723 = vpop.f32.mrb[0].mxu0
    %v4724 = vpop.f32.mrb[0].mxu0
    %v4725 = vpop.f32.mrb[0].mxu0
    %4726 = vdwg.mxu0
    %4727 = vmatprep.subr.bf16.mxu0 0
    %4728 = vmatpush1.bf16.msra.mxu0 %v3390
    %4729 = vmatprep.subr.bf16.mxu0 0
    %4730 = vmatpush1.bf16.msra.mxu0 %v3391
    %4731 = vmatprep.subr.bf16.mxu0 0
    %4732 = vmatpush1.bf16.msra.mxu0 %v3392
    %4733 = vmatprep.subr.bf16.mxu0 0
    %4734 = vmatpush1.bf16.msra.mxu0 %v3393
    %4735 = vmatprep.subr.bf16.mxu0 0
    %4736 = vmatpush1.bf16.msra.mxu0 %v3394
    %4737 = vmatprep.subr.bf16.mxu0 0
    %4738 = vmatpush1.bf16.msra.mxu0 %v3395
    %4739 = vmatprep.subr.bf16.mxu0 0
    %4740 = vmatpush1.bf16.msra.mxu0 %v3396
    %4741 = vmatprep.subr.bf16.mxu0 0
    %4742 = vmatpush1.bf16.msra.mxu0 %v3397
    %4743 = vmatprep.subr.bf16.mxu0 0
    %4744 = vmatpush1.bf16.msra.mxu0 %v3398
    %4745 = vmatprep.subr.bf16.mxu0 0
    %4746 = vmatpush1.bf16.msra.mxu0 %v3399
    %4747 = vmatprep.subr.bf16.mxu0 0
    %4748 = vmatpush1.bf16.msra.mxu0 %v3400
    %4749 = vmatprep.subr.bf16.mxu0 0
    %4750 = vmatpush1.bf16.msra.mxu0 %v3401
    %4751 = vmatprep.subr.bf16.mxu0 0
    %4752 = vmatpush1.bf16.msra.mxu0 %v3402
    %4753 = vmatprep.subr.bf16.mxu0 0
    %4754 = vmatpush1.bf16.msra.mxu0 %v3403
    %4755 = vmatprep.subr.bf16.mxu0 0
    %4756 = vmatpush1.bf16.msra.mxu0 %v3404
    %4757 = vmatprep.subr.bf16.mxu0 0
    %4758 = vmatpush1.bf16.msra.mxu0 %v3405
    %4759 = vmatprep.mubr.bf16.mxu0 %v206
    %4760 = vmatmul.mubr.bf16.gmra.mrb[0].mxu0 %v205
    %v4761 = vpop.f32.mrb[0].mxu0
    %v4762 = vadd.f32 %v4722, %v4761
    %v4763 = vpop.f32.mrb[0].mxu0
    %v4764 = vpop.f32.mrb[0].mxu0
    %v4765 = vpop.f32.mrb[0].mxu0
    %4766 = vdwg.mxu0
    %4767 = vmatprep.subr.bf16.mxu0 0
    %4768 = vmatpush1.bf16.msra.mxu0 %v3406
    %4769 = vmatprep.subr.bf16.mxu0 0
    %4770 = vmatpush1.bf16.msra.mxu0 %v3407
    %4771 = vmatprep.subr.bf16.mxu0 0
    %4772 = vmatpush1.bf16.msra.mxu0 %v3408
    %4773 = vmatprep.subr.bf16.mxu0 0
    %4774 = vmatpush1.bf16.msra.mxu0 %v3409
    %4775 = vmatprep.subr.bf16.mxu0 0
    %4776 = vmatpush1.bf16.msra.mxu0 %v3410
    %4777 = vmatprep.subr.bf16.mxu0 0
    %4778 = vmatpush1.bf16.msra.mxu0 %v3411
    %4779 = vmatprep.subr.bf16.mxu0 0
    %4780 = vmatpush1.bf16.msra.mxu0 %v3412
    %4781 = vmatprep.subr.bf16.mxu0 0
    %4782 = vmatpush1.bf16.msra.mxu0 %v3413
    %4783 = vmatprep.subr.bf16.mxu0 0
    %4784 = vmatpush1.bf16.msra.mxu0 %v3414
    %4785 = vmatprep.subr.bf16.mxu0 0
    %4786 = vmatpush1.bf16.msra.mxu0 %v3415
    %4787 = vmatprep.subr.bf16.mxu0 0
    %4788 = vmatpush1.bf16.msra.mxu0 %v3416
    %4789 = vmatprep.subr.bf16.mxu0 0
    %4790 = vmatpush1.bf16.msra.mxu0 %v3417
    %4791 = vmatprep.subr.bf16.mxu0 0
    %4792 = vmatpush1.bf16.msra.mxu0 %v3418
    %4793 = vmatprep.subr.bf16.mxu0 0
    %4794 = vmatpush1.bf16.msra.mxu0 %v3419
    %4795 = vmatprep.subr.bf16.mxu0 0
    %4796 = vmatpush1.bf16.msra.mxu0 %v3420
    %4797 = vmatprep.subr.bf16.mxu0 0
    %4798 = vmatpush1.bf16.msra.mxu0 %v3421
    %4799 = vmatprep.mubr.bf16.mxu0 %v208
    %4800 = vmatmul.mubr.bf16.gmra.mrb[0].mxu0 %v207
    %v4801 = vpop.f32.mrb[0].mxu0
    %v4802 = vadd.f32 %v4762, %v4801
    %v4803 = vpop.f32.mrb[0].mxu0
    %v4804 = vpop.f32.mrb[0].mxu0
    %v4805 = vpop.f32.mrb[0].mxu0
    %4806 = vdwg.mxu0
    %4807 = vmatprep.subr.bf16.mxu0 0
    %4808 = vmatpush1.bf16.msra.mxu0 %v3422
    %4809 = vmatprep.subr.bf16.mxu0 0
    %4810 = vmatpush1.bf16.msra.mxu0 %v3423
    %4811 = vmatprep.subr.bf16.mxu0 0
    %4812 = vmatpush1.bf16.msra.mxu0 %v3424
    %4813 = vmatprep.subr.bf16.mxu0 0
    %4814 = vmatpush1.bf16.msra.mxu0 %v3425
    %4815 = vmatprep.subr.bf16.mxu0 0
    %4816 = vmatpush1.bf16.msra.mxu0 %v3426
    %4817 = vmatprep.subr.bf16.mxu0 0
    %4818 = vmatpush1.bf16.msra.mxu0 %v3427
    %4819 = vmatprep.subr.bf16.mxu0 0
    %4820 = vmatpush1.bf16.msra.mxu0 %v3428
    %4821 = vmatprep.subr.bf16.mxu0 0
    %4822 = vmatpush1.bf16.msra.mxu0 %v3429
    %4823 = vmatprep.subr.bf16.mxu0 0
    %4824 = vmatpush1.bf16.msra.mxu0 %v3430
    %4825 = vmatprep.subr.bf16.mxu0 0
    %4826 = vmatpush1.bf16.msra.mxu0 %v3431
    %4827 = vmatprep.subr.bf16.mxu0 0
    %4828 = vmatpush1.bf16.msra.mxu0 %v3432
    %4829 = vmatprep.subr.bf16.mxu0 0
    %4830 = vmatpush1.bf16.msra.mxu0 %v3433
    %4831 = vmatprep.subr.bf16.mxu0 0
    %4832 = vmatpush1.bf16.msra.mxu0 %v3434
    %4833 = vmatprep.subr.bf16.mxu0 0
    %4834 = vmatpush1.bf16.msra.mxu0 %v3435
    %4835 = vmatprep.subr.bf16.mxu0 0
    %4836 = vmatpush1.bf16.msra.mxu0 %v3436
    %4837 = vmatprep.subr.bf16.mxu0 0
    %4838 = vmatpush1.bf16.msra.mxu0 %v3437
    %4839 = vmatprep.mubr.bf16.mxu0 %v210
    %4840 = vmatmul.mubr.bf16.gmra.mrb[0].mxu0 %v209
    %v4841 = vpop.f32.mrb[0].mxu0
    %v4842 = vadd.f32 %v4802, %v4841
    %v4843 = vpop.f32.mrb[0].mxu0
    %v4844 = vpop.f32.mrb[0].mxu0
    %v4845 = vpop.f32.mrb[0].mxu0
    %4846 = vdwg.mxu0
    %4847 = vmatprep.subr.bf16.mxu0 0
    %4848 = vmatpush1.bf16.msra.mxu0 %v3438
    %4849 = vmatprep.subr.bf16.mxu0 0
    %4850 = vmatpush1.bf16.msra.mxu0 %v3439
    %4851 = vmatprep.subr.bf16.mxu0 0
    %4852 = vmatpush1.bf16.msra.mxu0 %v3440
    %4853 = vmatprep.subr.bf16.mxu0 0
    %4854 = vmatpush1.bf16.msra.mxu0 %v3441
    %4855 = vmatprep.subr.bf16.mxu0 0
    %4856 = vmatpush1.bf16.msra.mxu0 %v3442
    %4857 = vmatprep.subr.bf16.mxu0 0
    %4858 = vmatpush1.bf16.msra.mxu0 %v3443
    %4859 = vmatprep.subr.bf16.mxu0 0
    %4860 = vmatpush1.bf16.msra.mxu0 %v3444
    %4861 = vmatprep.subr.bf16.mxu0 0
    %4862 = vmatpush1.bf16.msra.mxu0 %v3445
    %4863 = vmatprep.subr.bf16.mxu0 0
    %4864 = vmatpush1.bf16.msra.mxu0 %v3446
    %4865 = vmatprep.subr.bf16.mxu0 0
    %4866 = vmatpush1.bf16.msra.mxu0 %v3447
    %4867 = vmatprep.subr.bf16.mxu0 0
    %4868 = vmatpush1.bf16.msra.mxu0 %v3448
    %4869 = vmatprep.subr.bf16.mxu0 0
    %4870 = vmatpush1.bf16.msra.mxu0 %v3449
    %4871 = vmatprep.subr.bf16.mxu0 0
    %4872 = vmatpush1.bf16.msra.mxu0 %v3450
    %4873 = vmatprep.subr.bf16.mxu0 0
    %4874 = vmatpush1.bf16.msra.mxu0 %v3451
    %4875 = vmatprep.subr.bf16.mxu0 0
    %4876 = vmatpush1.bf16.msra.mxu0 %v3452
    %4877 = vmatprep.subr.bf16.mxu0 0
    %4878 = vmatpush1.bf16.msra.mxu0 %v3453
    %4879 = vmatprep.mubr.bf16.mxu0 %v212
    %4880 = vmatmul.mubr.bf16.gmra.mrb[0].mxu0 %v211
    %v4881 = vpop.f32.mrb[0].mxu0
    %v4882 = vadd.f32 %v4842, %v4881
    %v4883 = vpop.f32.mrb[0].mxu0
    %v4884 = vpop.f32.mrb[0].mxu0
    %v4885 = vpop.f32.mrb[0].mxu0
    %4886 = vdwg.mxu0
    %4887 = vmatprep.subr.bf16.mxu0 0
    %4888 = vmatpush1.bf16.msra.mxu0 %v3454
    %4889 = vmatprep.subr.bf16.mxu0 0
    %4890 = vmatpush1.bf16.msra.mxu0 %v3455
    %4891 = vmatprep.subr.bf16.mxu0 0
    %4892 = vmatpush1.bf16.msra.mxu0 %v3456
    %4893 = vmatprep.subr.bf16.mxu0 0
    %4894 = vmatpush1.bf16.msra.mxu0 %v3457
    %4895 = vmatprep.subr.bf16.mxu0 0
    %4896 = vmatpush1.bf16.msra.mxu0 %v3458
    %4897 = vmatprep.subr.bf16.mxu0 0
    %4898 = vmatpush1.bf16.msra.mxu0 %v3459
    %4899 = vmatprep.subr.bf16.mxu0 0
    %4900 = vmatpush1.bf16.msra.mxu0 %v3460
    %4901 = vmatprep.subr.bf16.mxu0 0
    %4902 = vmatpush1.bf16.msra.mxu0 %v3461
    %4903 = vmatprep.subr.bf16.mxu0 0
    %4904 = vmatpush1.bf16.msra.mxu0 %v3462
    %4905 = vmatprep.subr.bf16.mxu0 0
    %4906 = vmatpush1.bf16.msra.mxu0 %v3463
    %4907 = vmatprep.subr.bf16.mxu0 0
    %4908 = vmatpush1.bf16.msra.mxu0 %v3464
    %4909 = vmatprep.subr.bf16.mxu0 0
    %4910 = vmatpush1.bf16.msra.mxu0 %v3465
    %4911 = vmatprep.subr.bf16.mxu0 0
    %4912 = vmatpush1.bf16.msra.mxu0 %v3466
    %4913 = vmatprep.subr.bf16.mxu0 0
    %4914 = vmatpush1.bf16.msra.mxu0 %v3467
    %4915 = vmatprep.subr.bf16.mxu0 0
    %4916 = vmatpush1.bf16.msra.mxu0 %v3468
    %4917 = vmatprep.subr.bf16.mxu0 0
    %4918 = vmatpush1.bf16.msra.mxu0 %v3469
    %4919 = vmatprep.mubr.bf16.mxu0 %v214
    %4920 = vmatmul.mubr.bf16.gmra.mrb[0].mxu0 %v213
    %v4921 = vpop.f32.mrb[0].mxu0
    %v4922 = vadd.f32 %v4882, %v4921
    %v4923 = vpop.f32.mrb[0].mxu0
    %v4924 = vpop.f32.mrb[0].mxu0
    %v4925 = vpop.f32.mrb[0].mxu0
    %4926 = vdwg.mxu0
    %4927 = vmatprep.subr.bf16.mxu0 0
    %4928 = vmatpush1.bf16.msra.mxu0 %v3470
    %4929 = vmatprep.subr.bf16.mxu0 0
    %4930 = vmatpush1.bf16.msra.mxu0 %v3471
    %4931 = vmatprep.subr.bf16.mxu0 0
    %4932 = vmatpush1.bf16.msra.mxu0 %v3472
    %4933 = vmatprep.subr.bf16.mxu0 0
    %4934 = vmatpush1.bf16.msra.mxu0 %v3473
    %4935 = vmatprep.subr.bf16.mxu0 0
    %4936 = vmatpush1.bf16.msra.mxu0 %v3474
    %4937 = vmatprep.subr.bf16.mxu0 0
    %4938 = vmatpush1.bf16.msra.mxu0 %v3475
    %4939 = vmatprep.subr.bf16.mxu0 0
    %4940 = vmatpush1.bf16.msra.mxu0 %v3476
    %4941 = vmatprep.subr.bf16.mxu0 0
    %4942 = vmatpush1.bf16.msra.mxu0 %v3477
    %4943 = vmatprep.subr.bf16.mxu0 0
    %4944 = vmatpush1.bf16.msra.mxu0 %v3478
    %4945 = vmatprep.subr.bf16.mxu0 0
    %4946 = vmatpush1.bf16.msra.mxu0 %v3479
    %4947 = vmatprep.subr.bf16.mxu0 0
    %4948 = vmatpush1.bf16.msra.mxu0 %v3480
    %4949 = vmatprep.subr.bf16.mxu0 0
    %4950 = vmatpush1.bf16.msra.mxu0 %v3481
    %4951 = vmatprep.subr.bf16.mxu0 0
    %4952 = vmatpush1.bf16.msra.mxu0 %v3482
    %4953 = vmatprep.subr.bf16.mxu0 0
    %4954 = vmatpush1.bf16.msra.mxu0 %v3483
    %4955 = vmatprep.subr.bf16.mxu0 0
    %4956 = vmatpush1.bf16.msra.mxu0 %v3484
    %4957 = vmatprep.subr.bf16.mxu0 0
    %4958 = vmatpush1.bf16.msra.mxu0 %v3485
    %4959 = vmatprep.mubr.bf16.mxu0 %v216
    %4960 = vmatmul.mubr.bf16.gmra.mrb[0].mxu0 %v215
    %v4961 = vpop.f32.mrb[0].mxu0
    %v4962 = vadd.f32 %v4922, %v4961
    %v4963 = vpop.f32.mrb[0].mxu0
    %v4964 = vpop.f32.mrb[0].mxu0
    %v4965 = vpop.f32.mrb[0].mxu0
    %4966 = vdwg.mxu0
    %4967 = vmatprep.subr.bf16.mxu0 0
    %4968 = vmatpush1.bf16.msra.mxu0 %v3486
    %4969 = vmatprep.subr.bf16.mxu0 0
    %4970 = vmatpush1.bf16.msra.mxu0 %v3487
    %4971 = vmatprep.subr.bf16.mxu0 0
    %4972 = vmatpush1.bf16.msra.mxu0 %v3488
    %4973 = vmatprep.subr.bf16.mxu0 0
    %4974 = vmatpush1.bf16.msra.mxu0 %v3489
    %4975 = vmatprep.subr.bf16.mxu0 0
    %4976 = vmatpush1.bf16.msra.mxu0 %v3490
    %4977 = vmatprep.subr.bf16.mxu0 0
    %4978 = vmatpush1.bf16.msra.mxu0 %v3491
    %4979 = vmatprep.subr.bf16.mxu0 0
    %4980 = vmatpush1.bf16.msra.mxu0 %v3492
    %4981 = vmatprep.subr.bf16.mxu0 0
    %4982 = vmatpush1.bf16.msra.mxu0 %v3493
    %4983 = vmatprep.subr.bf16.mxu0 0
    %4984 = vmatpush1.bf16.msra.mxu0 %v3494
    %4985 = vmatprep.subr.bf16.mxu0 0
    %4986 = vmatpush1.bf16.msra.mxu0 %v3495
    %4987 = vmatprep.subr.bf16.mxu0 0
    %4988 = vmatpush1.bf16.msra.mxu0 %v3496
    %4989 = vmatprep.subr.bf16.mxu0 0
    %4990 = vmatpush1.bf16.msra.mxu0 %v3497
    %4991 = vmatprep.subr.bf16.mxu0 0
    %4992 = vmatpush1.bf16.msra.mxu0 %v3498
    %4993 = vmatprep.subr.bf16.mxu0 0
    %4994 = vmatpush1.bf16.msra.mxu0 %v3499
    %4995 = vmatprep.subr.bf16.mxu0 0
    %4996 = vmatpush1.bf16.msra.mxu0 %v3500
    %4997 = vmatprep.subr.bf16.mxu0 0
    %4998 = vmatpush1.bf16.msra.mxu0 %v3501
    %4999 = vmatprep.mubr.bf16.mxu0 %v218
    %5000 = vmatmul.mubr.bf16.gmra.mrb[0].mxu0 %v217
    %v5001 = vpop.f32.mrb[0].mxu0
    %v5002 = vadd.f32 %v4962, %v5001
    %v5003 = vpop.f32.mrb[0].mxu0
    %v5004 = vpop.f32.mrb[0].mxu0
    %v5005 = vpop.f32.mrb[0].mxu0
    %5006 = vdwg.mxu0
    %5007 = vmatprep.subr.bf16.mxu0 0
    %5008 = vmatpush1.bf16.msra.mxu0 %v3502
    %5009 = vmatprep.subr.bf16.mxu0 0
    %5010 = vmatpush1.bf16.msra.mxu0 %v3503
    %5011 = vmatprep.subr.bf16.mxu0 0
    %5012 = vmatpush1.bf16.msra.mxu0 %v3504
    %5013 = vmatprep.subr.bf16.mxu0 0
    %5014 = vmatpush1.bf16.msra.mxu0 %v3505
    %5015 = vmatprep.subr.bf16.mxu0 0
    %5016 = vmatpush1.bf16.msra.mxu0 %v3506
    %5017 = vmatprep.subr.bf16.mxu0 0
    %5018 = vmatpush1.bf16.msra.mxu0 %v3507
    %5019 = vmatprep.subr.bf16.mxu0 0
    %5020 = vmatpush1.bf16.msra.mxu0 %v3508
    %5021 = vmatprep.subr.bf16.mxu0 0
    %5022 = vmatpush1.bf16.msra.mxu0 %v3509
    %5023 = vmatprep.subr.bf16.mxu0 0
    %5024 = vmatpush1.bf16.msra.mxu0 %v3510
    %5025 = vmatprep.subr.bf16.mxu0 0
    %5026 = vmatpush1.bf16.msra.mxu0 %v3511
    %5027 = vmatprep.subr.bf16.mxu0 0
    %5028 = vmatpush1.bf16.msra.mxu0 %v3512
    %5029 = vmatprep.subr.bf16.mxu0 0
    %5030 = vmatpush1.bf16.msra.mxu0 %v3513
    %5031 = vmatprep.subr.bf16.mxu0 0
    %5032 = vmatpush1.bf16.msra.mxu0 %v3514
    %5033 = vmatprep.subr.bf16.mxu0 0
    %5034 = vmatpush1.bf16.msra.mxu0 %v3515
    %5035 = vmatprep.subr.bf16.mxu0 0
    %5036 = vmatpush1.bf16.msra.mxu0 %v3516
    %5037 = vmatprep.subr.bf16.mxu0 0
    %5038 = vmatpush1.bf16.msra.mxu0 %v3517
    %5039 = vmatprep.mubr.bf16.mxu0 %v220
    %5040 = vmatmul.mubr.bf16.gmra.mrb[0].mxu0 %v219
    %v5041 = vpop.f32.mrb[0].mxu0
    %v5042 = vadd.f32 %v5002, %v5041
    %v5043 = vpop.f32.mrb[0].mxu0
    %v5044 = vpop.f32.mrb[0].mxu0
    %v5045 = vpop.f32.mrb[0].mxu0
    %5046 = vdwg.mxu0
    %5047 = vmatprep.subr.bf16.mxu0 0
    %5048 = vmatpush1.bf16.msra.mxu0 %v3518
    %5049 = vmatprep.subr.bf16.mxu0 0
    %5050 = vmatpush1.bf16.msra.mxu0 %v3519
    %5051 = vmatprep.subr.bf16.mxu0 0
    %5052 = vmatpush1.bf16.msra.mxu0 %v3520
    %5053 = vmatprep.subr.bf16.mxu0 0
    %5054 = vmatpush1.bf16.msra.mxu0 %v3521
    %5055 = vmatprep.subr.bf16.mxu0 0
    %5056 = vmatpush1.bf16.msra.mxu0 %v3522
    %5057 = vmatprep.subr.bf16.mxu0 0
    %5058 = vmatpush1.bf16.msra.mxu0 %v3523
    %5059 = vmatprep.subr.bf16.mxu0 0
    %5060 = vmatpush1.bf16.msra.mxu0 %v3524
    %5061 = vmatprep.subr.bf16.mxu0 0
    %5062 = vmatpush1.bf16.msra.mxu0 %v3525
    %5063 = vmatprep.subr.bf16.mxu0 0
    %5064 = vmatpush1.bf16.msra.mxu0 %v3526
    %5065 = vmatprep.subr.bf16.mxu0 0
    %5066 = vmatpush1.bf16.msra.mxu0 %v3527
    %5067 = vmatprep.subr.bf16.mxu0 0
    %5068 = vmatpush1.bf16.msra.mxu0 %v3528
    %5069 = vmatprep.subr.bf16.mxu0 0
    %5070 = vmatpush1.bf16.msra.mxu0 %v3529
    %5071 = vmatprep.subr.bf16.mxu0 0
    %5072 = vmatpush1.bf16.msra.mxu0 %v3530
    %5073 = vmatprep.subr.bf16.mxu0 0
    %5074 = vmatpush1.bf16.msra.mxu0 %v3531
    %5075 = vmatprep.subr.bf16.mxu0 0
    %5076 = vmatpush1.bf16.msra.mxu0 %v3532
    %5077 = vmatprep.subr.bf16.mxu0 0
    %5078 = vmatpush1.bf16.msra.mxu0 %v3533
    %5079 = vmatprep.mubr.bf16.mxu0 %v222
    %5080 = vmatmul.mubr.bf16.gmra.mrb[0].mxu0 %v221
    %v5081 = vpop.f32.mrb[0].mxu0
    %v5082 = vadd.f32 %v5042, %v5081
    %v5083 = vpop.f32.mrb[0].mxu0
    %v5084 = vpop.f32.mrb[0].mxu0
    %v5085 = vpop.f32.mrb[0].mxu0
    %5086 = vdwg.mxu0
    %5087 = vmatprep.subr.bf16.mxu0 0
    %5088 = vmatpush1.bf16.msra.mxu0 %v3534
    %5089 = vmatprep.subr.bf16.mxu0 0
    %5090 = vmatpush1.bf16.msra.mxu0 %v3535
    %5091 = vmatprep.subr.bf16.mxu0 0
    %5092 = vmatpush1.bf16.msra.mxu0 %v3536
    %5093 = vmatprep.subr.bf16.mxu0 0
    %5094 = vmatpush1.bf16.msra.mxu0 %v3537
    %5095 = vmatprep.subr.bf16.mxu0 0
    %5096 = vmatpush1.bf16.msra.mxu0 %v3538
    %5097 = vmatprep.subr.bf16.mxu0 0
    %5098 = vmatpush1.bf16.msra.mxu0 %v3539
    %5099 = vmatprep.subr.bf16.mxu0 0
    %5100 = vmatpush1.bf16.msra.mxu0 %v3540
    %5101 = vmatprep.subr.bf16.mxu0 0
    %5102 = vmatpush1.bf16.msra.mxu0 %v3541
    %5103 = vmatprep.subr.bf16.mxu0 0
    %5104 = vmatpush1.bf16.msra.mxu0 %v3542
    %5105 = vmatprep.subr.bf16.mxu0 0
    %5106 = vmatpush1.bf16.msra.mxu0 %v3543
    %5107 = vmatprep.subr.bf16.mxu0 0
    %5108 = vmatpush1.bf16.msra.mxu0 %v3544
    %5109 = vmatprep.subr.bf16.mxu0 0
    %5110 = vmatpush1.bf16.msra.mxu0 %v3545
    %5111 = vmatprep.subr.bf16.mxu0 0
    %5112 = vmatpush1.bf16.msra.mxu0 %v3546
    %5113 = vmatprep.subr.bf16.mxu0 0
    %5114 = vmatpush1.bf16.msra.mxu0 %v3547
    %5115 = vmatprep.subr.bf16.mxu0 0
    %5116 = vmatpush1.bf16.msra.mxu0 %v3548
    %5117 = vmatprep.subr.bf16.mxu0 0
    %5118 = vmatpush1.bf16.msra.mxu0 %v3549
    %5119 = vmatprep.mubr.bf16.mxu0 %v224
    %5120 = vmatmul.mubr.bf16.gmra.mrb[0].mxu0 %v223
    %v5121 = vpop.f32.mrb[0].mxu0
    %v5122 = vadd.f32 %v5082, %v5121
    %v5123 = vpop.f32.mrb[0].mxu0
    %v5124 = vpop.f32.mrb[0].mxu0
    %v5125 = vpop.f32.mrb[0].mxu0
    %5126 = vdwg.mxu0
    %5127 = vmatprep.subr.bf16.mxu0 0
    %5128 = vmatpush1.bf16.msra.mxu0 %v3550
    %5129 = vmatprep.subr.bf16.mxu0 0
    %5130 = vmatpush1.bf16.msra.mxu0 %v3551
    %5131 = vmatprep.subr.bf16.mxu0 0
    %5132 = vmatpush1.bf16.msra.mxu0 %v3552
    %5133 = vmatprep.subr.bf16.mxu0 0
    %5134 = vmatpush1.bf16.msra.mxu0 %v3553
    %5135 = vmatprep.subr.bf16.mxu0 0
    %5136 = vmatpush1.bf16.msra.mxu0 %v3554
    %5137 = vmatprep.subr.bf16.mxu0 0
    %5138 = vmatpush1.bf16.msra.mxu0 %v3555
    %5139 = vmatprep.subr.bf16.mxu0 0
    %5140 = vmatpush1.bf16.msra.mxu0 %v3556
    %5141 = vmatprep.subr.bf16.mxu0 0
    %5142 = vmatpush1.bf16.msra.mxu0 %v3557
    %5143 = vmatprep.subr.bf16.mxu0 0
    %5144 = vmatpush1.bf16.msra.mxu0 %v3558
    %5145 = vmatprep.subr.bf16.mxu0 0
    %5146 = vmatpush1.bf16.msra.mxu0 %v3559
    %5147 = vmatprep.subr.bf16.mxu0 0
    %5148 = vmatpush1.bf16.msra.mxu0 %v3560
    %5149 = vmatprep.subr.bf16.mxu0 0
    %5150 = vmatpush1.bf16.msra.mxu0 %v3561
    %5151 = vmatprep.subr.bf16.mxu0 0
    %5152 = vmatpush1.bf16.msra.mxu0 %v3562
    %5153 = vmatprep.subr.bf16.mxu0 0
    %5154 = vmatpush1.bf16.msra.mxu0 %v3563
    %5155 = vmatprep.subr.bf16.mxu0 0
    %5156 = vmatpush1.bf16.msra.mxu0 %v3564
    %5157 = vmatprep.subr.bf16.mxu0 0
    %5158 = vmatpush1.bf16.msra.mxu0 %v3565
    %5159 = vmatprep.mubr.bf16.mxu0 %v226
    %5160 = vmatmul.mubr.bf16.gmra.mrb[0].mxu0 %v225
    %v5161 = vpop.f32.mrb[0].mxu0
    %v5162 = vadd.f32 %v5122, %v5161
    %v5163 = vpop.f32.mrb[0].mxu0
    %v5164 = vpop.f32.mrb[0].mxu0
    %v5165 = vpop.f32.mrb[0].mxu0
    %5166 = vdwg.mxu0
    %5167 = vmatprep.subr.bf16.mxu0 0
    %5168 = vmatpush1.bf16.msra.mxu0 %v3566
    %5169 = vmatprep.subr.bf16.mxu0 0
    %5170 = vmatpush1.bf16.msra.mxu0 %v3567
    %5171 = vmatprep.subr.bf16.mxu0 0
    %5172 = vmatpush1.bf16.msra.mxu0 %v3568
    %5173 = vmatprep.subr.bf16.mxu0 0
    %5174 = vmatpush1.bf16.msra.mxu0 %v3569
    %5175 = vmatprep.subr.bf16.mxu0 0
    %5176 = vmatpush1.bf16.msra.mxu0 %v3570
    %5177 = vmatprep.subr.bf16.mxu0 0
    %5178 = vmatpush1.bf16.msra.mxu0 %v3571
    %5179 = vmatprep.subr.bf16.mxu0 0
    %5180 = vmatpush1.bf16.msra.mxu0 %v3572
    %5181 = vmatprep.subr.bf16.mxu0 0
    %5182 = vmatpush1.bf16.msra.mxu0 %v3573
    %5183 = vmatprep.subr.bf16.mxu0 0
    %5184 = vmatpush1.bf16.msra.mxu0 %v3574
    %5185 = vmatprep.subr.bf16.mxu0 0
    %5186 = vmatpush1.bf16.msra.mxu0 %v3575
    %5187 = vmatprep.subr.bf16.mxu0 0
    %5188 = vmatpush1.bf16.msra.mxu0 %v3576
    %5189 = vmatprep.subr.bf16.mxu0 0
    %5190 = vmatpush1.bf16.msra.mxu0 %v3577
    %5191 = vmatprep.subr.bf16.mxu0 0
    %5192 = vmatpush1.bf16.msra.mxu0 %v3578
    %5193 = vmatprep.subr.bf16.mxu0 0
    %5194 = vmatpush1.bf16.msra.mxu0 %v3579
    %5195 = vmatprep.subr.bf16.mxu0 0
    %5196 = vmatpush1.bf16.msra.mxu0 %v3580
    %5197 = vmatprep.subr.bf16.mxu0 0
    %5198 = vmatpush1.bf16.msra.mxu0 %v3581
    %5199 = vmatprep.mubr.bf16.mxu0 %v228
    %5200 = vmatmul.mubr.bf16.gmra.mrb[0].mxu0 %v227
    %v5201 = vpop.f32.mrb[0].mxu0
    %v5202 = vadd.f32 %v5162, %v5201
    %v5203 = vpop.f32.mrb[0].mxu0
    %v5204 = vpop.f32.mrb[0].mxu0
    %v5205 = vpop.f32.mrb[0].mxu0
    %5206 = vdwg.mxu0
    %5207 = vmatprep.subr.bf16.mxu0 0
    %5208 = vmatpush1.bf16.msra.mxu0 %v3582
    %5209 = vmatprep.subr.bf16.mxu0 0
    %5210 = vmatpush1.bf16.msra.mxu0 %v3583
    %5211 = vmatprep.subr.bf16.mxu0 0
    %5212 = vmatpush1.bf16.msra.mxu0 %v3584
    %5213 = vmatprep.subr.bf16.mxu0 0
    %5214 = vmatpush1.bf16.msra.mxu0 %v3585
    %5215 = vmatprep.subr.bf16.mxu0 0
    %5216 = vmatpush1.bf16.msra.mxu0 %v3586
    %5217 = vmatprep.subr.bf16.mxu0 0
    %5218 = vmatpush1.bf16.msra.mxu0 %v3587
    %5219 = vmatprep.subr.bf16.mxu0 0
    %5220 = vmatpush1.bf16.msra.mxu0 %v3588
    %5221 = vmatprep.subr.bf16.mxu0 0
    %5222 = vmatpush1.bf16.msra.mxu0 %v3589
    %5223 = vmatprep.subr.bf16.mxu0 0
    %5224 = vmatpush1.bf16.msra.mxu0 %v3590
    %5225 = vmatprep.subr.bf16.mxu0 0
    %5226 = vmatpush1.bf16.msra.mxu0 %v3591
    %5227 = vmatprep.subr.bf16.mxu0 0
    %5228 = vmatpush1.bf16.msra.mxu0 %v3592
    %5229 = vmatprep.subr.bf16.mxu0 0
    %5230 = vmatpush1.bf16.msra.mxu0 %v3593
    %5231 = vmatprep.subr.bf16.mxu0 0
    %5232 = vmatpush1.bf16.msra.mxu0 %v3594
    %5233 = vmatprep.subr.bf16.mxu0 0
    %5234 = vmatpush1.bf16.msra.mxu0 %v3595
    %5235 = vmatprep.subr.bf16.mxu0 0
    %5236 = vmatpush1.bf16.msra.mxu0 %v3596
    %5237 = vmatprep.subr.bf16.mxu0 0
    %5238 = vmatpush1.bf16.msra.mxu0 %v3597
    %5239 = vmatprep.mubr.bf16.mxu0 %v230
    %5240 = vmatmul.mubr.bf16.gmra.mrb[0].mxu0 %v229
    %v5241 = vpop.f32.mrb[0].mxu0
    %v5242 = vadd.f32 %v5202, %v5241
    %v5243 = vpop.f32.mrb[0].mxu0
    %v5244 = vpop.f32.mrb[0].mxu0
    %v5245 = vpop.f32.mrb[0].mxu0
    %5246 = vdwg.mxu0
    %5247 = vmatprep.subr.bf16.mxu0 0
    %5248 = vmatpush1.bf16.msra.mxu0 %v3598
    %5249 = vmatprep.subr.bf16.mxu0 0
    %5250 = vmatpush1.bf16.msra.mxu0 %v3599
    %5251 = vmatprep.subr.bf16.mxu0 0
    %5252 = vmatpush1.bf16.msra.mxu0 %v3600
    %5253 = vmatprep.subr.bf16.mxu0 0
    %5254 = vmatpush1.bf16.msra.mxu0 %v3601
    %5255 = vmatprep.subr.bf16.mxu0 0
    %5256 = vmatpush1.bf16.msra.mxu0 %v3602
    %5257 = vmatprep.subr.bf16.mxu0 0
    %5258 = vmatpush1.bf16.msra.mxu0 %v3603
    %5259 = vmatprep.subr.bf16.mxu0 0
    %5260 = vmatpush1.bf16.msra.mxu0 %v3604
    %5261 = vmatprep.subr.bf16.mxu0 0
    %5262 = vmatpush1.bf16.msra.mxu0 %v3605
    %5263 = vmatprep.subr.bf16.mxu0 0
    %5264 = vmatpush1.bf16.msra.mxu0 %v3606
    %5265 = vmatprep.subr.bf16.mxu0 0
    %5266 = vmatpush1.bf16.msra.mxu0 %v3607
    %5267 = vmatprep.subr.bf16.mxu0 0
    %5268 = vmatpush1.bf16.msra.mxu0 %v3608
    %5269 = vmatprep.subr.bf16.mxu0 0
    %5270 = vmatpush1.bf16.msra.mxu0 %v3609
    %5271 = vmatprep.subr.bf16.mxu0 0
    %5272 = vmatpush1.bf16.msra.mxu0 %v3610
    %5273 = vmatprep.subr.bf16.mxu0 0
    %5274 = vmatpush1.bf16.msra.mxu0 %v3611
    %5275 = vmatprep.subr.bf16.mxu0 0
    %5276 = vmatpush1.bf16.msra.mxu0 %v3612
    %5277 = vmatprep.subr.bf16.mxu0 0
    %5278 = vmatpush1.bf16.msra.mxu0 %v3613
    %5279 = vmatprep.mubr.bf16.mxu0 %v232
    %5280 = vmatmul.mubr.bf16.gmra.mrb[0].mxu0 %v231
    %v5281 = vpop.f32.mrb[0].mxu0
    %v5282 = vadd.f32 %v5242, %v5281
    %v5283 = vpop.f32.mrb[0].mxu0
    %v5284 = vpop.f32.mrb[0].mxu0
    %v5285 = vpop.f32.mrb[0].mxu0
    %5286 = vdwg.mxu0
    %5287 = vmatprep.subr.bf16.mxu0 0
    %5288 = vmatpush1.bf16.msra.mxu0 %v3614
    %5289 = vmatprep.subr.bf16.mxu0 0
    %5290 = vmatpush1.bf16.msra.mxu0 %v3615
    %5291 = vmatprep.subr.bf16.mxu0 0
    %5292 = vmatpush1.bf16.msra.mxu0 %v3616
    %5293 = vmatprep.subr.bf16.mxu0 0
    %5294 = vmatpush1.bf16.msra.mxu0 %v3617
    %5295 = vmatprep.subr.bf16.mxu0 0
    %5296 = vmatpush1.bf16.msra.mxu0 %v3618
    %5297 = vmatprep.subr.bf16.mxu0 0
    %5298 = vmatpush1.bf16.msra.mxu0 %v3619
    %5299 = vmatprep.subr.bf16.mxu0 0
    %5300 = vmatpush1.bf16.msra.mxu0 %v3620
    %5301 = vmatprep.subr.bf16.mxu0 0
    %5302 = vmatpush1.bf16.msra.mxu0 %v3621
    %5303 = vmatprep.subr.bf16.mxu0 0
    %5304 = vmatpush1.bf16.msra.mxu0 %v3622
    %5305 = vmatprep.subr.bf16.mxu0 0
    %5306 = vmatpush1.bf16.msra.mxu0 %v3623
    %5307 = vmatprep.subr.bf16.mxu0 0
    %5308 = vmatpush1.bf16.msra.mxu0 %v3624
    %5309 = vmatprep.subr.bf16.mxu0 0
    %5310 = vmatpush1.bf16.msra.mxu0 %v3625
    %5311 = vmatprep.subr.bf16.mxu0 0
    %5312 = vmatpush1.bf16.msra.mxu0 %v3626
    %5313 = vmatprep.subr.bf16.mxu0 0
    %5314 = vmatpush1.bf16.msra.mxu0 %v3627
    %5315 = vmatprep.subr.bf16.mxu0 0
    %5316 = vmatpush1.bf16.msra.mxu0 %v3628
    %5317 = vmatprep.subr.bf16.mxu0 0
    %5318 = vmatpush1.bf16.msra.mxu0 %v3629
    %5319 = vmatprep.mubr.bf16.mxu0 %v234
    %5320 = vmatmul.mubr.bf16.gmra.mrb[0].mxu0 %v233
    %v5321 = vpop.f32.mrb[0].mxu0
    %v5322 = vadd.f32 %v5282, %v5321
    %v5323 = vpop.f32.mrb[0].mxu0
    %v5324 = vpop.f32.mrb[0].mxu0
    %v5325 = vpop.f32.mrb[0].mxu0
    %5326 = vdwg.mxu0
    %5327 = vmatprep.subr.bf16.mxu0 0
    %5328 = vmatpush1.bf16.msra.mxu0 %v3630
    %5329 = vmatprep.subr.bf16.mxu0 0
    %5330 = vmatpush1.bf16.msra.mxu0 %v3631
    %5331 = vmatprep.subr.bf16.mxu0 0
    %5332 = vmatpush1.bf16.msra.mxu0 %v3632
    %5333 = vmatprep.subr.bf16.mxu0 0
    %5334 = vmatpush1.bf16.msra.mxu0 %v3633
    %5335 = vmatprep.subr.bf16.mxu0 0
    %5336 = vmatpush1.bf16.msra.mxu0 %v4125
    %5337 = vmatprep.subr.bf16.mxu0 0
    %5338 = vmatpush1.bf16.msra.mxu0 0
    %5339 = vmatprep.subr.bf16.mxu0 0
    %5340 = vmatpush1.bf16.msra.mxu0 0
    %5341 = vmatprep.subr.bf16.mxu0 0
    %5342 = vmatpush1.bf16.msra.mxu0 0
    %5343 = vmatprep.subr.bf16.mxu0 0
    %5344 = vmatpush1.bf16.msra.mxu0 0
    %5345 = vmatprep.subr.bf16.mxu0 0
    %5346 = vmatpush1.bf16.msra.mxu0 0
    %5347 = vmatprep.subr.bf16.mxu0 0
    %5348 = vmatpush1.bf16.msra.mxu0 0
    %5349 = vmatprep.subr.bf16.mxu0 0
    %5350 = vmatpush1.bf16.msra.mxu0 0
    %5351 = vmatprep.subr.bf16.mxu0 0
    %5352 = vmatpush1.bf16.msra.mxu0 0
    %5353 = vmatprep.subr.bf16.mxu0 0
    %5354 = vmatpush1.bf16.msra.mxu0 0
    %5355 = vmatprep.subr.bf16.mxu0 0
    %5356 = vmatpush1.bf16.msra.mxu0 0
    %5357 = vmatprep.subr.bf16.mxu0 0
    %5358 = vmatpush1.bf16.msra.mxu0 0
    %5359 = vmatprep.mubr.bf16.mxu0 0
    %5360 = vmatmul.mubr.bf16.gmra.mrb[0].mxu0 %v4121
    %v5361 = vpop.f32.mrb[0].mxu0
    %v5362 = vadd.f32 %v5322, %v5361
    %v5363 = vpop.f32.mrb[0].mxu0
    %v5364 = vpop.f32.mrb[0].mxu0
    %v5365 = vpop.f32.mrb[0].mxu0
    %5366 = vdwg.mxu0
    %v5367 = vmax.f32 %v5362, 0.0
    %v5368 = vpack.c.bf16 %v5367, %v5367
    %v5369 = vld [vmem:[#allocation7] sm:$0xf]
    %v5370 = vld [vmem:[#allocation7 + $0x4] sm:$0xf]
    %v5371 = vld [vmem:[#allocation7 + $0x8] sm:$0xf]
    %v5372 = vld [vmem:[#allocation7 + $0xc] sm:$0xf]
    %v5373 = vld [vmem:[#allocation7 + $0x10] sm:$0xf]
    %v5374 = vld [vmem:[#allocation7 + $0x14] sm:$0xf]
    %v5375 = vld [vmem:[#allocation7 + $0x18] sm:$0xf]
    %v5376 = vld [vmem:[#allocation7 + $0x1c] sm:$0xf]
    %v5377 = vld [vmem:[#allocation7 + $0x20] sm:$0xf]
    %v5378 = vld [vmem:[#allocation7 + $0x24] sm:$0xf]
    %v5379 = vld [vmem:[#allocation7 + $0x28] sm:$0xf]
    %v5380 = vld [vmem:[#allocation7 + $0x2c] sm:$0xf]
    %v5381 = vld [vmem:[#allocation7 + $0x30] sm:$0xf]
    %v5382 = vld [vmem:[#allocation7 + $0x34] sm:$0xf]
    %v5383 = vld [vmem:[#allocation7 + $0x38] sm:$0xf]
    %v5384 = vld [vmem:[#allocation7 + $0x3c] sm:$0xf]
    %v5385 = vld [vmem:[#allocation9] sm:$0x1]
    %v5387 = vlaneseq
    %v5388 = vshrl.u32 %v5387, 7
    %v5389 = vsub.s32 0, %v5388
    %v5390 = vrot.slane %v5385, %v5389
    %v5408 = vunpack.c.l.b16 %v5369
    %v5409 = vunpack.c.l.b16 %v5370
    %v5410 = vunpack.c.l.b16 %v5371
    %v5411 = vunpack.c.l.b16 %v5372
    %v5412 = vunpack.c.l.b16 %v5373
    %v5413 = vunpack.c.l.b16 %v5374
    %v5414 = vunpack.c.l.b16 %v5375
    %v5415 = vunpack.c.l.b16 %v5376
    %v5416 = vunpack.c.l.b16 %v5377
    %v5417 = vunpack.c.l.b16 %v5378
    %v5418 = vunpack.c.l.b16 %v5379
    %v5419 = vunpack.c.l.b16 %v5380
    %v5420 = vunpack.c.l.b16 %v5381
    %v5421 = vunpack.c.l.b16 %v5382
    %v5422 = vunpack.c.l.b16 %v5383
    %v5423 = vunpack.c.l.b16 %v5384
    %v5424 = vpack.c.b16 %v5409, %v5408
    %v5425 = vpack.c.b16 %v5411, %v5410
    %v5426 = vpack.c.b16 %v5413, %v5412
    %v5427 = vpack.c.b16 %v5415, %v5414
    %v5428 = vpack.c.b16 %v5417, %v5416
    %v5429 = vpack.c.b16 %v5419, %v5418
    %v5430 = vpack.c.b16 %v5421, %v5420
    %v5431 = vpack.c.b16 %v5423, %v5422
    %5440 = vmatprep.subr.bf16.mxu0 0
    %5441 = vmatpush1.bf16.msra.mxu0 %v5424
    %5442 = vmatprep.subr.bf16.mxu0 0
    %5443 = vmatpush1.bf16.msra.mxu0 %v5425
    %5444 = vmatprep.subr.bf16.mxu0 0
    %5445 = vmatpush1.bf16.msra.mxu0 %v5426
    %5446 = vmatprep.subr.bf16.mxu0 0
    %5447 = vmatpush1.bf16.msra.mxu0 %v5427
    %5448 = vmatprep.subr.bf16.mxu0 0
    %5449 = vmatpush1.bf16.msra.mxu0 %v5428
    %5450 = vmatprep.subr.bf16.mxu0 0
    %5451 = vmatpush1.bf16.msra.mxu0 %v5429
    %5452 = vmatprep.subr.bf16.mxu0 0
    %5453 = vmatpush1.bf16.msra.mxu0 %v5430
    %5454 = vmatprep.subr.bf16.mxu0 0
    %5455 = vmatpush1.bf16.msra.mxu0 %v5431
    %5456 = vmatprep.subr.bf16.mxu0 0
    %5457 = vmatpush1.bf16.msra.mxu0 0
    %5458 = vmatprep.subr.bf16.mxu0 0
    %5459 = vmatpush1.bf16.msra.mxu0 0
    %5460 = vmatprep.subr.bf16.mxu0 0
    %5461 = vmatpush1.bf16.msra.mxu0 0
    %5462 = vmatprep.subr.bf16.mxu0 0
    %5463 = vmatpush1.bf16.msra.mxu0 0
    %5464 = vmatprep.subr.bf16.mxu0 0
    %5465 = vmatpush1.bf16.msra.mxu0 0
    %5466 = vmatprep.subr.bf16.mxu0 0
    %5467 = vmatpush1.bf16.msra.mxu0 0
    %5468 = vmatprep.subr.bf16.mxu0 0
    %5469 = vmatpush1.bf16.msra.mxu0 0
    %5470 = vmatprep.subr.bf16.mxu0 0
    %5471 = vmatpush1.bf16.msra.mxu0 0
    %5472 = vmatprep.mubr.bf16.mxu0 0
    %5473 = vmatmul.mubr.bf16.gmra.mrb[0].mxu0 %v5368
    %v5474 = vpop.f32.mrb[0].mxu0
    %v5475 = vadd.f32 %v5390, %v5474
    %v5476 = vpop.f32.mrb[0].mxu0
    %v5477 = vpop.f32.mrb[0].mxu0
    %v5478 = vpop.f32.mrb[0].mxu0
    %5479 = vdwg.mxu0
    %v5480 = vmax.f32 %v5475, 0.0
    %v5481 = vpack.c.bf16 %v5480, %v5480
    %v5482 = vld [vmem:[#allocation10] sm:$0xf]
    %v5483 = vld [vmem:[#allocation10 + $0x4] sm:$0xf]
    %v5484 = vld [vmem:[#allocation10 + $0x8] sm:$0xf]
    %v5485 = vld [vmem:[#allocation10 + $0xc] sm:$0xf]
    %v5486 = vld [vmem:[#allocation10 + $0x10] sm:$0xf]
    %v5487 = vld [vmem:[#allocation10 + $0x14] sm:$0xf]
    %v5488 = vld [vmem:[#allocation10 + $0x18] sm:$0xf]
    %v5489 = vld [vmem:[#allocation10 + $0x1c] sm:$0xf]
    %v5490 = vld [vmem:[#allocation10 + $0x20] sm:$0xf]
    %v5491 = vld [vmem:[#allocation10 + $0x24] sm:$0xf]
    %v5492 = vld [vmem:[#allocation10 + $0x28] sm:$0xf]
    %v5493 = vld [vmem:[#allocation10 + $0x2c] sm:$0xf]
    %v5494 = vld [vmem:[#allocation10 + $0x30] sm:$0xf]
    %v5495 = vld [vmem:[#allocation10 + $0x34] sm:$0xf]
    %v5496 = vld [vmem:[#allocation10 + $0x38] sm:$0xf]
    %v5497 = vld [vmem:[#allocation10 + $0x3c] sm:$0xf]
    %v5498 = vld [vmem:[#allocation12] sm:$0x1]
    %v5500 = vlaneseq
    %v5501 = vshrl.u32 %v5500, 7
    %v5502 = vsub.s32 0, %v5501
    %v5503 = vrot.slane %v5498, %v5502
    %v5521 = vunpack.c.l.b16 %v5482
    %v5522 = vunpack.c.l.b16 %v5483
    %v5523 = vunpack.c.l.b16 %v5484
    %v5524 = vunpack.c.l.b16 %v5485
    %v5525 = vunpack.c.l.b16 %v5486
    %v5526 = vunpack.c.l.b16 %v5487
    %v5527 = vunpack.c.l.b16 %v5488
    %v5528 = vunpack.c.l.b16 %v5489
    %v5529 = vunpack.c.l.b16 %v5490
    %v5530 = vunpack.c.l.b16 %v5491
    %v5531 = vunpack.c.l.b16 %v5492
    %v5532 = vunpack.c.l.b16 %v5493
    %v5533 = vunpack.c.l.b16 %v5494
    %v5534 = vunpack.c.l.b16 %v5495
    %v5535 = vunpack.c.l.b16 %v5496
    %v5536 = vunpack.c.l.b16 %v5497
    %v5537 = vpack.c.b16 %v5522, %v5521
    %v5538 = vpack.c.b16 %v5524, %v5523
    %v5539 = vpack.c.b16 %v5526, %v5525
    %v5540 = vpack.c.b16 %v5528, %v5527
    %v5541 = vpack.c.b16 %v5530, %v5529
    %v5542 = vpack.c.b16 %v5532, %v5531
    %v5543 = vpack.c.b16 %v5534, %v5533
    %v5544 = vpack.c.b16 %v5536, %v5535
    %5553 = vmatprep.subr.bf16.mxu0 0
    %5554 = vmatpush1.bf16.msra.mxu0 %v5537
    %5555 = vmatprep.subr.bf16.mxu0 0
    %5556 = vmatpush1.bf16.msra.mxu0 %v5538
    %5557 = vmatprep.subr.bf16.mxu0 0
    %5558 = vmatpush1.bf16.msra.mxu0 %v5539
    %5559 = vmatprep.subr.bf16.mxu0 0
    %5560 = vmatpush1.bf16.msra.mxu0 %v5540
    %5561 = vmatprep.subr.bf16.mxu0 0
    %5562 = vmatpush1.bf16.msra.mxu0 %v5541
    %5563 = vmatprep.subr.bf16.mxu0 0
    %5564 = vmatpush1.bf16.msra.mxu0 %v5542
    %5565 = vmatprep.subr.bf16.mxu0 0
    %5566 = vmatpush1.bf16.msra.mxu0 %v5543
    %5567 = vmatprep.subr.bf16.mxu0 0
    %5568 = vmatpush1.bf16.msra.mxu0 %v5544
    %5569 = vmatprep.subr.bf16.mxu0 0
    %5570 = vmatpush1.bf16.msra.mxu0 0
    %5571 = vmatprep.subr.bf16.mxu0 0
    %5572 = vmatpush1.bf16.msra.mxu0 0
    %5573 = vmatprep.subr.bf16.mxu0 0
    %5574 = vmatpush1.bf16.msra.mxu0 0
    %5575 = vmatprep.subr.bf16.mxu0 0
    %5576 = vmatpush1.bf16.msra.mxu0 0
    %5577 = vmatprep.subr.bf16.mxu0 0
    %5578 = vmatpush1.bf16.msra.mxu0 0
    %5579 = vmatprep.subr.bf16.mxu0 0
    %5580 = vmatpush1.bf16.msra.mxu0 0
    %5581 = vmatprep.subr.bf16.mxu0 0
    %5582 = vmatpush1.bf16.msra.mxu0 0
    %5583 = vmatprep.subr.bf16.mxu0 0
    %5584 = vmatpush1.bf16.msra.mxu0 0
    %5585 = vmatprep.mubr.bf16.mxu0 0
    %5586 = vmatmul.mubr.bf16.gmra.mrb[0].mxu0 %v5481
    %v5587 = vpop.f32.mrb[0].mxu0
    %v5588 = vadd.f32 %v5503, %v5587
    %v5589 = vpop.f32.mrb[0].mxu0
    %v5590 = vpop.f32.mrb[0].mxu0
    %v5591 = vpop.f32.mrb[0].mxu0
    %5592 = vdwg.mxu0
    %5593 = vst [vmem:[%s7] sm:$0xff] %v5588
    // Predicated region
    $region58: #{logistic_regression_forward.1} parent=1 // pred_check
      _
    $region59: #{logistic_regression_forward.1} parent=1 // pred_check_branch
      %5595 = sbr.rel (0) target = $region61
    $region60: #{logistic_regression_forward.1} parent=1 // pred_region
      _
    $region61: #{logistic_regression_forward.1} parent=1 // pred_fallthru
      _
    // Predicated region
    $region62: #{logistic_regression_forward.1} parent=1 // pred_check
      _
    $region63: #{logistic_regression_forward.1} parent=1 // pred_check_branch
      %5597 = sbr.rel (0) target = $region65
    $region64: #{logistic_regression_forward.1} parent=1 // pred_region
      _
    $region65: #{logistic_regression_forward.1} parent=1 // pred_fallthru
      _
    %5598 = vsyncpa [#allocation3], 1
    %5599 = vsyncpa [#allocation5], 1
    %5600 = vsyncpa [#allocation8], 1
    %5601 = vsyncpa [#allocation11], 1

</llo_original>
